<compile_context>
chip_gen: v7x
topology: tpu7x:2x2x1
jax: 0.10.0
libtpu: 0.0.40
codegen_flags: <defaults>
</compile_context>

<pallas_src>
from functools import partial

import jax
import jax.numpy as jnp
from jax import lax
from jax.experimental import pallas as pl
from jax.experimental.pallas import tpu as pltpu


def _round_up(x, m):
    return ((x + m - 1) // m) * m


def lstm_classifier_kernel(emb_ref, wih_ref, whh_ref, b_ref, wcls_ref, bcls_ref,
                           out_ref, gx_sc, h_sc, c_sc, *, t_true, guard_tail):
    """Grid step s: run the recurrence over chunk s-1 while projecting chunk s.

    emb_ref : (Tc*Bp, Ep) bf16  time-major rows (t, b) of chunk min(s, NC-1)
    wih_ref : (Ep, 4Hp)  bf16   gate columns [i | f | o | g], lane-padded
    whh_ref : (Hp, 4Hp)  bf16
    b_ref   : (1, 4Hp)   f32    b_ih + b_hh
    wcls_ref: (Hp, NP)   bf16   classifier weight, zero-padded to NP=128 lanes
    bcls_ref: (1, NP)    f32
    out_ref : (Bp, NP)   f32    padded logits (written on the last grid step)
    gx_sc   : (Tc*Bp, 4Hp) f32  rolling x-projection buffer (one chunk ahead)
    h_sc    : (Bp, Hp)   bf16   hidden state (carried across grid steps)
    c_sc    : (Bp, Hp)   f32    cell state   (carried across grid steps)
    """
    s = pl.program_id(0)
    last = pl.num_programs(0) - 1            # grid has NC+1 steps
    Bt, Hp = h_sc.shape
    Tc = emb_ref.shape[0] // Bt

    @pl.when(s == 0)
    def _prologue():
        h_sc[...] = jnp.zeros_like(h_sc)     # h_0 = 0 (matches _init_state)
        c_sc[...] = jnp.zeros_like(c_sc)     # c_0 = 0
        # Prime the rolling gx buffer with chunk 0's projection: one big MXU matmul,
        # off the serial h->h critical path.
        gx_sc[...] = (
            jnp.dot(emb_ref[...], wih_ref[...], preferred_element_type=jnp.float32)
            + b_ref[...]
        )

    @pl.when(s > 0)
    def _recurrence():
        chunk = s - 1
        base_t = chunk * Tc

        def step(t, carry):
            rows = pl.ds(t * Bt, Bt)
            # Gates for global timestep chunk*Tc + t; gx already holds emb@W_ih + b.
            gates = gx_sc[rows, :] + jnp.dot(
                h_sc[...], whh_ref[...], preferred_element_type=jnp.float32
            )                                              # (Bt, 4Hp) f32
            sig = jax.nn.sigmoid(gates[:, :3 * Hp])        # i, f, o in ONE EUP stream
            g_g = jnp.tanh(gates[:, 3 * Hp:])
            i_g = sig[:, :Hp]
            f_g = sig[:, Hp:2 * Hp]
            o_g = sig[:, 2 * Hp:]
            c_new = f_g * c_sc[...] + i_g * g_g
            h_new = (o_g * jnp.tanh(c_new)).astype(h_sc.dtype)
            if guard_tail:
                valid = (base_t + t) < t_true              # padded timesteps: keep state
                c_sc[...] = jnp.where(valid, c_new, c_sc[...])
                h_sc[...] = jnp.where(valid, h_new, h_sc[...])
            else:
                c_sc[...] = c_new
                h_sc[...] = h_new
            # Rolling projection: this chunk's row-block has been consumed, so overwrite
            # it in place with the NEXT chunk's projection (emb block is one chunk ahead).
            # Independent of the serial h/c chain -> overlappable with the EUP gate math.
            # (On the final grid step this projection is dead work and simply discarded.)
            gx_sc[rows, :] = (
                jnp.dot(emb_ref[rows, :], wih_ref[...],
                        preferred_element_type=jnp.float32)
                + b_ref[...]
            )
            return carry

        # Fully unrolled so the scheduler can interleave MXU / EUP / VPU across steps.
        lax.fori_loop(0, Tc, step, 0, unroll=True)

    @pl.when(s == last)
    def _finalize():
        # output[:, -1, :] of a unidirectional single-layer LSTM == final h.
        out_ref[...] = (
            jnp.dot(h_sc[...], wcls_ref[...], preferred_element_type=jnp.float32)
            + bcls_ref[...]
        )


def sentence_classifier_forward(token_ids, kparams, *, t_chunk=None, n_classes=2,
                                vmem_budget_bytes=40 * 2**20):
    """token_ids: (B, T) int32. Returns logits (B, n_classes) f32."""
    embed_tbl = kparams["embedding"]             # (V, Ep) bf16, row 0 zeros (padding_idx=0)
    B, T = token_ids.shape
    Ep = embed_tbl.shape[1]
    Hp = kparams["w_hh_t"].shape[0]
    G = kparams["w_ih_t"].shape[1]               # 4*Hp
    NP = kparams["w_cls_t"].shape[1]             # padded logits width (128)

    # Batch padded to a multiple of 16 so the bf16 (tc*Bp, Ep) slab is sublane-pack aligned.
    Bp = max(16, _round_up(B, 16))

    # ---- derive t_chunk + vmem_limit from the actual buffer sizes ---------------------
    bytes_fixed = ((Ep * G + Hp * G + Hp * NP) * 2        # bf16 weights (single-buffered)
                   + (G + NP) * 4                         # f32 biases
                   + Bp * Hp * (2 + 4)                    # h (bf16) + c (f32) state
                   + 2 * Bp * NP * 4)                     # output block (double-buffered)
    bytes_per_tc = Bp * (2 * Ep * 2                       # double-buffered bf16 emb slab
                         + G * 4)                         # rolling gx buffer (f32)
    if t_chunk is None:
        tc = (vmem_budget_bytes - bytes_fixed) // bytes_per_tc
        tc = int(max(1, min(32, T, tc)))
    else:
        tc = int(max(1, min(int(t_chunk), T)))

    # Pad T up to a multiple of tc; padded timesteps are masked inside the kernel so the
    # "last hidden state" semantics are preserved (no silent tc=1 fallback for odd T).
    T_pad = _round_up(T, tc)
    NC = T_pad // tc
    guard_tail = (T_pad != T)

    vmem_need = bytes_fixed + tc * bytes_per_tc
    vmem_limit = int(min(max(int(vmem_need * 1.25) + (4 << 20), 32 << 20), 64 << 20))

    # Pad batch + time; pad tokens use id 0 == padding_idx -> zero embedding row.
    ids = jnp.pad(token_ids, ((0, Bp - B), (0, T_pad - T)))

    # Embedding gather fused with the (B,T)->(T,B) transpose; time-major rows (t, b),
    # collapsed to 2D so the kernel streams lane/sublane-aligned (tc*Bp, Ep) slabs.
    emb = jnp.take(embed_tbl, ids.T, axis=0).reshape(T_pad * Bp, Ep)

    kernel = partial(lstm_classifier_kernel, t_true=T, guard_tail=guard_tail)
    resident = dict(pipeline_mode=pl.Buffered(1))          # grid-invariant: single buffer

    logits_full = pl.pallas_call(
        kernel,
        out_shape=jax.ShapeDtypeStruct((Bp, NP), jnp.float32),
        grid_spec=pltpu.PrefetchScalarGridSpec(
            num_scalar_prefetch=0,
            grid=(NC + 1,),                                 # +1: projection runs one chunk ahead
            in_specs=[
                # Streamed emb slab, one chunk AHEAD of the recurrence (clamped on last step).
                pl.BlockSpec((tc * Bp, Ep), lambda s: (jnp.minimum(s, NC - 1), 0)),
                pl.BlockSpec((Ep, G), lambda s: (0, 0), **resident),    # w_ih_t
                pl.BlockSpec((Hp, G), lambda s: (0, 0), **resident),    # w_hh_t
                pl.BlockSpec((1, G), lambda s: (0, 0), **resident),     # fused bias
                pl.BlockSpec((Hp, NP), lambda s: (0, 0), **resident),   # classifier W
                pl.BlockSpec((1, NP), lambda s: (0, 0), **resident),    # classifier b
            ],
            out_specs=pl.BlockSpec((Bp, NP), lambda s: (0, 0)),
            scratch_shapes=[
                pltpu.VMEM((tc * Bp, G), jnp.float32),   # rolling x-projection buffer
                pltpu.VMEM((Bp, Hp), jnp.bfloat16),      # h state (bf16: feeds MXU directly)
                pltpu.VMEM((Bp, Hp), jnp.float32),       # c state
            ],
        ),
        compiler_params=pltpu.CompilerParams(
            dimension_semantics=("arbitrary",),          # time axis: sequential recurrence
            vmem_limit_bytes=vmem_limit,
        ),
    )(
        emb,
        kparams["w_ih_t"],
        kparams["w_hh_t"],
        kparams["bias"],
        kparams["w_cls_t"],
        kparams["b_cls"],
    )
    return logits_full[:B, :n_classes]


def make_params(key, n_vocab, embed_size, hidden_size, n_classes=2):
    """PyTorch-layout f32 parameters (gate order [i, f, g, o])."""
    k = jax.random.split(key, 7)
    s = 0.1
    embedding = s * jax.random.normal(k[0], (n_vocab, embed_size), jnp.float32)
    embedding = embedding.at[0].set(0.0)  # padding_idx=0
    w_ih = s * jax.random.normal(k[1], (4 * hidden_size, embed_size), jnp.float32)
    w_hh = s * jax.random.normal(k[2], (4 * hidden_size, hidden_size), jnp.float32)
    b_ih = s * jax.random.normal(k[3], (4 * hidden_size,), jnp.float32)
    b_hh = s * jax.random.normal(k[4], (4 * hidden_size,), jnp.float32)
    w_cls = s * jax.random.normal(k[5], (n_classes, hidden_size), jnp.float32)
    b_cls = s * jax.random.normal(k[6], (n_classes,), jnp.float32)
    return dict(embedding=embedding, w_ih=w_ih, w_hh=w_hh, b_ih=b_ih, b_hh=b_hh,
                w_cls=w_cls, b_cls=b_cls)


def prepare_kernel_params(params, *, compute_dtype=jnp.bfloat16, lane=128, out_pad=128):
    """Kernel-ready params: gate reorder [i,f,g,o]->[i,f,o,g], transpose, bf16 cast,
    every contraction / gate / output dim zero-padded to a 128-lane multiple.

    Zero-padded gate columns are exact no-ops: their pre-activations are 0, so
    i=f=o=0.5, g=0, and the padded h/c columns stay identically zero forever.
    """
    E = params["embedding"].shape[1]
    H = params["w_hh"].shape[1]
    n_cls = params["w_cls"].shape[0]
    Ep = _round_up(E, lane)
    Hp = _round_up(H, lane)

    def pack_gates_T(w, in_dim_pad):
        # w: (4H, X), rows [i; f; g; o]  ->  (X_pad, 4Hp), columns [i | f | o | g],
        # each gate block zero-padded H -> Hp, input rows X -> X_pad.
        i, f, g, o = jnp.split(w, 4, axis=0)
        cols = []
        for gmat in (i, f, o, g):
            gt = gmat.T                                                  # (X, H)
            gt = jnp.pad(gt, ((0, in_dim_pad - gt.shape[0]), (0, Hp - H)))
            cols.append(gt)
        return jnp.concatenate(cols, axis=1)

    w_ih_t = pack_gates_T(params["w_ih"], Ep)            # (Ep, 4Hp)
    w_hh_t = pack_gates_T(params["w_hh"], Hp)            # (Hp, 4Hp)

    bi, bf, bg, bo = jnp.split(params["b_ih"] + params["b_hh"], 4)
    padg = lambda x: jnp.pad(x, (0, Hp - H))
    bias = jnp.concatenate([padg(bi), padg(bf), padg(bo), padg(bg)]).reshape(1, -1)

    emb = jnp.pad(params["embedding"], ((0, 0), (0, Ep - E)))

    w_cls = jnp.zeros((Hp, out_pad), jnp.float32).at[:H, :n_cls].set(params["w_cls"].T)
    b_cls = jnp.zeros((1, out_pad), jnp.float32).at[0, :n_cls].set(params["b_cls"])

    return {
        "embedding": emb.astype(compute_dtype),      # (V, Ep)
        "w_ih_t": w_ih_t.astype(compute_dtype),      # (Ep, 4Hp)
        "w_hh_t": w_hh_t.astype(compute_dtype),      # (Hp, 4Hp)
        "bias": bias.astype(jnp.float32),            # (1, 4Hp)
        "w_cls_t": w_cls.astype(compute_dtype),      # (Hp, 128)
        "b_cls": b_cls,                              # (1, 128)
    }


def reference_forward(token_ids, params):
    """Pure-JAX f32 reference of the PyTorch forward (LSTM, gate order i,f,g,o)."""
    emb = jnp.take(params["embedding"], token_ids, axis=0)   # (B, T, E)
    B, T, _ = emb.shape
    H = params["w_hh"].shape[1]
    w_ih_t = params["w_ih"].T
    w_hh_t = params["w_hh"].T
    bias = params["b_ih"] + params["b_hh"]
    h = jnp.zeros((B, H), jnp.float32)
    c = jnp.zeros((B, H), jnp.float32)
    for t in range(T):
        g = emb[:, t, :] @ w_ih_t + h @ w_hh_t + bias
        i = jax.nn.sigmoid(g[:, 0 * H:1 * H])
        f = jax.nn.sigmoid(g[:, 1 * H:2 * H])
        gg = jnp.tanh(g[:, 2 * H:3 * H])
        o = jax.nn.sigmoid(g[:, 3 * H:4 * H])
        c = f * c + i * gg
        h = o * jnp.tanh(c)
    return h @ params["w_cls"].T + params["b_cls"]


if __name__ == "__main__":
    n_vocab, embed_size, hidden_size = 100, 32, 32
    B, T = 2, 9   # odd T: exercises the time-padding + tail-guard path

    key = jax.random.PRNGKey(0)
    pkey, xkey = jax.random.split(key)
    params = make_params(pkey, n_vocab, embed_size, hidden_size)
    kparams = prepare_kernel_params(params)
    token_ids = jax.random.randint(xkey, (B, T), 0, n_vocab, dtype=jnp.int32)

    ref = reference_forward(token_ids, params)

    # t_chunk=4 -> 3 time-chunks (last one partial), exercising the carried h/c scratch,
    # the chunk-ahead rolling projection, and the padded-tail guard.
    logits = sentence_classifier_forward(token_ids, kparams, t_chunk=4, n_classes=2)
    logits = jax.block_until_ready(logits)
    assert logits.shape == (B, 2), logits.shape
    # bf16 weights/activations (and bf16-carried h) vs f32 reference -> loose tolerance.
    assert jnp.allclose(logits, ref, atol=3e-2, rtol=3e-2), (logits, ref)

    # Auto-sized chunk path (t_chunk derived from the VMEM budget; no tail padding here).
    logits2 = jax.block_until_ready(
        sentence_classifier_forward(token_ids, kparams, n_classes=2))
    assert jnp.allclose(logits2, ref, atol=3e-2, rtol=3e-2), (logits2, ref)

    print("KERNEL_OK")
</pallas_src>

<mosaic_0001>
module attributes {stable_mosaic.version = 11 : i64} {
  func.func @lstm_classifier_kernel(%arg0: i32, %arg1: memref<64x128xbf16, #tpu.memory_space<vmem>>, %arg2: memref<128x512xbf16, #tpu.memory_space<vmem>>, %arg3: memref<128x512xbf16, #tpu.memory_space<vmem>>, %arg4: memref<1x512xf32, #tpu.memory_space<vmem>>, %arg5: memref<128x128xbf16, #tpu.memory_space<vmem>>, %arg6: memref<1x128xf32, #tpu.memory_space<vmem>>, %arg7: memref<16x128xf32, #tpu.memory_space<vmem>>, %arg8: memref<64x512xf32, #tpu.memory_space<vmem>>, %arg9: memref<16x128xbf16, #tpu.memory_space<vmem>>, %arg10: memref<16x128xf32, #tpu.memory_space<vmem>>) attributes {dimension_semantics = [#tpu.dimension_semantics<arbitrary>], iteration_bounds = array<i64: 4>, scalar_prefetch = 0 : i64, scratch_operands = 3 : i64, tpu.core_type = #tpu.core_type<tc>, window_params = [{transform_indices = @transform_0, window_bounds = array<i64: 64, 128>}, {pipeline_mode = #tpu.pipeline_mode<synchronous>, transform_indices = @transform_1, window_bounds = array<i64: 128, 512>}, {pipeline_mode = #tpu.pipeline_mode<synchronous>, transform_indices = @transform_2, window_bounds = array<i64: 128, 512>}, {pipeline_mode = #tpu.pipeline_mode<synchronous>, transform_indices = @transform_3, window_bounds = array<i64: 1, 512>}, {pipeline_mode = #tpu.pipeline_mode<synchronous>, transform_indices = @transform_4, window_bounds = array<i64: 128, 128>}, {pipeline_mode = #tpu.pipeline_mode<synchronous>, transform_indices = @transform_5, window_bounds = array<i64: 1, 128>}, {pipeline_mode = #tpu.pipeline_mode<synchronous>, transform_indices = @transform_6, window_bounds = array<i64: 16, 128>}]} {
    %c0_i32 = arith.constant 0 : i32
    %0 = arith.cmpi eq, %arg0, %c0_i32 : i32
    %1 = arith.extui %0 : i1 to i32
    %c0_i32_0 = arith.constant 0 : i32
    %2 = arith.cmpi ne, %1, %c0_i32_0 : i32
    scf.if %2 {
      %cst = arith.constant 0.000000e+00 : bf16
      %9 = vector.broadcast %cst : bf16 to vector<16x128xbf16>
      %c0 = arith.constant 0 : index
      %c0_4 = arith.constant 0 : index
      %10 = vector.load %arg9[%c0, %c0_4] : memref<16x128xbf16, #tpu.memory_space<vmem>>, vector<16x128xbf16>
      tpu.vector_store %arg9[%c0, %c0_4], %9 {strides = array<i32>} : memref<16x128xbf16, #tpu.memory_space<vmem>>, vector<16x128xbf16>,
      %cst_5 = arith.constant 0.000000e+00 : f32
      %11 = vector.broadcast %cst_5 : f32 to vector<16x128xf32>
      %c0_6 = arith.constant 0 : index
      %c0_7 = arith.constant 0 : index
      %12 = vector.load %arg10[%c0_6, %c0_7] : memref<16x128xf32, #tpu.memory_space<vmem>>, vector<16x128xf32>
      tpu.vector_store %arg10[%c0_6, %c0_7], %11 {strides = array<i32>} : memref<16x128xf32, #tpu.memory_space<vmem>>, vector<16x128xf32>,
      %c0_8 = arith.constant 0 : index
      %c0_9 = arith.constant 0 : index
      %13 = vector.load %arg1[%c0_8, %c0_9] : memref<64x128xbf16, #tpu.memory_space<vmem>>, vector<64x128xbf16>
      %c0_10 = arith.constant 0 : index
      %c0_11 = arith.constant 0 : index
      %14 = vector.load %arg2[%c0_10, %c0_11] : memref<128x512xbf16, #tpu.memory_space<vmem>>, vector<128x512xbf16>
      %cst_12 = arith.constant dense<0.000000e+00> : vector<64x512xf32>
      %15 = tpu.matmul %13, %14, %cst_12 {dimension_numbers = #tpu.dot_dimension_numbers<[1], [0], [0], [1], [0, 0, 1, 1], [], []>} : vector<64x128xbf16>, vector<128x512xbf16>, vector<64x512xf32> -> vector<64x512xf32>
      %c0_13 = arith.constant 0 : index
      %c0_14 = arith.constant 0 : index
      %16 = vector.load %arg4[%c0_13, %c0_14] : memref<1x512xf32, #tpu.memory_space<vmem>>, vector<1x512xf32>
      %17 = vector.broadcast %16 : vector<1x512xf32> to vector<64x512xf32>
      %18 = arith.addf %15, %17 : vector<64x512xf32>
      %c0_15 = arith.constant 0 : index
      %c0_16 = arith.constant 0 : index
      %19 = vector.load %arg8[%c0_15, %c0_16] : memref<64x512xf32, #tpu.memory_space<vmem>>, vector<64x512xf32>
      tpu.vector_store %arg8[%c0_15, %c0_16], %18 {strides = array<i32>} : memref<64x512xf32, #tpu.memory_space<vmem>>, vector<64x512xf32>,
    } else {
    }
    %c0_i32_1 = arith.constant 0 : i32
    %3 = arith.cmpi sgt, %arg0, %c0_i32_1 : i32
    %4 = arith.extui %3 : i1 to i32
    %c0_i32_2 = arith.constant 0 : i32
    %5 = arith.cmpi ne, %4, %c0_i32_2 : i32
    scf.if %5 {
      %c1_i32 = arith.constant 1 : i32
      %9 = arith.subi %arg0, %c1_i32 : i32
      %c4_i32 = arith.constant 4 : i32
      %10 = arith.muli %9, %c4_i32 : i32
      %c0_i32_4 = arith.constant 0 : i32
      %c16_i32 = arith.constant 16 : i32
      %11 = arith.muli %c0_i32_4, %c16_i32 : i32
      %12 = arith.index_cast %11 : i32 to index
      %c0 = arith.constant 0 : index
      %13 = vector.load %arg8[%12, %c0] : memref<64x512xf32, #tpu.memory_space<vmem>>, vector<16x512xf32>
      %c0_5 = arith.constant 0 : index
      %c0_6 = arith.constant 0 : index
      %14 = vector.load %arg9[%c0_5, %c0_6] : memref<16x128xbf16, #tpu.memory_space<vmem>>, vector<16x128xbf16>
      %c0_7 = arith.constant 0 : index
      %c0_8 = arith.constant 0 : index
      %15 = vector.load %arg3[%c0_7, %c0_8] : memref<128x512xbf16, #tpu.memory_space<vmem>>, vector<128x512xbf16>
      %cst = arith.constant dense<0.000000e+00> : vector<16x512xf32>
      %16 = tpu.matmul %14, %15, %cst {dimension_numbers = #tpu.dot_dimension_numbers<[1], [0], [0], [1], [0, 0, 1, 1], [], []>} : vector<16x128xbf16>, vector<128x512xbf16>, vector<16x512xf32> -> vector<16x512xf32>
      %17 = arith.addf %13, %16 : vector<16x512xf32>
      %18 = vector.extract_strided_slice %17 {offsets = [0, 0], sizes = [16, 384], strides = [1, 1]} : vector<16x512xf32> to vector<16x384xf32>
      %19 = arith.negf %18 : vector<16x384xf32>
      %20 = math.exp %19 : vector<16x384xf32>
      %cst_9 = arith.constant 1.000000e+00 : f32
      %21 = vector.broadcast %cst_9 : f32 to vector<16x384xf32>
      %22 = arith.addf %21, %20 : vector<16x384xf32>
      %23 = arith.divf %21, %22 : vector<16x384xf32>
      %24 = vector.extract_strided_slice %17 {offsets = [0, 384], sizes = [16, 128], strides = [1, 1]} : vector<16x512xf32> to vector<16x128xf32>
      %25 = math.tanh %24 : vector<16x128xf32>
      %26 = vector.extract_strided_slice %23 {offsets = [0, 0], sizes = [16, 128], strides = [1, 1]} : vector<16x384xf32> to vector<16x128xf32>
      %27 = vector.extract_strided_slice %23 {offsets = [0, 128], sizes = [16, 128], strides = [1, 1]} : vector<16x384xf32> to vector<16x128xf32>
      %28 = vector.extract_strided_slice %23 {offsets = [0, 256], sizes = [16, 128], strides = [1, 1]} : vector<16x384xf32> to vector<16x128xf32>
      %c0_10 = arith.constant 0 : index
      %c0_11 = arith.constant 0 : index
      %29 = vector.load %arg10[%c0_10, %c0_11] : memref<16x128xf32, #tpu.memory_space<vmem>>, vector<16x128xf32>
      %30 = arith.mulf %27, %29 : vector<16x128xf32>
      %31 = arith.mulf %26, %25 : vector<16x128xf32>
      %32 = arith.addf %30, %31 : vector<16x128xf32>
      %33 = math.tanh %32 : vector<16x128xf32>
      %34 = arith.mulf %28, %33 : vector<16x128xf32>
      %35 = arith.truncf %34 : vector<16x128xf32> to vector<16x128xbf16>
      %36 = arith.addi %10, %c0_i32_4 : i32
      %c9_i32 = arith.constant 9 : i32
      %37 = arith.cmpi slt, %36, %c9_i32 : i32
      %c0_12 = arith.constant 0 : index
      %c0_13 = arith.constant 0 : index
      %38 = vector.load %arg10[%c0_12, %c0_13] : memref<16x128xf32, #tpu.memory_space<vmem>>, vector<16x128xf32>
      %39 = arith.select %37, %32, %38 : vector<16x128xf32>
      %c0_14 = arith.constant 0 : index
      %c0_15 = arith.constant 0 : index
      %40 = vector.load %arg10[%c0_14, %c0_15] : memref<16x128xf32, #tpu.memory_space<vmem>>, vector<16x128xf32>
      tpu.vector_store %arg10[%c0_14, %c0_15], %39 {strides = array<i32>} : memref<16x128xf32, #tpu.memory_space<vmem>>, vector<16x128xf32>,
      %c0_16 = arith.constant 0 : index
      %c0_17 = arith.constant 0 : index
      %41 = vector.load %arg9[%c0_16, %c0_17] : memref<16x128xbf16, #tpu.memory_space<vmem>>, vector<16x128xbf16>
      %42 = arith.select %37, %35, %41 : vector<16x128xbf16>
      %c0_18 = arith.constant 0 : index
      %c0_19 = arith.constant 0 : index
      %43 = vector.load %arg9[%c0_18, %c0_19] : memref<16x128xbf16, #tpu.memory_space<vmem>>, vector<16x128xbf16>
      tpu.vector_store %arg9[%c0_18, %c0_19], %42 {strides = array<i32>} : memref<16x128xbf16, #tpu.memory_space<vmem>>, vector<16x128xbf16>,
      %44 = arith.index_cast %11 : i32 to index
      %c0_20 = arith.constant 0 : index
      %45 = vector.load %arg1[%44, %c0_20] : memref<64x128xbf16, #tpu.memory_space<vmem>>, vector<16x128xbf16>
      %c0_21 = arith.constant 0 : index
      %c0_22 = arith.constant 0 : index
      %46 = vector.load %arg2[%c0_21, %c0_22] : memref<128x512xbf16, #tpu.memory_space<vmem>>, vector<128x512xbf16>
      %cst_23 = arith.constant dense<0.000000e+00> : vector<16x512xf32>
      %47 = tpu.matmul %45, %46, %cst_23 {dimension_numbers = #tpu.dot_dimension_numbers<[1], [0], [0], [1], [0, 0, 1, 1], [], []>} : vector<16x128xbf16>, vector<128x512xbf16>, vector<16x512xf32> -> vector<16x512xf32>
      %c0_24 = arith.constant 0 : index
      %c0_25 = arith.constant 0 : index
      %48 = vector.load %arg4[%c0_24, %c0_25] : memref<1x512xf32, #tpu.memory_space<vmem>>, vector<1x512xf32>
      %49 = vector.broadcast %48 : vector<1x512xf32> to vector<16x512xf32>
      %50 = arith.addf %47, %49 : vector<16x512xf32>
      %51 = arith.index_cast %11 : i32 to index
      %c0_26 = arith.constant 0 : index
      %52 = vector.load %arg8[%51, %c0_26] : memref<64x512xf32, #tpu.memory_space<vmem>>, vector<16x512xf32>
      tpu.vector_store %arg8[%51, %c0_26], %50 {strides = array<i32>} : memref<64x512xf32, #tpu.memory_space<vmem>>, vector<16x512xf32>,
      %c1_i32_27 = arith.constant 1 : i32
      %c16_i32_28 = arith.constant 16 : i32
      %53 = arith.muli %c1_i32_27, %c16_i32_28 : i32
      %54 = arith.index_cast %53 : i32 to index
      %c0_29 = arith.constant 0 : index
      %55 = vector.load %arg8[%54, %c0_29] : memref<64x512xf32, #tpu.memory_space<vmem>>, vector<16x512xf32>
      %c0_30 = arith.constant 0 : index
      %c0_31 = arith.constant 0 : index
      %56 = vector.load %arg9[%c0_30, %c0_31] : memref<16x128xbf16, #tpu.memory_space<vmem>>, vector<16x128xbf16>
      %c0_32 = arith.constant 0 : index
      %c0_33 = arith.constant 0 : index
      %57 = vector.load %arg3[%c0_32, %c0_33] : memref<128x512xbf16, #tpu.memory_space<vmem>>, vector<128x512xbf16>
      %cst_34 = arith.constant dense<0.000000e+00> : vector<16x512xf32>
      %58 = tpu.matmul %56, %57, %cst_34 {dimension_numbers = #tpu.dot_dimension_numbers<[1], [0], [0], [1], [0, 0, 1, 1], [], []>} : vector<16x128xbf16>, vector<128x512xbf16>, vector<16x512xf32> -> vector<16x512xf32>
      %59 = arith.addf %55, %58 : vector<16x512xf32>
      %60 = vector.extract_strided_slice %59 {offsets = [0, 0], sizes = [16, 384], strides = [1, 1]} : vector<16x512xf32> to vector<16x384xf32>
      %61 = arith.negf %60 : vector<16x384xf32>
      %62 = math.exp %61 : vector<16x384xf32>
      %cst_35 = arith.constant 1.000000e+00 : f32
      %63 = vector.broadcast %cst_35 : f32 to vector<16x384xf32>
      %64 = arith.addf %63, %62 : vector<16x384xf32>
      %65 = arith.divf %63, %64 : vector<16x384xf32>
      %66 = vector.extract_strided_slice %59 {offsets = [0, 384], sizes = [16, 128], strides = [1, 1]} : vector<16x512xf32> to vector<16x128xf32>
      %67 = math.tanh %66 : vector<16x128xf32>
      %68 = vector.extract_strided_slice %65 {offsets = [0, 0], sizes = [16, 128], strides = [1, 1]} : vector<16x384xf32> to vector<16x128xf32>
      %69 = vector.extract_strided_slice %65 {offsets = [0, 128], sizes = [16, 128], strides = [1, 1]} : vector<16x384xf32> to vector<16x128xf32>
      %70 = vector.extract_strided_slice %65 {offsets = [0, 256], sizes = [16, 128], strides = [1, 1]} : vector<16x384xf32> to vector<16x128xf32>
      %c0_36 = arith.constant 0 : index
      %c0_37 = arith.constant 0 : index
      %71 = vector.load %arg10[%c0_36, %c0_37] : memref<16x128xf32, #tpu.memory_space<vmem>>, vector<16x128xf32>
      %72 = arith.mulf %69, %71 : vector<16x128xf32>
      %73 = arith.mulf %68, %67 : vector<16x128xf32>
      %74 = arith.addf %72, %73 : vector<16x128xf32>
      %75 = math.tanh %74 : vector<16x128xf32>
      %76 = arith.mulf %70, %75 : vector<16x128xf32>
      %77 = arith.truncf %76 : vector<16x128xf32> to vector<16x128xbf16>
      %78 = arith.addi %10, %c1_i32_27 : i32
      %c9_i32_38 = arith.constant 9 : i32
      %79 = arith.cmpi slt, %78, %c9_i32_38 : i32
      %c0_39 = arith.constant 0 : index
      %c0_40 = arith.constant 0 : index
      %80 = vector.load %arg10[%c0_39, %c0_40] : memref<16x128xf32, #tpu.memory_space<vmem>>, vector<16x128xf32>
      %81 = arith.select %79, %74, %80 : vector<16x128xf32>
      %c0_41 = arith.constant 0 : index
      %c0_42 = arith.constant 0 : index
      %82 = vector.load %arg10[%c0_41, %c0_42] : memref<16x128xf32, #tpu.memory_space<vmem>>, vector<16x128xf32>
      tpu.vector_store %arg10[%c0_41, %c0_42], %81 {strides = array<i32>} : memref<16x128xf32, #tpu.memory_space<vmem>>, vector<16x128xf32>,
      %c0_43 = arith.constant 0 : index
      %c0_44 = arith.constant 0 : index
      %83 = vector.load %arg9[%c0_43, %c0_44] : memref<16x128xbf16, #tpu.memory_space<vmem>>, vector<16x128xbf16>
      %84 = arith.select %79, %77, %83 : vector<16x128xbf16>
      %c0_45 = arith.constant 0 : index
      %c0_46 = arith.constant 0 : index
      %85 = vector.load %arg9[%c0_45, %c0_46] : memref<16x128xbf16, #tpu.memory_space<vmem>>, vector<16x128xbf16>
      tpu.vector_store %arg9[%c0_45, %c0_46], %84 {strides = array<i32>} : memref<16x128xbf16, #tpu.memory_space<vmem>>, vector<16x128xbf16>,
      %86 = arith.index_cast %53 : i32 to index
      %c0_47 = arith.constant 0 : index
      %87 = vector.load %arg1[%86, %c0_47] : memref<64x128xbf16, #tpu.memory_space<vmem>>, vector<16x128xbf16>
      %c0_48 = arith.constant 0 : index
      %c0_49 = arith.constant 0 : index
      %88 = vector.load %arg2[%c0_48, %c0_49] : memref<128x512xbf16, #tpu.memory_space<vmem>>, vector<128x512xbf16>
      %cst_50 = arith.constant dense<0.000000e+00> : vector<16x512xf32>
      %89 = tpu.matmul %87, %88, %cst_50 {dimension_numbers = #tpu.dot_dimension_numbers<[1], [0], [0], [1], [0, 0, 1, 1], [], []>} : vector<16x128xbf16>, vector<128x512xbf16>, vector<16x512xf32> -> vector<16x512xf32>
      %c0_51 = arith.constant 0 : index
      %c0_52 = arith.constant 0 : index
      %90 = vector.load %arg4[%c0_51, %c0_52] : memref<1x512xf32, #tpu.memory_space<vmem>>, vector<1x512xf32>
      %91 = vector.broadcast %90 : vector<1x512xf32> to vector<16x512xf32>
      %92 = arith.addf %89, %91 : vector<16x512xf32>
      %93 = arith.index_cast %53 : i32 to index
      %c0_53 = arith.constant 0 : index
      %94 = vector.load %arg8[%93, %c0_53] : memref<64x512xf32, #tpu.memory_space<vmem>>, vector<16x512xf32>
      tpu.vector_store %arg8[%93, %c0_53], %92 {strides = array<i32>} : memref<64x512xf32, #tpu.memory_space<vmem>>, vector<16x512xf32>,
      %c2_i32 = arith.constant 2 : i32
      %c16_i32_54 = arith.constant 16 : i32
      %95 = arith.muli %c2_i32, %c16_i32_54 : i32
      %96 = arith.index_cast %95 : i32 to index
      %c0_55 = arith.constant 0 : index
      %97 = vector.load %arg8[%96, %c0_55] : memref<64x512xf32, #tpu.memory_space<vmem>>, vector<16x512xf32>
      %c0_56 = arith.constant 0 : index
      %c0_57 = arith.constant 0 : index
      %98 = vector.load %arg9[%c0_56, %c0_57] : memref<16x128xbf16, #tpu.memory_space<vmem>>, vector<16x128xbf16>
      %c0_58 = arith.constant 0 : index
      %c0_59 = arith.constant 0 : index
      %99 = vector.load %arg3[%c0_58, %c0_59] : memref<128x512xbf16, #tpu.memory_space<vmem>>, vector<128x512xbf16>
      %cst_60 = arith.constant dense<0.000000e+00> : vector<16x512xf32>
      %100 = tpu.matmul %98, %99, %cst_60 {dimension_numbers = #tpu.dot_dimension_numbers<[1], [0], [0], [1], [0, 0, 1, 1], [], []>} : vector<16x128xbf16>, vector<128x512xbf16>, vector<16x512xf32> -> vector<16x512xf32>
      %101 = arith.addf %97, %100 : vector<16x512xf32>
      %102 = vector.extract_strided_slice %101 {offsets = [0, 0], sizes = [16, 384], strides = [1, 1]} : vector<16x512xf32> to vector<16x384xf32>
      %103 = arith.negf %102 : vector<16x384xf32>
      %104 = math.exp %103 : vector<16x384xf32>
      %cst_61 = arith.constant 1.000000e+00 : f32
      %105 = vector.broadcast %cst_61 : f32 to vector<16x384xf32>
      %106 = arith.addf %105, %104 : vector<16x384xf32>
      %107 = arith.divf %105, %106 : vector<16x384xf32>
      %108 = vector.extract_strided_slice %101 {offsets = [0, 384], sizes = [16, 128], strides = [1, 1]} : vector<16x512xf32> to vector<16x128xf32>
      %109 = math.tanh %108 : vector<16x128xf32>
      %110 = vector.extract_strided_slice %107 {offsets = [0, 0], sizes = [16, 128], strides = [1, 1]} : vector<16x384xf32> to vector<16x128xf32>
      %111 = vector.extract_strided_slice %107 {offsets = [0, 128], sizes = [16, 128], strides = [1, 1]} : vector<16x384xf32> to vector<16x128xf32>
      %112 = vector.extract_strided_slice %107 {offsets = [0, 256], sizes = [16, 128], strides = [1, 1]} : vector<16x384xf32> to vector<16x128xf32>
      %c0_62 = arith.constant 0 : index
      %c0_63 = arith.constant 0 : index
      %113 = vector.load %arg10[%c0_62, %c0_63] : memref<16x128xf32, #tpu.memory_space<vmem>>, vector<16x128xf32>
      %114 = arith.mulf %111, %113 : vector<16x128xf32>
      %115 = arith.mulf %110, %109 : vector<16x128xf32>
      %116 = arith.addf %114, %115 : vector<16x128xf32>
      %117 = math.tanh %116 : vector<16x128xf32>
      %118 = arith.mulf %112, %117 : vector<16x128xf32>
      %119 = arith.truncf %118 : vector<16x128xf32> to vector<16x128xbf16>
      %120 = arith.addi %10, %c2_i32 : i32
      %c9_i32_64 = arith.constant 9 : i32
      %121 = arith.cmpi slt, %120, %c9_i32_64 : i32
      %c0_65 = arith.constant 0 : index
      %c0_66 = arith.constant 0 : index
      %122 = vector.load %arg10[%c0_65, %c0_66] : memref<16x128xf32, #tpu.memory_space<vmem>>, vector<16x128xf32>
      %123 = arith.select %121, %116, %122 : vector<16x128xf32>
      %c0_67 = arith.constant 0 : index
      %c0_68 = arith.constant 0 : index
      %124 = vector.load %arg10[%c0_67, %c0_68] : memref<16x128xf32, #tpu.memory_space<vmem>>, vector<16x128xf32>
      tpu.vector_store %arg10[%c0_67, %c0_68], %123 {strides = array<i32>} : memref<16x128xf32, #tpu.memory_space<vmem>>, vector<16x128xf32>,
      %c0_69 = arith.constant 0 : index
      %c0_70 = arith.constant 0 : index
      %125 = vector.load %arg9[%c0_69, %c0_70] : memref<16x128xbf16, #tpu.memory_space<vmem>>, vector<16x128xbf16>
      %126 = arith.select %121, %119, %125 : vector<16x128xbf16>
      %c0_71 = arith.constant 0 : index
      %c0_72 = arith.constant 0 : index
      %127 = vector.load %arg9[%c0_71, %c0_72] : memref<16x128xbf16, #tpu.memory_space<vmem>>, vector<16x128xbf16>
      tpu.vector_store %arg9[%c0_71, %c0_72], %126 {strides = array<i32>} : memref<16x128xbf16, #tpu.memory_space<vmem>>, vector<16x128xbf16>,
      %128 = arith.index_cast %95 : i32 to index
      %c0_73 = arith.constant 0 : index
      %129 = vector.load %arg1[%128, %c0_73] : memref<64x128xbf16, #tpu.memory_space<vmem>>, vector<16x128xbf16>
      %c0_74 = arith.constant 0 : index
      %c0_75 = arith.constant 0 : index
      %130 = vector.load %arg2[%c0_74, %c0_75] : memref<128x512xbf16, #tpu.memory_space<vmem>>, vector<128x512xbf16>
      %cst_76 = arith.constant dense<0.000000e+00> : vector<16x512xf32>
      %131 = tpu.matmul %129, %130, %cst_76 {dimension_numbers = #tpu.dot_dimension_numbers<[1], [0], [0], [1], [0, 0, 1, 1], [], []>} : vector<16x128xbf16>, vector<128x512xbf16>, vector<16x512xf32> -> vector<16x512xf32>
      %c0_77 = arith.constant 0 : index
      %c0_78 = arith.constant 0 : index
      %132 = vector.load %arg4[%c0_77, %c0_78] : memref<1x512xf32, #tpu.memory_space<vmem>>, vector<1x512xf32>
      %133 = vector.broadcast %132 : vector<1x512xf32> to vector<16x512xf32>
      %134 = arith.addf %131, %133 : vector<16x512xf32>
      %135 = arith.index_cast %95 : i32 to index
      %c0_79 = arith.constant 0 : index
      %136 = vector.load %arg8[%135, %c0_79] : memref<64x512xf32, #tpu.memory_space<vmem>>, vector<16x512xf32>
      tpu.vector_store %arg8[%135, %c0_79], %134 {strides = array<i32>} : memref<64x512xf32, #tpu.memory_space<vmem>>, vector<16x512xf32>,
      %c3_i32_80 = arith.constant 3 : i32
      %c16_i32_81 = arith.constant 16 : i32
      %137 = arith.muli %c3_i32_80, %c16_i32_81 : i32
      %138 = arith.index_cast %137 : i32 to index
      %c0_82 = arith.constant 0 : index
      %139 = vector.load %arg8[%138, %c0_82] : memref<64x512xf32, #tpu.memory_space<vmem>>, vector<16x512xf32>
      %c0_83 = arith.constant 0 : index
      %c0_84 = arith.constant 0 : index
      %140 = vector.load %arg9[%c0_83, %c0_84] : memref<16x128xbf16, #tpu.memory_space<vmem>>, vector<16x128xbf16>
      %c0_85 = arith.constant 0 : index
      %c0_86 = arith.constant 0 : index
      %141 = vector.load %arg3[%c0_85, %c0_86] : memref<128x512xbf16, #tpu.memory_space<vmem>>, vector<128x512xbf16>
      %cst_87 = arith.constant dense<0.000000e+00> : vector<16x512xf32>
      %142 = tpu.matmul %140, %141, %cst_87 {dimension_numbers = #tpu.dot_dimension_numbers<[1], [0], [0], [1], [0, 0, 1, 1], [], []>} : vector<16x128xbf16>, vector<128x512xbf16>, vector<16x512xf32> -> vector<16x512xf32>
      %143 = arith.addf %139, %142 : vector<16x512xf32>
      %144 = vector.extract_strided_slice %143 {offsets = [0, 0], sizes = [16, 384], strides = [1, 1]} : vector<16x512xf32> to vector<16x384xf32>
      %145 = arith.negf %144 : vector<16x384xf32>
      %146 = math.exp %145 : vector<16x384xf32>
      %cst_88 = arith.constant 1.000000e+00 : f32
      %147 = vector.broadcast %cst_88 : f32 to vector<16x384xf32>
      %148 = arith.addf %147, %146 : vector<16x384xf32>
      %149 = arith.divf %147, %148 : vector<16x384xf32>
      %150 = vector.extract_strided_slice %143 {offsets = [0, 384], sizes = [16, 128], strides = [1, 1]} : vector<16x512xf32> to vector<16x128xf32>
      %151 = math.tanh %150 : vector<16x128xf32>
      %152 = vector.extract_strided_slice %149 {offsets = [0, 0], sizes = [16, 128], strides = [1, 1]} : vector<16x384xf32> to vector<16x128xf32>
      %153 = vector.extract_strided_slice %149 {offsets = [0, 128], sizes = [16, 128], strides = [1, 1]} : vector<16x384xf32> to vector<16x128xf32>
      %154 = vector.extract_strided_slice %149 {offsets = [0, 256], sizes = [16, 128], strides = [1, 1]} : vector<16x384xf32> to vector<16x128xf32>
      %c0_89 = arith.constant 0 : index
      %c0_90 = arith.constant 0 : index
      %155 = vector.load %arg10[%c0_89, %c0_90] : memref<16x128xf32, #tpu.memory_space<vmem>>, vector<16x128xf32>
      %156 = arith.mulf %153, %155 : vector<16x128xf32>
      %157 = arith.mulf %152, %151 : vector<16x128xf32>
      %158 = arith.addf %156, %157 : vector<16x128xf32>
      %159 = math.tanh %158 : vector<16x128xf32>
      %160 = arith.mulf %154, %159 : vector<16x128xf32>
      %161 = arith.truncf %160 : vector<16x128xf32> to vector<16x128xbf16>
      %162 = arith.addi %10, %c3_i32_80 : i32
      %c9_i32_91 = arith.constant 9 : i32
      %163 = arith.cmpi slt, %162, %c9_i32_91 : i32
      %c0_92 = arith.constant 0 : index
      %c0_93 = arith.constant 0 : index
      %164 = vector.load %arg10[%c0_92, %c0_93] : memref<16x128xf32, #tpu.memory_space<vmem>>, vector<16x128xf32>
      %165 = arith.select %163, %158, %164 : vector<16x128xf32>
      %c0_94 = arith.constant 0 : index
      %c0_95 = arith.constant 0 : index
      %166 = vector.load %arg10[%c0_94, %c0_95] : memref<16x128xf32, #tpu.memory_space<vmem>>, vector<16x128xf32>
      tpu.vector_store %arg10[%c0_94, %c0_95], %165 {strides = array<i32>} : memref<16x128xf32, #tpu.memory_space<vmem>>, vector<16x128xf32>,
      %c0_96 = arith.constant 0 : index
      %c0_97 = arith.constant 0 : index
      %167 = vector.load %arg9[%c0_96, %c0_97] : memref<16x128xbf16, #tpu.memory_space<vmem>>, vector<16x128xbf16>
      %168 = arith.select %163, %161, %167 : vector<16x128xbf16>
      %c0_98 = arith.constant 0 : index
      %c0_99 = arith.constant 0 : index
      %169 = vector.load %arg9[%c0_98, %c0_99] : memref<16x128xbf16, #tpu.memory_space<vmem>>, vector<16x128xbf16>
      tpu.vector_store %arg9[%c0_98, %c0_99], %168 {strides = array<i32>} : memref<16x128xbf16, #tpu.memory_space<vmem>>, vector<16x128xbf16>,
      %170 = arith.index_cast %137 : i32 to index
      %c0_100 = arith.constant 0 : index
      %171 = vector.load %arg1[%170, %c0_100] : memref<64x128xbf16, #tpu.memory_space<vmem>>, vector<16x128xbf16>
      %c0_101 = arith.constant 0 : index
      %c0_102 = arith.constant 0 : index
      %172 = vector.load %arg2[%c0_101, %c0_102] : memref<128x512xbf16, #tpu.memory_space<vmem>>, vector<128x512xbf16>
      %cst_103 = arith.constant dense<0.000000e+00> : vector<16x512xf32>
      %173 = tpu.matmul %171, %172, %cst_103 {dimension_numbers = #tpu.dot_dimension_numbers<[1], [0], [0], [1], [0, 0, 1, 1], [], []>} : vector<16x128xbf16>, vector<128x512xbf16>, vector<16x512xf32> -> vector<16x512xf32>
      %c0_104 = arith.constant 0 : index
      %c0_105 = arith.constant 0 : index
      %174 = vector.load %arg4[%c0_104, %c0_105] : memref<1x512xf32, #tpu.memory_space<vmem>>, vector<1x512xf32>
      %175 = vector.broadcast %174 : vector<1x512xf32> to vector<16x512xf32>
      %176 = arith.addf %173, %175 : vector<16x512xf32>
      %177 = arith.index_cast %137 : i32 to index
      %c0_106 = arith.constant 0 : index
      %178 = vector.load %arg8[%177, %c0_106] : memref<64x512xf32, #tpu.memory_space<vmem>>, vector<16x512xf32>
      tpu.vector_store %arg8[%177, %c0_106], %176 {strides = array<i32>} : memref<64x512xf32, #tpu.memory_space<vmem>>, vector<16x512xf32>,
      %c4_i32_107 = arith.constant 4 : i32
    } else {
    }
    %c3_i32 = arith.constant 3 : i32
    %6 = arith.cmpi eq, %arg0, %c3_i32 : i32
    %7 = arith.extui %6 : i1 to i32
    %c0_i32_3 = arith.constant 0 : i32
    %8 = arith.cmpi ne, %7, %c0_i32_3 : i32
    scf.if %8 {
      %c0 = arith.constant 0 : index
      %c0_4 = arith.constant 0 : index
      %9 = vector.load %arg9[%c0, %c0_4] : memref<16x128xbf16, #tpu.memory_space<vmem>>, vector<16x128xbf16>
      %c0_5 = arith.constant 0 : index
      %c0_6 = arith.constant 0 : index
      %10 = vector.load %arg5[%c0_5, %c0_6] : memref<128x128xbf16, #tpu.memory_space<vmem>>, vector<128x128xbf16>
      %cst = arith.constant dense<0.000000e+00> : vector<16x128xf32>
      %11 = tpu.matmul %9, %10, %cst {dimension_numbers = #tpu.dot_dimension_numbers<[1], [0], [0], [1], [0, 0, 1, 1], [], []>} : vector<16x128xbf16>, vector<128x128xbf16>, vector<16x128xf32> -> vector<16x128xf32>
      %c0_7 = arith.constant 0 : index
      %c0_8 = arith.constant 0 : index
      %12 = vector.load %arg6[%c0_7, %c0_8] : memref<1x128xf32, #tpu.memory_space<vmem>>, vector<1x128xf32>
      %13 = vector.broadcast %12 : vector<1x128xf32> to vector<16x128xf32>
      %14 = arith.addf %11, %13 : vector<16x128xf32>
      %c0_9 = arith.constant 0 : index
      %c0_10 = arith.constant 0 : index
      %15 = vector.load %arg7[%c0_9, %c0_10] : memref<16x128xf32, #tpu.memory_space<vmem>>, vector<16x128xf32>
      tpu.vector_store %arg7[%c0_9, %c0_10], %14 {strides = array<i32>} : memref<16x128xf32, #tpu.memory_space<vmem>>, vector<16x128xf32>,
    } else {
    }
    return
  }
  func.func @transform_0(%arg0: i32) -> (i32, i32) {
    %c2_i32 = arith.constant 2 : i32
    %0 = arith.minsi %arg0, %c2_i32 : i32
    %c0_i32 = arith.constant 0 : i32
    %c0_i32_0 = arith.constant 0 : i32
    return %0, %c0_i32 : i32, i32
  }
  func.func @transform_1(%arg0: i32) -> (i32, i32) {
    %c0_i32 = arith.constant 0 : i32
    %c0_i32_0 = arith.constant 0 : i32
    %c0_i32_1 = arith.constant 0 : i32
    return %c0_i32, %c0_i32_0 : i32, i32
  }
  func.func @transform_2(%arg0: i32) -> (i32, i32) {
    %c0_i32 = arith.constant 0 : i32
    %c0_i32_0 = arith.constant 0 : i32
    %c0_i32_1 = arith.constant 0 : i32
    return %c0_i32, %c0_i32_0 : i32, i32
  }
  func.func @transform_3(%arg0: i32) -> (i32, i32) {
    %c0_i32 = arith.constant 0 : i32
    %c0_i32_0 = arith.constant 0 : i32
    %c0_i32_1 = arith.constant 0 : i32
    return %c0_i32, %c0_i32_0 : i32, i32
  }
  func.func @transform_4(%arg0: i32) -> (i32, i32) {
    %c0_i32 = arith.constant 0 : i32
    %c0_i32_0 = arith.constant 0 : i32
    %c0_i32_1 = arith.constant 0 : i32
    return %c0_i32, %c0_i32_0 : i32, i32
  }
  func.func @transform_5(%arg0: i32) -> (i32, i32) {
    %c0_i32 = arith.constant 0 : i32
    %c0_i32_0 = arith.constant 0 : i32
    %c0_i32_1 = arith.constant 0 : i32
    return %c0_i32, %c0_i32_0 : i32, i32
  }
  func.func @transform_6(%arg0: i32) -> (i32, i32) {
    %c0_i32 = arith.constant 0 : i32
    %c0_i32_0 = arith.constant 0 : i32
    %c0_i32_1 = arith.constant 0 : i32
    return %c0_i32, %c0_i32_0 : i32, i32
  }
}

</mosaic_0001>

<llo_original>
// kernel: tpu_custom_call.1
$region0: #{tpu_custom_call.1}
  #allocation0 [shape = 'u32[]', space=smem, size = 0x4, offset = 0x4, fixed_abs, tag = 'smem constant byte address 0x4 - core index']
  #allocation1 [shape = 'u32[144,128]{1,0:T(1,128)}', space=vmem, size = 0x12000, scoped, tag = 'internal scratch']
  #allocation2 [shape = 'f32[64,512]{1,0:T(8,128)}', space=vmem, size = 0x20000, scoped, tag = 'scratch operand']
  #allocation3 [shape = 'bf16[16,128]{1,0:T(16,128)(2,1)}', space=vmem, size = 0x1000, scoped, tag = 'scratch operand']
  #allocation4 [shape = 'f32[16,128]{1,0:T(8,128)}', space=vmem, size = 0x2000, scoped, tag = 'scratch operand']
  %s0 = inlined_call_operand.hbm [shape: bf16[192,128], index: 0, kind: input, shape index: {}]
  %s1 = inlined_call_operand.hbm [shape: bf16[128,512], index: 1, kind: input, shape index: {}]
  %s2 = inlined_call_operand.hbm [shape: bf16[128,512], index: 2, kind: input, shape index: {}]
  %s3 = inlined_call_operand.vmem [shape: f32[1,512], index: 3, kind: input, shape index: {}]
  %s4 = inlined_call_operand.hbm [shape: bf16[128,128], index: 4, kind: input, shape index: {}]
  %s5 = inlined_call_operand.vmem [shape: f32[1,128], index: 5, kind: input, shape index: {}]
  %s6 = inlined_call_operand.hbm [shape: f32[16,128], index: 6, kind: output, shape index: {}]
  %s7 = sld [smem:[#allocation0]]
  $region85: #{tpu_custom_call.1} parent=0
    _
  %s9 = ssub.s32 1, %s7
  %s10 = scalar_select 0, %s9, %s7
  $region1: #{tpu_custom_call.1} parent=0
    #allocation5 [shape = 'u8[32768]{0}', space=vmem, size = 0x8000, scoped, tag = 'input window, operand 0']
    #allocation6 [shape = 's32[2]{0}', space=sflag, size = 0x8, scoped, tag = 'scoped memory for tpu_custom_call.1']
    #allocation7 [shape = 's32[2]{0}', space=sflag, size = 0x8, scoped, tag = 'scoped memory for tpu_custom_call.1']
    #allocation8 [shape = 'u8[131072]{0}', space=vmem, size = 0x20000, scoped, tag = 'input window, operand 1, single buffered']
    #allocation9 [shape = 's32[1]{0}', space=sflag, size = 0x4, scoped, tag = 'scoped memory for tpu_custom_call.1']
    #allocation10 [shape = 'u8[131072]{0}', space=vmem, size = 0x20000, scoped, tag = 'input window, operand 2, single buffered']
    #allocation11 [shape = 'u8[32768]{0}', space=vmem, size = 0x8000, scoped, tag = 'input window, operand 4, single buffered']
    #allocation12 [shape = 's32[1]{0}', space=sflag, size = 0x4, scoped, tag = 'scoped memory for tpu_custom_call.1']
    #allocation13 [shape = 'u8[8192]{0}', space=vmem, size = 0x2000, scoped, tag = 'output window, operand 0, single buffered']
    %11 = vsyncpa [#allocation6], 0
    %s12 = scalar_lea.sflag [#allocation6], 1
    %13 = vsyncpa %s12, 0
    %14 = vsyncpa [#allocation9], 0
    %15 = vsyncpa [#allocation12], 0
    %16 = vsyncpa [#allocation7], 0
    loop: start=0, step=1, limit=6
    $region2: #{tpu_custom_call.1} parent=1 // loop_pre_header
      _
    $region3: #{tpu_custom_call.1} parent=1 // loop_header
      %s18 = sphi 0, %s22
      %p19 = scmp.ge.s32.totalorder %s18, 6
      %s32 = sphi 0, %s34
      %s35 = sphi 0, %s32
      %s36 = sphi 0, %s35
      %s52 = sphi 0, %s36
      %s56 = sphi 0, %s56
      %s58 = sphi 0, %s56
      %s59 = sphi 0, %s58
      %s73 = sphi 0, %s59
      %s77 = sphi 0, %s77
      %s79 = sphi 0, %s77
      %s80 = sphi 0, %s79
      %s94 = sphi 0, %s80
      %s98 = sphi 0, %s98
      %s100 = sphi 0, %s98
      %s101 = sphi 0, %s100
      %s115 = sphi 0, %s101
      %s119 = sphi 0, %s119
      %s121 = sphi 0, %s119
      %s122 = sphi 0, %s121
      %s136 = sphi 0, %s122
      %s140 = sphi 0, %s140
      %s142 = sphi 0, %s140
      %s143 = sphi 0, %s142
      %s157 = sphi 0, %s143
      %s161 = sphi 0, %s161
      %s163 = sphi 0, %s161
      %s164 = sphi 0, %s163
      %s178 = sphi 0, %s164
    $region4: #{tpu_custom_call.1} parent=1 // loop_header_branch
      %21 = sbr.rel (%p19) target = $region8
    $region5: #{tpu_custom_call.1} parent=1 // loop_body
      %s23 = ssub.s32 %s18, 1
      %s24 = ssub.s32 %s18, 2
      %s25 = sadd.s32 %s18, 1
      %p26 = scmp.lt.s32.totalorder %s18, 2
      %s27 = scalar_select %p26, %s18, 2
      %p28 = scmp.lt.s32.totalorder %s25, 2
      %s29 = scalar_select %p28, %s25, 2
      %s30 = ssub.s32 %s27, %s29
      %p31 = scmp.eq.s32.totalorder %s30, 0
      %s33 = sadd.s32 %s32, 1
      %s34 = scalar_select %p31, %s32, %s33
      %p37 = pneg %p31
      %p38 = scmp.eq.s32.totalorder %s18, 3
      %p39 = por %p37, %p38
      %p40 = scmp.ne.s32.totalorder %s32, %s35
      %p41 = scmp.eq.s32.totalorder %s18, 0
      %p42 = por %p40, %p41
      %p43 = scmp.ne.s32.totalorder %s32, %s35
      %p44 = scmp.eq.s32.totalorder %s23, 3
      %p45 = por %p43, %p44
      %p46 = scmp.ne.s32.totalorder %s35, %s36
      %p47 = scmp.eq.s32.totalorder %s23, 0
      %p48 = por %p46, %p47
      %p49 = scmp.ne.s32.totalorder %s35, %s36
      %p50 = scmp.eq.s32.totalorder %s24, 3
      %p51 = por %p49, %p50
      %p53 = scmp.ne.s32.totalorder %s36, %s52
      %p54 = scmp.eq.s32.totalorder %s24, 0
      %p55 = por %p53, %p54
      %s57 = sadd.s32 %s56, 1
      %p60 = scmp.eq.s32.totalorder %s18, 3
      %p61 = scmp.ne.s32.totalorder %s56, %s58
      %p62 = scmp.eq.s32.totalorder %s18, 0
      %p63 = por %p61, %p62
      %p64 = scmp.ne.s32.totalorder %s56, %s58
      %p65 = scmp.eq.s32.totalorder %s23, 3
      %p66 = por %p64, %p65
      %p67 = scmp.ne.s32.totalorder %s58, %s59
      %p68 = scmp.eq.s32.totalorder %s23, 0
      %p69 = por %p67, %p68
      %p70 = scmp.ne.s32.totalorder %s58, %s59
      %p71 = scmp.eq.s32.totalorder %s24, 3
      %p72 = por %p70, %p71
      %p74 = scmp.ne.s32.totalorder %s59, %s73
      %p75 = scmp.eq.s32.totalorder %s24, 0
      %p76 = por %p74, %p75
      %s78 = sadd.s32 %s77, 1
      %p81 = scmp.eq.s32.totalorder %s18, 3
      %p82 = scmp.ne.s32.totalorder %s77, %s79
      %p83 = scmp.eq.s32.totalorder %s18, 0
      %p84 = por %p82, %p83
      %p85 = scmp.ne.s32.totalorder %s77, %s79
      %p86 = scmp.eq.s32.totalorder %s23, 3
      %p87 = por %p85, %p86
      %p88 = scmp.ne.s32.totalorder %s79, %s80
      %p89 = scmp.eq.s32.totalorder %s23, 0
      %p90 = por %p88, %p89
      %p91 = scmp.ne.s32.totalorder %s79, %s80
      %p92 = scmp.eq.s32.totalorder %s24, 3
      %p93 = por %p91, %p92
      %p95 = scmp.ne.s32.totalorder %s80, %s94
      %p96 = scmp.eq.s32.totalorder %s24, 0
      %p97 = por %p95, %p96
      %s99 = sadd.s32 %s98, 1
      %p102 = scmp.eq.s32.totalorder %s18, 3
      %p103 = scmp.ne.s32.totalorder %s98, %s100
      %p104 = scmp.eq.s32.totalorder %s18, 0
      %p105 = por %p103, %p104
      %p106 = scmp.ne.s32.totalorder %s98, %s100
      %p107 = scmp.eq.s32.totalorder %s23, 3
      %p108 = por %p106, %p107
      %p109 = scmp.ne.s32.totalorder %s100, %s101
      %p110 = scmp.eq.s32.totalorder %s23, 0
      %p111 = por %p109, %p110
      %p112 = scmp.ne.s32.totalorder %s100, %s101
      %p113 = scmp.eq.s32.totalorder %s24, 3
      %p114 = por %p112, %p113
      %p116 = scmp.ne.s32.totalorder %s101, %s115
      %p117 = scmp.eq.s32.totalorder %s24, 0
      %p118 = por %p116, %p117
      %s120 = sadd.s32 %s119, 1
      %p123 = scmp.eq.s32.totalorder %s18, 3
      %p124 = scmp.ne.s32.totalorder %s119, %s121
      %p125 = scmp.eq.s32.totalorder %s18, 0
      %p126 = por %p124, %p125
      %p127 = scmp.ne.s32.totalorder %s119, %s121
      %p128 = scmp.eq.s32.totalorder %s23, 3
      %p129 = por %p127, %p128
      %p130 = scmp.ne.s32.totalorder %s121, %s122
      %p131 = scmp.eq.s32.totalorder %s23, 0
      %p132 = por %p130, %p131
      %p133 = scmp.ne.s32.totalorder %s121, %s122
      %p134 = scmp.eq.s32.totalorder %s24, 3
      %p135 = por %p133, %p134
      %p137 = scmp.ne.s32.totalorder %s122, %s136
      %p138 = scmp.eq.s32.totalorder %s24, 0
      %p139 = por %p137, %p138
      %s141 = sadd.s32 %s140, 1
      %p144 = scmp.eq.s32.totalorder %s18, 3
      %p145 = scmp.ne.s32.totalorder %s140, %s142
      %p146 = scmp.eq.s32.totalorder %s18, 0
      %p147 = por %p145, %p146
      %p148 = scmp.ne.s32.totalorder %s140, %s142
      %p149 = scmp.eq.s32.totalorder %s23, 3
      %p150 = por %p148, %p149
      %p151 = scmp.ne.s32.totalorder %s142, %s143
      %p152 = scmp.eq.s32.totalorder %s23, 0
      %p153 = por %p151, %p152
      %p154 = scmp.ne.s32.totalorder %s142, %s143
      %p155 = scmp.eq.s32.totalorder %s24, 3
      %p156 = por %p154, %p155
      %p158 = scmp.ne.s32.totalorder %s143, %s157
      %p159 = scmp.eq.s32.totalorder %s24, 0
      %p160 = por %p158, %p159
      %s162 = sadd.s32 %s161, 1
      %p165 = scmp.eq.s32.totalorder %s18, 3
      %p166 = scmp.ne.s32.totalorder %s161, %s163
      %p167 = scmp.eq.s32.totalorder %s18, 0
      %p168 = por %p166, %p167
      %p169 = scmp.ne.s32.totalorder %s161, %s163
      %p170 = scmp.eq.s32.totalorder %s23, 3
      %p171 = por %p169, %p170
      %p172 = scmp.ne.s32.totalorder %s163, %s164
      %p173 = scmp.eq.s32.totalorder %s23, 0
      %p174 = por %p172, %p173
      %p175 = scmp.ne.s32.totalorder %s163, %s164
      %p176 = scmp.eq.s32.totalorder %s24, 3
      %p177 = por %p175, %p176
      %p179 = scmp.ne.s32.totalorder %s164, %s178
      %p180 = scmp.eq.s32.totalorder %s24, 0
      %p181 = por %p179, %p180
      %p182 = scmp.le.s32.totalorder 1, %s18
      %p183 = scmp.lt.s32.totalorder %s18, 5
      %p184 = pnand %p182, %p183
      %p185 = pneg %p184
      // Predicated region
      $region9: #{tpu_custom_call.1} parent=5 // pred_check
        _
      $region10: #{tpu_custom_call.1} parent=5 // pred_check_branch
        %187 = sbr.rel (%p184) target = $region12
      $region11: #{tpu_custom_call.1} parent=5 // pred_region
        %s188 = ssub.s32 %s18, 1
        // Predicated region
        $region13: #{tpu_custom_call.1} parent=11 // pred_check
          %p189 = pneg %p69
        $region14: #{tpu_custom_call.1} parent=11 // pred_check_branch
          %191 = sbr.rel (%p189) target = $region16
        $region15: #{tpu_custom_call.1} parent=11 // pred_region
          %s193 = ssub.s32 4096, 4096
          %194 = vsyncadd [#allocation9], %s193
          %s195 = sshll.u32 [#allocation8], 4
          %s196 = int_to_ptr.vmem [resolvable:$true] %s195
          %201 = dma.hbm_to_vmem [thread:$0]  %s1, 4096, %s196, [#allocation9], 256, 256, 16
        $region16: #{tpu_custom_call.1} parent=11 // pred_fallthru
          _
        // Predicated region
        $region17: #{tpu_custom_call.1} parent=11 // pred_check
          %p202 = pneg %p90
        $region18: #{tpu_custom_call.1} parent=11 // pred_check_branch
          %204 = sbr.rel (%p202) target = $region20
        $region19: #{tpu_custom_call.1} parent=11 // pred_region
          %s206 = ssub.s32 4096, 4096
          %207 = vsyncadd [#allocation9], %s206
          %s208 = sshll.u32 [#allocation10], 4
          %s209 = int_to_ptr.vmem [resolvable:$true] %s208
          %214 = dma.hbm_to_vmem [thread:$0]  %s2, 4096, %s209, [#allocation9], 256, 256, 16
        $region20: #{tpu_custom_call.1} parent=11 // pred_fallthru
          _
        // Predicated region
        $region21: #{tpu_custom_call.1} parent=11 // pred_check
          %p215 = pneg %p111
        $region22: #{tpu_custom_call.1} parent=11 // pred_check_branch
          %217 = sbr.rel (%p215) target = $region24
        $region23: #{tpu_custom_call.1} parent=11 // pred_region
          _
        $region24: #{tpu_custom_call.1} parent=11 // pred_fallthru
          _
        // Predicated region
        $region25: #{tpu_custom_call.1} parent=11 // pred_check
          %p218 = pneg %p132
        $region26: #{tpu_custom_call.1} parent=11 // pred_check_branch
          %220 = sbr.rel (%p218) target = $region28
        $region27: #{tpu_custom_call.1} parent=11 // pred_region
          %s222 = ssub.s32 1024, 1024
          %223 = vsyncadd [#allocation12], %s222
          %s224 = sshll.u32 [#allocation11], 4
          %s225 = int_to_ptr.vmem [resolvable:$true] %s224
          %230 = dma.hbm_to_vmem [thread:$0]  %s4, 1024, %s225, [#allocation12], 64, 64, 4
        $region28: #{tpu_custom_call.1} parent=11 // pred_fallthru
          _
        // Predicated region
        $region29: #{tpu_custom_call.1} parent=11 // pred_check
          %p231 = pneg %p153
        $region30: #{tpu_custom_call.1} parent=11 // pred_check_branch
          %233 = sbr.rel (%p231) target = $region32
        $region31: #{tpu_custom_call.1} parent=11 // pred_region
          _
        $region32: #{tpu_custom_call.1} parent=11 // pred_fallthru
          _
      $region12: #{tpu_custom_call.1} parent=5 // pred_fallthru
        _
      %p234 = scmp.lt.s32.totalorder %s18, 4
      // Predicated region
      $region33: #{tpu_custom_call.1} parent=5 // pred_check
        %p235 = pneg %p234
      $region34: #{tpu_custom_call.1} parent=5 // pred_check_branch
        %237 = sbr.rel (%p235) target = $region36
      $region35: #{tpu_custom_call.1} parent=5 // pred_region
        // Predicated region
        $region37: #{tpu_custom_call.1} parent=35 // pred_check
          %p238 = pneg %p42
        $region38: #{tpu_custom_call.1} parent=35 // pred_check_branch
          %240 = sbr.rel (%p238) target = $region40
        $region39: #{tpu_custom_call.1} parent=35 // pred_region
          %s241 = sand.u32 %s32, 1
          %s242 = scalar_lea.sflag [#allocation6], %s241
          %s243 = sand.u32 %s32, 1
          %s244 = smul.addr %s243, 32
          %s245 = scalar_lea.vmem [#allocation5], %s244
          %p246 = scmp.lt.s32.totalorder %s18, 2
          %s247 = scalar_select %p246, %s18, 2
          %s248 = smul.u32 8, %s247
          %s250 = ssub.s32 512, 512
          %251 = vsyncadd %s242, %s250
          %s252 = smul.addr %s248, 64
          %s253 = scalar_lea.hbm %s0, %s252
          %s254 = sshll.u32 %s245, 4
          %s255 = int_to_ptr.vmem [resolvable:$true] %s254
          %260 = dma.hbm_to_vmem [thread:$0]  %s253, 512, %s255, %s242, 64, 64, 4
        $region40: #{tpu_custom_call.1} parent=35 // pred_fallthru
          _
      $region36: #{tpu_custom_call.1} parent=5 // pred_fallthru
        _
      %p261 = scmp.le.s32.totalorder 1, %s18
      %p262 = scmp.lt.s32.totalorder %s18, 5
      %p263 = pnand %p261, %p262
      %p264 = pneg %p263
      // Predicated region
      $region41: #{tpu_custom_call.1} parent=5 // pred_check
        _
      $region42: #{tpu_custom_call.1} parent=5 // pred_check_branch
        %266 = sbr.rel (%p263) target = $region44
      $region43: #{tpu_custom_call.1} parent=5 // pred_region
        %s267 = ssub.s32 %s18, 1
        %s268 = sand.u32 %s35, 1
        %s269 = scalar_lea.sflag [#allocation6], %s268
        %s270 = sand.u32 %s35, 1
        %s271 = smul.addr %s270, 32
        %s272 = scalar_lea.vmem [#allocation5], %s271
        // Predicated region
        $region45: #{tpu_custom_call.1} parent=43 // pred_check
          %p273 = pneg %p48
        $region46: #{tpu_custom_call.1} parent=43 // pred_check_branch
          %275 = sbr.rel (%p273) target = $region48
        $region47: #{tpu_custom_call.1} parent=43 // pred_region
          %276 = dma.done %s269, 512
        $region48: #{tpu_custom_call.1} parent=43 // pred_fallthru
          _
        // Predicated region
        $region49: #{tpu_custom_call.1} parent=43 // pred_check
          %p277 = pneg %p69
        $region50: #{tpu_custom_call.1} parent=43 // pred_check_branch
          %279 = sbr.rel (%p277) target = $region52
        $region51: #{tpu_custom_call.1} parent=43 // pred_region
          %280 = dma.done [#allocation9], 4096
        $region52: #{tpu_custom_call.1} parent=43 // pred_fallthru
          _
        // Predicated region
        $region53: #{tpu_custom_call.1} parent=43 // pred_check
          %p281 = pneg %p90
        $region54: #{tpu_custom_call.1} parent=43 // pred_check_branch
          %283 = sbr.rel (%p281) target = $region56
        $region55: #{tpu_custom_call.1} parent=43 // pred_region
          %284 = dma.done [#allocation9], 4096
        $region56: #{tpu_custom_call.1} parent=43 // pred_fallthru
          _
        // Predicated region
        $region57: #{tpu_custom_call.1} parent=43 // pred_check
          %p285 = pneg %p132
        $region58: #{tpu_custom_call.1} parent=43 // pred_check_branch
          %287 = sbr.rel (%p285) target = $region60
        $region59: #{tpu_custom_call.1} parent=43 // pred_region
          %288 = dma.done [#allocation12], 1024
        $region60: #{tpu_custom_call.1} parent=43 // pred_fallthru
          _
        %s289 = sand.u32 %s35, 1
        %s290 = scalar_lea.sflag [#allocation6], %s289
        %s291 = sand.u32 %s35, 1
        %s292 = smul.addr %s291, 32
        %s293 = scalar_lea.vmem [#allocation5], %s292
        %p294 = pneg %p48
        %p295 = pneg %p45
        %p296 = pneg %p69
        %p297 = pneg %p66
        %p298 = pneg %p90
        %p299 = pneg %p87
        %p300 = pneg %p111
        %p301 = pneg %p108
        %p302 = pneg %p132
        %p303 = pneg %p129
        %p304 = pneg %p153
        %p305 = pneg %p150
        %p306 = pneg %p174
        %p307 = pneg %p171
        %p308 = scmp.lt.s32.totalorder %s23, 2
        %s309 = scalar_select %p308, %s23, 2
        %s310 = smul.u32 8, %s309
        %p312 = scmp.eq.s32.totalorder %s23, 0
        // Predicated region
        $region61: #{tpu_custom_call.1} parent=43 // pred_check
          %p313 = pneg %p312
        $region62: #{tpu_custom_call.1} parent=43 // pred_check_branch
          %315 = sbr.rel (%p313) target = $region64
        $region63: #{tpu_custom_call.1} parent=43 // pred_region
          %316 = vst [vmem:[#allocation3] sm:$0xff] 0
          %317 = vst [vmem:[#allocation4] sm:$0xff] 0.0
          %318 = vst [vmem:[#allocation4 + $0x8] sm:$0xff] 0.0
          %v319 = vld [vmem:[%s272] sm:$0xf]
          %v320 = vld [vmem:[%s272 + $0x4] sm:$0xf]
          %v321 = vld [vmem:[%s272 + $0x8] sm:$0xf]
          %v322 = vld [vmem:[%s272 + $0xc] sm:$0xf]
          %v323 = vld [vmem:[%s272 + $0x10] sm:$0xf]
          %v324 = vld [vmem:[%s272 + $0x14] sm:$0xf]
          %v325 = vld [vmem:[%s272 + $0x18] sm:$0xf]
          %v326 = vld [vmem:[%s272 + $0x1c] sm:$0xf]
          %v327 = vld [vmem:[#allocation8] sm:$0xff]
          %v328 = vld [vmem:[#allocation8 + $0x8] sm:$0xff]
          %v329 = vld [vmem:[#allocation8 + $0x10] sm:$0xff]
          %v330 = vld [vmem:[#allocation8 + $0x18] sm:$0xff]
          %v331 = vld [vmem:[#allocation8 + $0x20] sm:$0xff]
          %v332 = vld [vmem:[#allocation8 + $0x28] sm:$0xff]
          %v333 = vld [vmem:[#allocation8 + $0x30] sm:$0xff]
          %v334 = vld [vmem:[#allocation8 + $0x38] sm:$0xff]
          %v335 = vld [vmem:[#allocation8 + $0x40] sm:$0xff]
          %v336 = vld [vmem:[#allocation8 + $0x48] sm:$0xff]
          %v337 = vld [vmem:[#allocation8 + $0x50] sm:$0xff]
          %v338 = vld [vmem:[#allocation8 + $0x58] sm:$0xff]
          %v339 = vld [vmem:[#allocation8 + $0x60] sm:$0xff]
          %v340 = vld [vmem:[#allocation8 + $0x68] sm:$0xff]
          %v341 = vld [vmem:[#allocation8 + $0x70] sm:$0xff]
          %v342 = vld [vmem:[#allocation8 + $0x78] sm:$0xff]
          %v343 = vld [vmem:[#allocation8 + $0x80] sm:$0xff]
          %v344 = vld [vmem:[#allocation8 + $0x88] sm:$0xff]
          %v345 = vld [vmem:[#allocation8 + $0x90] sm:$0xff]
          %v346 = vld [vmem:[#allocation8 + $0x98] sm:$0xff]
          %v347 = vld [vmem:[#allocation8 + $0xa0] sm:$0xff]
          %v348 = vld [vmem:[#allocation8 + $0xa8] sm:$0xff]
          %v349 = vld [vmem:[#allocation8 + $0xb0] sm:$0xff]
          %v350 = vld [vmem:[#allocation8 + $0xb8] sm:$0xff]
          %v351 = vld [vmem:[#allocation8 + $0xc0] sm:$0xff]
          %v352 = vld [vmem:[#allocation8 + $0xc8] sm:$0xff]
          %v353 = vld [vmem:[#allocation8 + $0xd0] sm:$0xff]
          %v354 = vld [vmem:[#allocation8 + $0xd8] sm:$0xff]
          %v355 = vld [vmem:[#allocation8 + $0xe0] sm:$0xff]
          %v356 = vld [vmem:[#allocation8 + $0xe8] sm:$0xff]
          %v357 = vld [vmem:[#allocation8 + $0xf0] sm:$0xff]
          %v358 = vld [vmem:[#allocation8 + $0xf8] sm:$0xff]
          %v359 = vld [vmem:[%s3] sm:$0xf]
          %v361 = vlaneseq
          %v362 = vshrl.u32 %v361, 7
          %v363 = vsub.s32 0, %v362
          %v364 = vrot.slane %v359, %v363
          %v365 = vlaneseq
          %v366 = vshrl.u32 %v365, 7
          %v367 = vsub.s32 1, %v366
          %v368 = vrot.slane %v359, %v367
          %v369 = vlaneseq
          %v370 = vshrl.u32 %v369, 7
          %v371 = vsub.s32 2, %v370
          %v372 = vrot.slane %v359, %v371
          %v373 = vlaneseq
          %v374 = vshrl.u32 %v373, 7
          %v375 = vsub.s32 3, %v374
          %v376 = vrot.slane %v359, %v375
          %v389 = vunpack.c.l.b16 %v319
          %v390 = vunpack.c.l.b16 %v320
          %v391 = vunpack.c.l.b16 %v321
          %v392 = vunpack.c.l.b16 %v322
          %v393 = vunpack.c.l.b16 %v323
          %v394 = vunpack.c.l.b16 %v324
          %v395 = vunpack.c.l.b16 %v325
          %v396 = vunpack.c.l.b16 %v326
          %v397 = vpack.c.b16 %v390, %v389
          %v398 = vpack.c.b16 %v392, %v391
          %v399 = vpack.c.b16 %v394, %v393
          %v400 = vpack.c.b16 %v396, %v395
          %v437 = vunpack.c.l.b16 %v327
          %v438 = vunpack.c.h.b16 %v327
          %v439 = vunpack.c.l.b16 %v328
          %v440 = vunpack.c.h.b16 %v328
          %v441 = vunpack.c.l.b16 %v329
          %v442 = vunpack.c.h.b16 %v329
          %v443 = vunpack.c.l.b16 %v330
          %v444 = vunpack.c.h.b16 %v330
          %v445 = vunpack.c.l.b16 %v331
          %v446 = vunpack.c.h.b16 %v331
          %v447 = vunpack.c.l.b16 %v332
          %v448 = vunpack.c.h.b16 %v332
          %v449 = vunpack.c.l.b16 %v333
          %v450 = vunpack.c.h.b16 %v333
          %v451 = vunpack.c.l.b16 %v334
          %v452 = vunpack.c.h.b16 %v334
          %v453 = vunpack.c.l.b16 %v335
          %v454 = vunpack.c.h.b16 %v335
          %v455 = vunpack.c.l.b16 %v336
          %v456 = vunpack.c.h.b16 %v336
          %v457 = vunpack.c.l.b16 %v337
          %v458 = vunpack.c.h.b16 %v337
          %v459 = vunpack.c.l.b16 %v338
          %v460 = vunpack.c.h.b16 %v338
          %v461 = vunpack.c.l.b16 %v339
          %v462 = vunpack.c.h.b16 %v339
          %v463 = vunpack.c.l.b16 %v340
          %v464 = vunpack.c.h.b16 %v340
          %v465 = vunpack.c.l.b16 %v341
          %v466 = vunpack.c.h.b16 %v341
          %v467 = vunpack.c.l.b16 %v342
          %v468 = vunpack.c.h.b16 %v342
          %v469 = vunpack.c.l.b16 %v343
          %v470 = vunpack.c.h.b16 %v343
          %v471 = vunpack.c.l.b16 %v344
          %v472 = vunpack.c.h.b16 %v344
          %v473 = vunpack.c.l.b16 %v345
          %v474 = vunpack.c.h.b16 %v345
          %v475 = vunpack.c.l.b16 %v346
          %v476 = vunpack.c.h.b16 %v346
          %v477 = vunpack.c.l.b16 %v347
          %v478 = vunpack.c.h.b16 %v347
          %v479 = vunpack.c.l.b16 %v348
          %v480 = vunpack.c.h.b16 %v348
          %v481 = vunpack.c.l.b16 %v349
          %v482 = vunpack.c.h.b16 %v349
          %v483 = vunpack.c.l.b16 %v350
          %v484 = vunpack.c.h.b16 %v350
          %v485 = vunpack.c.l.b16 %v351
          %v486 = vunpack.c.h.b16 %v351
          %v487 = vunpack.c.l.b16 %v352
          %v488 = vunpack.c.h.b16 %v352
          %v489 = vunpack.c.l.b16 %v353
          %v490 = vunpack.c.h.b16 %v353
          %v491 = vunpack.c.l.b16 %v354
          %v492 = vunpack.c.h.b16 %v354
          %v493 = vunpack.c.l.b16 %v355
          %v494 = vunpack.c.h.b16 %v355
          %v495 = vunpack.c.l.b16 %v356
          %v496 = vunpack.c.h.b16 %v356
          %v497 = vunpack.c.l.b16 %v357
          %v498 = vunpack.c.h.b16 %v357
          %v499 = vunpack.c.l.b16 %v358
          %v500 = vunpack.c.h.b16 %v358
          %v501 = vpack.c.b16 %v441, %v437
          %v502 = vpack.c.b16 %v442, %v438
          %v503 = vpack.c.b16 %v443, %v439
          %v504 = vpack.c.b16 %v444, %v440
          %v505 = vpack.c.b16 %v449, %v445
          %v506 = vpack.c.b16 %v450, %v446
          %v507 = vpack.c.b16 %v451, %v447
          %v508 = vpack.c.b16 %v452, %v448
          %v509 = vpack.c.b16 %v457, %v453
          %v510 = vpack.c.b16 %v458, %v454
          %v511 = vpack.c.b16 %v459, %v455
          %v512 = vpack.c.b16 %v460, %v456
          %v513 = vpack.c.b16 %v465, %v461
          %v514 = vpack.c.b16 %v466, %v462
          %v515 = vpack.c.b16 %v467, %v463
          %v516 = vpack.c.b16 %v468, %v464
          %v517 = vpack.c.b16 %v473, %v469
          %v518 = vpack.c.b16 %v474, %v470
          %v519 = vpack.c.b16 %v475, %v471
          %v520 = vpack.c.b16 %v476, %v472
          %v521 = vpack.c.b16 %v481, %v477
          %v522 = vpack.c.b16 %v482, %v478
          %v523 = vpack.c.b16 %v483, %v479
          %v524 = vpack.c.b16 %v484, %v480
          %v525 = vpack.c.b16 %v489, %v485
          %v526 = vpack.c.b16 %v490, %v486
          %v527 = vpack.c.b16 %v491, %v487
          %v528 = vpack.c.b16 %v492, %v488
          %v529 = vpack.c.b16 %v497, %v493
          %v530 = vpack.c.b16 %v498, %v494
          %v531 = vpack.c.b16 %v499, %v495
          %v532 = vpack.c.b16 %v500, %v496
          %565 = vmatprep.subr.bf16.mxu0 %v502
          %566 = vmatpush1.bf16.msra.mxu0 %v501
          %567 = vmatprep.subr.bf16.mxu0 %v506
          %568 = vmatpush1.bf16.msra.mxu0 %v505
          %569 = vmatprep.subr.bf16.mxu0 %v510
          %570 = vmatpush1.bf16.msra.mxu0 %v509
          %571 = vmatprep.subr.bf16.mxu0 %v514
          %572 = vmatpush1.bf16.msra.mxu0 %v513
          %573 = vmatprep.subr.bf16.mxu0 %v518
          %574 = vmatpush1.bf16.msra.mxu0 %v517
          %575 = vmatprep.subr.bf16.mxu0 %v522
          %576 = vmatpush1.bf16.msra.mxu0 %v521
          %577 = vmatprep.subr.bf16.mxu0 %v526
          %578 = vmatpush1.bf16.msra.mxu0 %v525
          %579 = vmatprep.subr.bf16.mxu0 %v530
          %580 = vmatpush1.bf16.msra.mxu0 %v529
          %581 = vmatprep.subr.bf16.mxu0 0
          %582 = vmatpush1.bf16.msra.mxu0 0
          %583 = vmatprep.subr.bf16.mxu0 0
          %584 = vmatpush1.bf16.msra.mxu0 0
          %585 = vmatprep.subr.bf16.mxu0 0
          %586 = vmatpush1.bf16.msra.mxu0 0
          %587 = vmatprep.subr.bf16.mxu0 0
          %588 = vmatpush1.bf16.msra.mxu0 0
          %589 = vmatprep.subr.bf16.mxu0 0
          %590 = vmatpush1.bf16.msra.mxu0 0
          %591 = vmatprep.subr.bf16.mxu0 0
          %592 = vmatpush1.bf16.msra.mxu0 0
          %593 = vmatprep.subr.bf16.mxu0 0
          %594 = vmatpush1.bf16.msra.mxu0 0
          %595 = vmatprep.subr.bf16.mxu0 0
          %596 = vmatpush1.bf16.msra.mxu0 0
          %597 = vmatprep.mubr.bf16.mxu0 0
          %598 = vmatmul.mubr.bf16.gmra.mrb[0].mxu0 %v397
          %v599 = vpop.f32.mrb[0].mxu0
          %v600 = vadd.f32 %v364, %v599
          %v601 = vpop.f32.mrb[0].mxu0
          %v602 = vadd.f32 %v368, %v601
          %v603 = vpop.f32.mrb[0].mxu0
          %v604 = vadd.f32 %v364, %v603
          %v605 = vpop.f32.mrb[0].mxu0
          %v606 = vadd.f32 %v368, %v605
          %607 = vmatprep.mubr.bf16.mxu0 0
          %608 = vmatmul.mubr.bf16.gmra.mrb[0].mxu0 %v398
          %v609 = vpop.f32.mrb[0].mxu0
          %v610 = vadd.f32 %v364, %v609
          %v611 = vpop.f32.mrb[0].mxu0
          %v612 = vadd.f32 %v368, %v611
          %v613 = vpop.f32.mrb[0].mxu0
          %v614 = vadd.f32 %v364, %v613
          %v615 = vpop.f32.mrb[0].mxu0
          %v616 = vadd.f32 %v368, %v615
          %617 = vmatprep.mubr.bf16.mxu0 0
          %618 = vmatmul.mubr.bf16.gmra.mrb[0].mxu0 %v399
          %v619 = vpop.f32.mrb[0].mxu0
          %v620 = vadd.f32 %v364, %v619
          %v621 = vpop.f32.mrb[0].mxu0
          %v622 = vadd.f32 %v368, %v621
          %v623 = vpop.f32.mrb[0].mxu0
          %v624 = vadd.f32 %v364, %v623
          %v625 = vpop.f32.mrb[0].mxu0
          %v626 = vadd.f32 %v368, %v625
          %627 = vmatprep.mubr.bf16.mxu0 0
          %628 = vmatmul.mubr.bf16.gmra.mrb[0].mxu0 %v400
          %v629 = vpop.f32.mrb[0].mxu0
          %v630 = vadd.f32 %v364, %v629
          %v631 = vpop.f32.mrb[0].mxu0
          %v632 = vadd.f32 %v368, %v631
          %v633 = vpop.f32.mrb[0].mxu0
          %v634 = vadd.f32 %v364, %v633
          %v635 = vpop.f32.mrb[0].mxu0
          %v636 = vadd.f32 %v368, %v635
          %637 = vdwg.mxu0
          %638 = vmatprep.subr.bf16.mxu0 %v504
          %639 = vmatpush1.bf16.msra.mxu0 %v503
          %640 = vmatprep.subr.bf16.mxu0 %v508
          %641 = vmatpush1.bf16.msra.mxu0 %v507
          %642 = vmatprep.subr.bf16.mxu0 %v512
          %643 = vmatpush1.bf16.msra.mxu0 %v511
          %644 = vmatprep.subr.bf16.mxu0 %v516
          %645 = vmatpush1.bf16.msra.mxu0 %v515
          %646 = vmatprep.subr.bf16.mxu0 %v520
          %647 = vmatpush1.bf16.msra.mxu0 %v519
          %648 = vmatprep.subr.bf16.mxu0 %v524
          %649 = vmatpush1.bf16.msra.mxu0 %v523
          %650 = vmatprep.subr.bf16.mxu0 %v528
          %651 = vmatpush1.bf16.msra.mxu0 %v527
          %652 = vmatprep.subr.bf16.mxu0 %v532
          %653 = vmatpush1.bf16.msra.mxu0 %v531
          %654 = vmatprep.subr.bf16.mxu0 0
          %655 = vmatpush1.bf16.msra.mxu0 0
          %656 = vmatprep.subr.bf16.mxu0 0
          %657 = vmatpush1.bf16.msra.mxu0 0
          %658 = vmatprep.subr.bf16.mxu0 0
          %659 = vmatpush1.bf16.msra.mxu0 0
          %660 = vmatprep.subr.bf16.mxu0 0
          %661 = vmatpush1.bf16.msra.mxu0 0
          %662 = vmatprep.subr.bf16.mxu0 0
          %663 = vmatpush1.bf16.msra.mxu0 0
          %664 = vmatprep.subr.bf16.mxu0 0
          %665 = vmatpush1.bf16.msra.mxu0 0
          %666 = vmatprep.subr.bf16.mxu0 0
          %667 = vmatpush1.bf16.msra.mxu0 0
          %668 = vmatprep.subr.bf16.mxu0 0
          %669 = vmatpush1.bf16.msra.mxu0 0
          %670 = vmatprep.mubr.bf16.mxu0 0
          %671 = vmatmul.mubr.bf16.gmra.mrb[0].mxu0 %v397
          %v672 = vpop.f32.mrb[0].mxu0
          %v673 = vadd.f32 %v372, %v672
          %v674 = vpop.f32.mrb[0].mxu0
          %v675 = vadd.f32 %v376, %v674
          %v676 = vpop.f32.mrb[0].mxu0
          %v677 = vadd.f32 %v372, %v676
          %v678 = vpop.f32.mrb[0].mxu0
          %v679 = vadd.f32 %v376, %v678
          %680 = vmatprep.mubr.bf16.mxu0 0
          %681 = vmatmul.mubr.bf16.gmra.mrb[0].mxu0 %v398
          %v682 = vpop.f32.mrb[0].mxu0
          %v683 = vadd.f32 %v372, %v682
          %v684 = vpop.f32.mrb[0].mxu0
          %v685 = vadd.f32 %v376, %v684
          %v686 = vpop.f32.mrb[0].mxu0
          %v687 = vadd.f32 %v372, %v686
          %v688 = vpop.f32.mrb[0].mxu0
          %v689 = vadd.f32 %v376, %v688
          %690 = vmatprep.mubr.bf16.mxu0 0
          %691 = vmatmul.mubr.bf16.gmra.mrb[0].mxu0 %v399
          %v692 = vpop.f32.mrb[0].mxu0
          %v693 = vadd.f32 %v372, %v692
          %v694 = vpop.f32.mrb[0].mxu0
          %v695 = vadd.f32 %v376, %v694
          %v696 = vpop.f32.mrb[0].mxu0
          %v697 = vadd.f32 %v372, %v696
          %v698 = vpop.f32.mrb[0].mxu0
          %v699 = vadd.f32 %v376, %v698
          %700 = vmatprep.mubr.bf16.mxu0 0
          %701 = vmatmul.mubr.bf16.gmra.mrb[0].mxu0 %v400
          %v702 = vpop.f32.mrb[0].mxu0
          %v703 = vadd.f32 %v372, %v702
          %v704 = vpop.f32.mrb[0].mxu0
          %v705 = vadd.f32 %v376, %v704
          %v706 = vpop.f32.mrb[0].mxu0
          %v707 = vadd.f32 %v372, %v706
          %v708 = vpop.f32.mrb[0].mxu0
          %v709 = vadd.f32 %v376, %v708
          %710 = vdwg.mxu0
          %711 = vst [vmem:[#allocation2] sm:$0xff] %v600
          %712 = vst [vmem:[#allocation2 + $0x8] sm:$0xff] %v602
          %713 = vst [vmem:[#allocation2 + $0x10] sm:$0xff] %v673
          %714 = vst [vmem:[#allocation2 + $0x18] sm:$0xff] %v675
          %715 = vst [vmem:[#allocation2 + $0x20] sm:$0xff] %v604
          %716 = vst [vmem:[#allocation2 + $0x28] sm:$0xff] %v606
          %717 = vst [vmem:[#allocation2 + $0x30] sm:$0xff] %v677
          %718 = vst [vmem:[#allocation2 + $0x38] sm:$0xff] %v679
          %719 = vst [vmem:[#allocation2 + $0x40] sm:$0xff] %v610
          %720 = vst [vmem:[#allocation2 + $0x48] sm:$0xff] %v612
          %721 = vst [vmem:[#allocation2 + $0x50] sm:$0xff] %v683
          %722 = vst [vmem:[#allocation2 + $0x58] sm:$0xff] %v685
          %723 = vst [vmem:[#allocation2 + $0x60] sm:$0xff] %v614
          %724 = vst [vmem:[#allocation2 + $0x68] sm:$0xff] %v616
          %725 = vst [vmem:[#allocation2 + $0x70] sm:$0xff] %v687
          %726 = vst [vmem:[#allocation2 + $0x78] sm:$0xff] %v689
          %727 = vst [vmem:[#allocation2 + $0x80] sm:$0xff] %v620
          %728 = vst [vmem:[#allocation2 + $0x88] sm:$0xff] %v622
          %729 = vst [vmem:[#allocation2 + $0x90] sm:$0xff] %v693
          %730 = vst [vmem:[#allocation2 + $0x98] sm:$0xff] %v695
          %731 = vst [vmem:[#allocation2 + $0xa0] sm:$0xff] %v624
          %732 = vst [vmem:[#allocation2 + $0xa8] sm:$0xff] %v626
          %733 = vst [vmem:[#allocation2 + $0xb0] sm:$0xff] %v697
          %734 = vst [vmem:[#allocation2 + $0xb8] sm:$0xff] %v699
          %735 = vst [vmem:[#allocation2 + $0xc0] sm:$0xff] %v630
          %736 = vst [vmem:[#allocation2 + $0xc8] sm:$0xff] %v632
          %737 = vst [vmem:[#allocation2 + $0xd0] sm:$0xff] %v703
          %738 = vst [vmem:[#allocation2 + $0xd8] sm:$0xff] %v705
          %739 = vst [vmem:[#allocation2 + $0xe0] sm:$0xff] %v634
          %740 = vst [vmem:[#allocation2 + $0xe8] sm:$0xff] %v636
          %741 = vst [vmem:[#allocation2 + $0xf0] sm:$0xff] %v707
          %742 = vst [vmem:[#allocation2 + $0xf8] sm:$0xff] %v709
        $region64: #{tpu_custom_call.1} parent=43 // pred_fallthru
          _
        %p743 = scmp.gt.s32.totalorder %s23, 0
        // Predicated region
        $region65: #{tpu_custom_call.1} parent=43 // pred_check
          %p744 = pneg %p743
        $region66: #{tpu_custom_call.1} parent=43 // pred_check_branch
          %746 = sbr.rel (%p744) target = $region68
        $region67: #{tpu_custom_call.1} parent=43 // pred_region
          %s747 = ssub.s32 %s23, 1
          %s748 = smul.u32 %s747, 4
          %v749 = vld [vmem:[#allocation2] sm:$0xff]
          %v750 = vld [vmem:[#allocation2 + $0x8] sm:$0xff]
          %v751 = vld [vmem:[#allocation2 + $0x10] sm:$0xff]
          %v752 = vld [vmem:[#allocation2 + $0x18] sm:$0xff]
          %v753 = vld [vmem:[#allocation2 + $0x20] sm:$0xff]
          %v754 = vld [vmem:[#allocation2 + $0x28] sm:$0xff]
          %v755 = vld [vmem:[#allocation2 + $0x30] sm:$0xff]
          %v756 = vld [vmem:[#allocation2 + $0x38] sm:$0xff]
          %v757 = vld [vmem:[#allocation3] sm:$0xff]
          %v758 = vld [vmem:[#allocation10] sm:$0xff]
          %v759 = vld [vmem:[#allocation10 + $0x8] sm:$0xff]
          %v760 = vld [vmem:[#allocation10 + $0x10] sm:$0xff]
          %v761 = vld [vmem:[#allocation10 + $0x18] sm:$0xff]
          %v762 = vld [vmem:[#allocation10 + $0x20] sm:$0xff]
          %v763 = vld [vmem:[#allocation10 + $0x28] sm:$0xff]
          %v764 = vld [vmem:[#allocation10 + $0x30] sm:$0xff]
          %v765 = vld [vmem:[#allocation10 + $0x38] sm:$0xff]
          %v766 = vld [vmem:[#allocation10 + $0x40] sm:$0xff]
          %v767 = vld [vmem:[#allocation10 + $0x48] sm:$0xff]
          %v768 = vld [vmem:[#allocation10 + $0x50] sm:$0xff]
          %v769 = vld [vmem:[#allocation10 + $0x58] sm:$0xff]
          %v770 = vld [vmem:[#allocation10 + $0x60] sm:$0xff]
          %v771 = vld [vmem:[#allocation10 + $0x68] sm:$0xff]
          %v772 = vld [vmem:[#allocation10 + $0x70] sm:$0xff]
          %v773 = vld [vmem:[#allocation10 + $0x78] sm:$0xff]
          %v774 = vld [vmem:[#allocation10 + $0x80] sm:$0xff]
          %v775 = vld [vmem:[#allocation10 + $0x88] sm:$0xff]
          %v776 = vld [vmem:[#allocation10 + $0x90] sm:$0xff]
          %v777 = vld [vmem:[#allocation10 + $0x98] sm:$0xff]
          %v778 = vld [vmem:[#allocation10 + $0xa0] sm:$0xff]
          %v779 = vld [vmem:[#allocation10 + $0xa8] sm:$0xff]
          %v780 = vld [vmem:[#allocation10 + $0xb0] sm:$0xff]
          %v781 = vld [vmem:[#allocation10 + $0xb8] sm:$0xff]
          %v782 = vld [vmem:[#allocation10 + $0xc0] sm:$0xff]
          %v783 = vld [vmem:[#allocation10 + $0xc8] sm:$0xff]
          %v784 = vld [vmem:[#allocation10 + $0xd0] sm:$0xff]
          %v785 = vld [vmem:[#allocation10 + $0xd8] sm:$0xff]
          %v786 = vld [vmem:[#allocation10 + $0xe0] sm:$0xff]
          %v787 = vld [vmem:[#allocation10 + $0xe8] sm:$0xff]
          %v788 = vld [vmem:[#allocation10 + $0xf0] sm:$0xff]
          %v789 = vld [vmem:[#allocation10 + $0xf8] sm:$0xff]
          %v822 = vunpack.c.l.b16 %v758
          %v823 = vunpack.c.h.b16 %v758
          %v824 = vunpack.c.l.b16 %v759
          %v825 = vunpack.c.h.b16 %v759
          %v826 = vunpack.c.l.b16 %v760
          %v827 = vunpack.c.h.b16 %v760
          %v828 = vunpack.c.l.b16 %v761
          %v829 = vunpack.c.h.b16 %v761
          %v830 = vunpack.c.l.b16 %v762
          %v831 = vunpack.c.h.b16 %v762
          %v832 = vunpack.c.l.b16 %v763
          %v833 = vunpack.c.h.b16 %v763
          %v834 = vunpack.c.l.b16 %v764
          %v835 = vunpack.c.h.b16 %v764
          %v836 = vunpack.c.l.b16 %v765
          %v837 = vunpack.c.h.b16 %v765
          %v838 = vunpack.c.l.b16 %v766
          %v839 = vunpack.c.h.b16 %v766
          %v840 = vunpack.c.l.b16 %v767
          %v841 = vunpack.c.h.b16 %v767
          %v842 = vunpack.c.l.b16 %v768
          %v843 = vunpack.c.h.b16 %v768
          %v844 = vunpack.c.l.b16 %v769
          %v845 = vunpack.c.h.b16 %v769
          %v846 = vunpack.c.l.b16 %v770
          %v847 = vunpack.c.h.b16 %v770
          %v848 = vunpack.c.l.b16 %v771
          %v849 = vunpack.c.h.b16 %v771
          %v850 = vunpack.c.l.b16 %v772
          %v851 = vunpack.c.h.b16 %v772
          %v852 = vunpack.c.l.b16 %v773
          %v853 = vunpack.c.h.b16 %v773
          %v854 = vunpack.c.l.b16 %v774
          %v855 = vunpack.c.h.b16 %v774
          %v856 = vunpack.c.l.b16 %v775
          %v857 = vunpack.c.h.b16 %v775
          %v858 = vunpack.c.l.b16 %v776
          %v859 = vunpack.c.h.b16 %v776
          %v860 = vunpack.c.l.b16 %v777
          %v861 = vunpack.c.h.b16 %v777
          %v862 = vunpack.c.l.b16 %v778
          %v863 = vunpack.c.h.b16 %v778
          %v864 = vunpack.c.l.b16 %v779
          %v865 = vunpack.c.h.b16 %v779
          %v866 = vunpack.c.l.b16 %v780
          %v867 = vunpack.c.h.b16 %v780
          %v868 = vunpack.c.l.b16 %v781
          %v869 = vunpack.c.h.b16 %v781
          %v870 = vunpack.c.l.b16 %v782
          %v871 = vunpack.c.h.b16 %v782
          %v872 = vunpack.c.l.b16 %v783
          %v873 = vunpack.c.h.b16 %v783
          %v874 = vunpack.c.l.b16 %v784
          %v875 = vunpack.c.h.b16 %v784
          %v876 = vunpack.c.l.b16 %v785
          %v877 = vunpack.c.h.b16 %v785
          %v878 = vunpack.c.l.b16 %v786
          %v879 = vunpack.c.h.b16 %v786
          %v880 = vunpack.c.l.b16 %v787
          %v881 = vunpack.c.h.b16 %v787
          %v882 = vunpack.c.l.b16 %v788
          %v883 = vunpack.c.h.b16 %v788
          %v884 = vunpack.c.l.b16 %v789
          %v885 = vunpack.c.h.b16 %v789
          %v886 = vpack.c.b16 %v826, %v822
          %v887 = vpack.c.b16 %v827, %v823
          %v888 = vpack.c.b16 %v828, %v824
          %v889 = vpack.c.b16 %v829, %v825
          %v890 = vpack.c.b16 %v834, %v830
          %v891 = vpack.c.b16 %v835, %v831
          %v892 = vpack.c.b16 %v836, %v832
          %v893 = vpack.c.b16 %v837, %v833
          %v894 = vpack.c.b16 %v842, %v838
          %v895 = vpack.c.b16 %v843, %v839
          %v896 = vpack.c.b16 %v844, %v840
          %v897 = vpack.c.b16 %v845, %v841
          %v898 = vpack.c.b16 %v850, %v846
          %v899 = vpack.c.b16 %v851, %v847
          %v900 = vpack.c.b16 %v852, %v848
          %v901 = vpack.c.b16 %v853, %v849
          %v902 = vpack.c.b16 %v858, %v854
          %v903 = vpack.c.b16 %v859, %v855
          %v904 = vpack.c.b16 %v860, %v856
          %v905 = vpack.c.b16 %v861, %v857
          %v906 = vpack.c.b16 %v866, %v862
          %v907 = vpack.c.b16 %v867, %v863
          %v908 = vpack.c.b16 %v868, %v864
          %v909 = vpack.c.b16 %v869, %v865
          %v910 = vpack.c.b16 %v874, %v870
          %v911 = vpack.c.b16 %v875, %v871
          %v912 = vpack.c.b16 %v876, %v872
          %v913 = vpack.c.b16 %v877, %v873
          %v914 = vpack.c.b16 %v882, %v878
          %v915 = vpack.c.b16 %v883, %v879
          %v916 = vpack.c.b16 %v884, %v880
          %v917 = vpack.c.b16 %v885, %v881
          %950 = vmatprep.subr.bf16.mxu0 %v887
          %951 = vmatpush1.bf16.msra.mxu0 %v886
          %952 = vmatprep.subr.bf16.mxu0 %v891
          %953 = vmatpush1.bf16.msra.mxu0 %v890
          %954 = vmatprep.subr.bf16.mxu0 %v895
          %955 = vmatpush1.bf16.msra.mxu0 %v894
          %956 = vmatprep.subr.bf16.mxu0 %v899
          %957 = vmatpush1.bf16.msra.mxu0 %v898
          %958 = vmatprep.subr.bf16.mxu0 %v903
          %959 = vmatpush1.bf16.msra.mxu0 %v902
          %960 = vmatprep.subr.bf16.mxu0 %v907
          %961 = vmatpush1.bf16.msra.mxu0 %v906
          %962 = vmatprep.subr.bf16.mxu0 %v911
          %963 = vmatpush1.bf16.msra.mxu0 %v910
          %964 = vmatprep.subr.bf16.mxu0 %v915
          %965 = vmatpush1.bf16.msra.mxu0 %v914
          %966 = vmatprep.subr.bf16.mxu0 0
          %967 = vmatpush1.bf16.msra.mxu0 0
          %968 = vmatprep.subr.bf16.mxu0 0
          %969 = vmatpush1.bf16.msra.mxu0 0
          %970 = vmatprep.subr.bf16.mxu0 0
          %971 = vmatpush1.bf16.msra.mxu0 0
          %972 = vmatprep.subr.bf16.mxu0 0
          %973 = vmatpush1.bf16.msra.mxu0 0
          %974 = vmatprep.subr.bf16.mxu0 0
          %975 = vmatpush1.bf16.msra.mxu0 0
          %976 = vmatprep.subr.bf16.mxu0 0
          %977 = vmatpush1.bf16.msra.mxu0 0
          %978 = vmatprep.subr.bf16.mxu0 0
          %979 = vmatpush1.bf16.msra.mxu0 0
          %980 = vmatprep.subr.bf16.mxu0 0
          %981 = vmatpush1.bf16.msra.mxu0 0
          %982 = vmatprep.mubr.bf16.mxu0 0
          %983 = vmatmul.mubr.bf16.gmra.mrb[0].mxu0 %v757
          %v984 = vpop.f32.mrb[0].mxu0
          %v985 = vadd.f32 0.0, %v984
          %v986 = vpop.f32.mrb[0].mxu0
          %v987 = vadd.f32 0.0, %v986
          %v988 = vpop.f32.mrb[0].mxu0
          %v989 = vadd.f32 0.0, %v988
          %v990 = vpop.f32.mrb[0].mxu0
          %v991 = vadd.f32 0.0, %v990
          %992 = vdwg.mxu0
          %993 = vmatprep.subr.bf16.mxu0 %v889
          %994 = vmatpush1.bf16.msra.mxu0 %v888
          %995 = vmatprep.subr.bf16.mxu0 %v893
          %996 = vmatpush1.bf16.msra.mxu0 %v892
          %997 = vmatprep.subr.bf16.mxu0 %v897
          %998 = vmatpush1.bf16.msra.mxu0 %v896
          %999 = vmatprep.subr.bf16.mxu0 %v901
          %1000 = vmatpush1.bf16.msra.mxu0 %v900
          %1001 = vmatprep.subr.bf16.mxu0 %v905
          %1002 = vmatpush1.bf16.msra.mxu0 %v904
          %1003 = vmatprep.subr.bf16.mxu0 %v909
          %1004 = vmatpush1.bf16.msra.mxu0 %v908
          %1005 = vmatprep.subr.bf16.mxu0 %v913
          %1006 = vmatpush1.bf16.msra.mxu0 %v912
          %1007 = vmatprep.subr.bf16.mxu0 %v917
          %1008 = vmatpush1.bf16.msra.mxu0 %v916
          %1009 = vmatprep.subr.bf16.mxu0 0
          %1010 = vmatpush1.bf16.msra.mxu0 0
          %1011 = vmatprep.subr.bf16.mxu0 0
          %1012 = vmatpush1.bf16.msra.mxu0 0
          %1013 = vmatprep.subr.bf16.mxu0 0
          %1014 = vmatpush1.bf16.msra.mxu0 0
          %1015 = vmatprep.subr.bf16.mxu0 0
          %1016 = vmatpush1.bf16.msra.mxu0 0
          %1017 = vmatprep.subr.bf16.mxu0 0
          %1018 = vmatpush1.bf16.msra.mxu0 0
          %1019 = vmatprep.subr.bf16.mxu0 0
          %1020 = vmatpush1.bf16.msra.mxu0 0
          %1021 = vmatprep.subr.bf16.mxu0 0
          %1022 = vmatpush1.bf16.msra.mxu0 0
          %1023 = vmatprep.subr.bf16.mxu0 0
          %1024 = vmatpush1.bf16.msra.mxu0 0
          %1025 = vmatprep.mubr.bf16.mxu0 0
          %1026 = vmatmul.mubr.bf16.gmra.mrb[0].mxu0 %v757
          %v1027 = vpop.f32.mrb[0].mxu0
          %v1028 = vadd.f32 0.0, %v1027
          %v1029 = vpop.f32.mrb[0].mxu0
          %v1030 = vadd.f32 0.0, %v1029
          %v1031 = vpop.f32.mrb[0].mxu0
          %v1032 = vadd.f32 0.0, %v1031
          %v1033 = vpop.f32.mrb[0].mxu0
          %v1034 = vadd.f32 0.0, %v1033
          %1035 = vdwg.mxu0
          %v1036 = vadd.f32 %v749, %v985
          %v1037 = vadd.f32 %v750, %v987
          %v1038 = vadd.f32 %v751, %v1028
          %v1039 = vadd.f32 %v752, %v1030
          %v1040 = vadd.f32 %v753, %v989
          %v1041 = vadd.f32 %v754, %v991
          %v1042 = vadd.f32 %v755, %v1032
          %v1043 = vadd.f32 %v756, %v1034
          %v1044 = vxor.u32 %v1036, 2147483648
          %v1045 = vxor.u32 %v1037, 2147483648
          %v1046 = vxor.u32 %v1038, 2147483648
          %v1047 = vxor.u32 %v1040, 2147483648
          %v1048 = vxor.u32 %v1041, 2147483648
          %v1049 = vxor.u32 %v1042, 2147483648
          %v1050 = vmul.f32 %v1044, 1.442695
          %v1051 = vpow.pop %v1050
          %v1052 = vmul.f32 %v1045, 1.442695
          %v1053 = vpow.pop %v1052
          %v1054 = vmul.f32 %v1046, 1.442695
          %v1055 = vpow.pop %v1054
          %v1056 = vmul.f32 %v1047, 1.442695
          %v1057 = vpow.pop %v1056
          %v1058 = vmul.f32 %v1048, 1.442695
          %v1059 = vpow.pop %v1058
          %v1060 = vmul.f32 %v1049, 1.442695
          %v1061 = vpow.pop %v1060
          %v1062 = vadd.f32 %v1051, 1.0
          %v1063 = vadd.f32 %v1053, 1.0
          %v1064 = vadd.f32 %v1055, 1.0
          %v1065 = vadd.f32 %v1057, 1.0
          %v1066 = vadd.f32 %v1059, 1.0
          %v1067 = vadd.f32 %v1061, 1.0
          %v1068 = vrcp.pop %v1062
          %v1069 = vmul.f32 1.0, %v1068
          %v1070 = vrcp.pop %v1063
          %v1071 = vmul.f32 1.0, %v1070
          %v1072 = vrcp.pop %v1064
          %v1073 = vmul.f32 1.0, %v1072
          %v1074 = vrcp.pop %v1065
          %v1075 = vmul.f32 1.0, %v1074
          %v1076 = vrcp.pop %v1066
          %v1077 = vmul.f32 1.0, %v1076
          %v1078 = vrcp.pop %v1067
          %v1079 = vmul.f32 1.0, %v1078
          %v1080 = vtanh.pop %v1039
          %v1081 = vtanh.pop %v1043
          %v1082 = vld [vmem:[#allocation4] sm:$0xff]
          %v1083 = vld [vmem:[#allocation4 + $0x8] sm:$0xff]
          %v1084 = vmul.f32 %v1071, %v1082
          %v1085 = vmul.f32 %v1077, %v1083
          %v1086 = vmul.f32 %v1069, %v1080
          %v1087 = vmul.f32 %v1075, %v1081
          %v1088 = vadd.f32 %v1084, %v1086
          %v1089 = vadd.f32 %v1085, %v1087
          %v1090 = vtanh.pop %v1088
          %v1091 = vtanh.pop %v1089
          %v1092 = vmul.f32 %v1073, %v1090
          %v1093 = vmul.f32 %v1079, %v1091
          %v1094 = vpack.c.bf16 %v1093, %v1092
          %p1095 = scmp.lt.s32.totalorder %s748, 9
          %s1096 = scalar_select %p1095, 1, 0
          %v1097 = vstv %s1096
          %vm1098 = vcmp.eq.s32.totalorder %v1097, 1
          %v1099 = vsel %vm1098, %v1088, %v1082
          %v1100 = vsel %vm1098, %v1089, %v1083
          %1101 = vst [vmem:[#allocation4] sm:$0xff] %v1099
          %1102 = vst [vmem:[#allocation4 + $0x8] sm:$0xff] %v1100
          %v1103 = vld [vmem:[#allocation3] sm:$0xff]
          %v1104 = vsel %vm1098, %v1094, %v1103
          %1105 = vst [vmem:[#allocation3] sm:$0xff] %v1104
          %v1106 = vld [vmem:[%s272] sm:$0xf]
          %v1107 = vld [vmem:[%s272 + $0x4] sm:$0xf]
          %v1108 = vld [vmem:[#allocation8] sm:$0xff]
          %v1109 = vld [vmem:[#allocation8 + $0x8] sm:$0xff]
          %v1110 = vld [vmem:[#allocation8 + $0x10] sm:$0xff]
          %v1111 = vld [vmem:[#allocation8 + $0x18] sm:$0xff]
          %v1112 = vld [vmem:[#allocation8 + $0x20] sm:$0xff]
          %v1113 = vld [vmem:[#allocation8 + $0x28] sm:$0xff]
          %v1114 = vld [vmem:[#allocation8 + $0x30] sm:$0xff]
          %v1115 = vld [vmem:[#allocation8 + $0x38] sm:$0xff]
          %v1116 = vld [vmem:[#allocation8 + $0x40] sm:$0xff]
          %v1117 = vld [vmem:[#allocation8 + $0x48] sm:$0xff]
          %v1118 = vld [vmem:[#allocation8 + $0x50] sm:$0xff]
          %v1119 = vld [vmem:[#allocation8 + $0x58] sm:$0xff]
          %v1120 = vld [vmem:[#allocation8 + $0x60] sm:$0xff]
          %v1121 = vld [vmem:[#allocation8 + $0x68] sm:$0xff]
          %v1122 = vld [vmem:[#allocation8 + $0x70] sm:$0xff]
          %v1123 = vld [vmem:[#allocation8 + $0x78] sm:$0xff]
          %v1124 = vld [vmem:[#allocation8 + $0x80] sm:$0xff]
          %v1125 = vld [vmem:[#allocation8 + $0x88] sm:$0xff]
          %v1126 = vld [vmem:[#allocation8 + $0x90] sm:$0xff]
          %v1127 = vld [vmem:[#allocation8 + $0x98] sm:$0xff]
          %v1128 = vld [vmem:[#allocation8 + $0xa0] sm:$0xff]
          %v1129 = vld [vmem:[#allocation8 + $0xa8] sm:$0xff]
          %v1130 = vld [vmem:[#allocation8 + $0xb0] sm:$0xff]
          %v1131 = vld [vmem:[#allocation8 + $0xb8] sm:$0xff]
          %v1132 = vld [vmem:[#allocation8 + $0xc0] sm:$0xff]
          %v1133 = vld [vmem:[#allocation8 + $0xc8] sm:$0xff]
          %v1134 = vld [vmem:[#allocation8 + $0xd0] sm:$0xff]
          %v1135 = vld [vmem:[#allocation8 + $0xd8] sm:$0xff]
          %v1136 = vld [vmem:[#allocation8 + $0xe0] sm:$0xff]
          %v1137 = vld [vmem:[#allocation8 + $0xe8] sm:$0xff]
          %v1138 = vld [vmem:[#allocation8 + $0xf0] sm:$0xff]
          %v1139 = vld [vmem:[#allocation8 + $0xf8] sm:$0xff]
          %v1140 = vld [vmem:[%s3] sm:$0xf]
          %v1142 = vlaneseq
          %v1143 = vshrl.u32 %v1142, 7
          %v1144 = vsub.s32 0, %v1143
          %v1145 = vrot.slane %v1140, %v1144
          %v1146 = vlaneseq
          %v1147 = vshrl.u32 %v1146, 7
          %v1148 = vsub.s32 1, %v1147
          %v1149 = vrot.slane %v1140, %v1148
          %v1150 = vlaneseq
          %v1151 = vshrl.u32 %v1150, 7
          %v1152 = vsub.s32 2, %v1151
          %v1153 = vrot.slane %v1140, %v1152
          %v1154 = vlaneseq
          %v1155 = vshrl.u32 %v1154, 7
          %v1156 = vsub.s32 3, %v1155
          %v1157 = vrot.slane %v1140, %v1156
          %v1164 = vunpack.c.l.b16 %v1106
          %v1165 = vunpack.c.l.b16 %v1107
          %v1166 = vpack.c.b16 %v1165, %v1164
          %v1200 = vunpack.c.l.b16 %v1108
          %v1201 = vunpack.c.h.b16 %v1108
          %v1202 = vunpack.c.l.b16 %v1109
          %v1203 = vunpack.c.h.b16 %v1109
          %v1204 = vunpack.c.l.b16 %v1110
          %v1205 = vunpack.c.h.b16 %v1110
          %v1206 = vunpack.c.l.b16 %v1111
          %v1207 = vunpack.c.h.b16 %v1111
          %v1208 = vunpack.c.l.b16 %v1112
          %v1209 = vunpack.c.h.b16 %v1112
          %v1210 = vunpack.c.l.b16 %v1113
          %v1211 = vunpack.c.h.b16 %v1113
          %v1212 = vunpack.c.l.b16 %v1114
          %v1213 = vunpack.c.h.b16 %v1114
          %v1214 = vunpack.c.l.b16 %v1115
          %v1215 = vunpack.c.h.b16 %v1115
          %v1216 = vunpack.c.l.b16 %v1116
          %v1217 = vunpack.c.h.b16 %v1116
          %v1218 = vunpack.c.l.b16 %v1117
          %v1219 = vunpack.c.h.b16 %v1117
          %v1220 = vunpack.c.l.b16 %v1118
          %v1221 = vunpack.c.h.b16 %v1118
          %v1222 = vunpack.c.l.b16 %v1119
          %v1223 = vunpack.c.h.b16 %v1119
          %v1224 = vunpack.c.l.b16 %v1120
          %v1225 = vunpack.c.h.b16 %v1120
          %v1226 = vunpack.c.l.b16 %v1121
          %v1227 = vunpack.c.h.b16 %v1121
          %v1228 = vunpack.c.l.b16 %v1122
          %v1229 = vunpack.c.h.b16 %v1122
          %v1230 = vunpack.c.l.b16 %v1123
          %v1231 = vunpack.c.h.b16 %v1123
          %v1232 = vunpack.c.l.b16 %v1124
          %v1233 = vunpack.c.h.b16 %v1124
          %v1234 = vunpack.c.l.b16 %v1125
          %v1235 = vunpack.c.h.b16 %v1125
          %v1236 = vunpack.c.l.b16 %v1126
          %v1237 = vunpack.c.h.b16 %v1126
          %v1238 = vunpack.c.l.b16 %v1127
          %v1239 = vunpack.c.h.b16 %v1127
          %v1240 = vunpack.c.l.b16 %v1128
          %v1241 = vunpack.c.h.b16 %v1128
          %v1242 = vunpack.c.l.b16 %v1129
          %v1243 = vunpack.c.h.b16 %v1129
          %v1244 = vunpack.c.l.b16 %v1130
          %v1245 = vunpack.c.h.b16 %v1130
          %v1246 = vunpack.c.l.b16 %v1131
          %v1247 = vunpack.c.h.b16 %v1131
          %v1248 = vunpack.c.l.b16 %v1132
          %v1249 = vunpack.c.h.b16 %v1132
          %v1250 = vunpack.c.l.b16 %v1133
          %v1251 = vunpack.c.h.b16 %v1133
          %v1252 = vunpack.c.l.b16 %v1134
          %v1253 = vunpack.c.h.b16 %v1134
          %v1254 = vunpack.c.l.b16 %v1135
          %v1255 = vunpack.c.h.b16 %v1135
          %v1256 = vunpack.c.l.b16 %v1136
          %v1257 = vunpack.c.h.b16 %v1136
          %v1258 = vunpack.c.l.b16 %v1137
          %v1259 = vunpack.c.h.b16 %v1137
          %v1260 = vunpack.c.l.b16 %v1138
          %v1261 = vunpack.c.h.b16 %v1138
          %v1262 = vunpack.c.l.b16 %v1139
          %v1263 = vunpack.c.h.b16 %v1139
          %v1264 = vpack.c.b16 %v1204, %v1200
          %v1265 = vpack.c.b16 %v1205, %v1201
          %v1266 = vpack.c.b16 %v1206, %v1202
          %v1267 = vpack.c.b16 %v1207, %v1203
          %v1268 = vpack.c.b16 %v1212, %v1208
          %v1269 = vpack.c.b16 %v1213, %v1209
          %v1270 = vpack.c.b16 %v1214, %v1210
          %v1271 = vpack.c.b16 %v1215, %v1211
          %v1272 = vpack.c.b16 %v1220, %v1216
          %v1273 = vpack.c.b16 %v1221, %v1217
          %v1274 = vpack.c.b16 %v1222, %v1218
          %v1275 = vpack.c.b16 %v1223, %v1219
          %v1276 = vpack.c.b16 %v1228, %v1224
          %v1277 = vpack.c.b16 %v1229, %v1225
          %v1278 = vpack.c.b16 %v1230, %v1226
          %v1279 = vpack.c.b16 %v1231, %v1227
          %v1280 = vpack.c.b16 %v1236, %v1232
          %v1281 = vpack.c.b16 %v1237, %v1233
          %v1282 = vpack.c.b16 %v1238, %v1234
          %v1283 = vpack.c.b16 %v1239, %v1235
          %v1284 = vpack.c.b16 %v1244, %v1240
          %v1285 = vpack.c.b16 %v1245, %v1241
          %v1286 = vpack.c.b16 %v1246, %v1242
          %v1287 = vpack.c.b16 %v1247, %v1243
          %v1288 = vpack.c.b16 %v1252, %v1248
          %v1289 = vpack.c.b16 %v1253, %v1249
          %v1290 = vpack.c.b16 %v1254, %v1250
          %v1291 = vpack.c.b16 %v1255, %v1251
          %v1292 = vpack.c.b16 %v1260, %v1256
          %v1293 = vpack.c.b16 %v1261, %v1257
          %v1294 = vpack.c.b16 %v1262, %v1258
          %v1295 = vpack.c.b16 %v1263, %v1259
          %1328 = vmatprep.subr.bf16.mxu0 %v1265
          %1329 = vmatpush1.bf16.msra.mxu0 %v1264
          %1330 = vmatprep.subr.bf16.mxu0 %v1269
          %1331 = vmatpush1.bf16.msra.mxu0 %v1268
          %1332 = vmatprep.subr.bf16.mxu0 %v1273
          %1333 = vmatpush1.bf16.msra.mxu0 %v1272
          %1334 = vmatprep.subr.bf16.mxu0 %v1277
          %1335 = vmatpush1.bf16.msra.mxu0 %v1276
          %1336 = vmatprep.subr.bf16.mxu0 %v1281
          %1337 = vmatpush1.bf16.msra.mxu0 %v1280
          %1338 = vmatprep.subr.bf16.mxu0 %v1285
          %1339 = vmatpush1.bf16.msra.mxu0 %v1284
          %1340 = vmatprep.subr.bf16.mxu0 %v1289
          %1341 = vmatpush1.bf16.msra.mxu0 %v1288
          %1342 = vmatprep.subr.bf16.mxu0 %v1293
          %1343 = vmatpush1.bf16.msra.mxu0 %v1292
          %1344 = vmatprep.subr.bf16.mxu0 0
          %1345 = vmatpush1.bf16.msra.mxu0 0
          %1346 = vmatprep.subr.bf16.mxu0 0
          %1347 = vmatpush1.bf16.msra.mxu0 0
          %1348 = vmatprep.subr.bf16.mxu0 0
          %1349 = vmatpush1.bf16.msra.mxu0 0
          %1350 = vmatprep.subr.bf16.mxu0 0
          %1351 = vmatpush1.bf16.msra.mxu0 0
          %1352 = vmatprep.subr.bf16.mxu0 0
          %1353 = vmatpush1.bf16.msra.mxu0 0
          %1354 = vmatprep.subr.bf16.mxu0 0
          %1355 = vmatpush1.bf16.msra.mxu0 0
          %1356 = vmatprep.subr.bf16.mxu0 0
          %1357 = vmatpush1.bf16.msra.mxu0 0
          %1358 = vmatprep.subr.bf16.mxu0 0
          %1359 = vmatpush1.bf16.msra.mxu0 0
          %1360 = vmatprep.mubr.bf16.mxu0 0
          %1361 = vmatmul.mubr.bf16.gmra.mrb[0].mxu0 %v1166
          %v1362 = vpop.f32.mrb[0].mxu0
          %v1363 = vadd.f32 %v1145, %v1362
          %v1364 = vpop.f32.mrb[0].mxu0
          %v1365 = vadd.f32 %v1149, %v1364
          %v1366 = vpop.f32.mrb[0].mxu0
          %v1367 = vadd.f32 %v1145, %v1366
          %v1368 = vpop.f32.mrb[0].mxu0
          %v1369 = vadd.f32 %v1149, %v1368
          %1370 = vdwg.mxu0
          %1371 = vmatprep.subr.bf16.mxu0 %v1267
          %1372 = vmatpush1.bf16.msra.mxu0 %v1266
          %1373 = vmatprep.subr.bf16.mxu0 %v1271
          %1374 = vmatpush1.bf16.msra.mxu0 %v1270
          %1375 = vmatprep.subr.bf16.mxu0 %v1275
          %1376 = vmatpush1.bf16.msra.mxu0 %v1274
          %1377 = vmatprep.subr.bf16.mxu0 %v1279
          %1378 = vmatpush1.bf16.msra.mxu0 %v1278
          %1379 = vmatprep.subr.bf16.mxu0 %v1283
          %1380 = vmatpush1.bf16.msra.mxu0 %v1282
          %1381 = vmatprep.subr.bf16.mxu0 %v1287
          %1382 = vmatpush1.bf16.msra.mxu0 %v1286
          %1383 = vmatprep.subr.bf16.mxu0 %v1291
          %1384 = vmatpush1.bf16.msra.mxu0 %v1290
          %1385 = vmatprep.subr.bf16.mxu0 %v1295
          %1386 = vmatpush1.bf16.msra.mxu0 %v1294
          %1387 = vmatprep.subr.bf16.mxu0 0
          %1388 = vmatpush1.bf16.msra.mxu0 0
          %1389 = vmatprep.subr.bf16.mxu0 0
          %1390 = vmatpush1.bf16.msra.mxu0 0
          %1391 = vmatprep.subr.bf16.mxu0 0
          %1392 = vmatpush1.bf16.msra.mxu0 0
          %1393 = vmatprep.subr.bf16.mxu0 0
          %1394 = vmatpush1.bf16.msra.mxu0 0
          %1395 = vmatprep.subr.bf16.mxu0 0
          %1396 = vmatpush1.bf16.msra.mxu0 0
          %1397 = vmatprep.subr.bf16.mxu0 0
          %1398 = vmatpush1.bf16.msra.mxu0 0
          %1399 = vmatprep.subr.bf16.mxu0 0
          %1400 = vmatpush1.bf16.msra.mxu0 0
          %1401 = vmatprep.subr.bf16.mxu0 0
          %1402 = vmatpush1.bf16.msra.mxu0 0
          %1403 = vmatprep.mubr.bf16.mxu0 0
          %1404 = vmatmul.mubr.bf16.gmra.mrb[0].mxu0 %v1166
          %v1405 = vpop.f32.mrb[0].mxu0
          %v1406 = vadd.f32 %v1153, %v1405
          %v1407 = vpop.f32.mrb[0].mxu0
          %v1408 = vadd.f32 %v1157, %v1407
          %v1409 = vpop.f32.mrb[0].mxu0
          %v1410 = vadd.f32 %v1153, %v1409
          %v1411 = vpop.f32.mrb[0].mxu0
          %v1412 = vadd.f32 %v1157, %v1411
          %1413 = vdwg.mxu0
          %1414 = vst [vmem:[#allocation2] sm:$0xff] %v1363
          %1415 = vst [vmem:[#allocation2 + $0x8] sm:$0xff] %v1365
          %1416 = vst [vmem:[#allocation2 + $0x10] sm:$0xff] %v1406
          %1417 = vst [vmem:[#allocation2 + $0x18] sm:$0xff] %v1408
          %1418 = vst [vmem:[#allocation2 + $0x20] sm:$0xff] %v1367
          %1419 = vst [vmem:[#allocation2 + $0x28] sm:$0xff] %v1369
          %1420 = vst [vmem:[#allocation2 + $0x30] sm:$0xff] %v1410
          %1421 = vst [vmem:[#allocation2 + $0x38] sm:$0xff] %v1412
          %v1422 = vld [vmem:[#allocation2 + $0x40] sm:$0xff]
          %v1423 = vld [vmem:[#allocation2 + $0x48] sm:$0xff]
          %v1424 = vld [vmem:[#allocation2 + $0x50] sm:$0xff]
          %v1425 = vld [vmem:[#allocation2 + $0x58] sm:$0xff]
          %v1426 = vld [vmem:[#allocation2 + $0x60] sm:$0xff]
          %v1427 = vld [vmem:[#allocation2 + $0x68] sm:$0xff]
          %v1428 = vld [vmem:[#allocation2 + $0x70] sm:$0xff]
          %v1429 = vld [vmem:[#allocation2 + $0x78] sm:$0xff]
          %v1430 = vld [vmem:[#allocation3] sm:$0xff]
          %v1431 = vld [vmem:[#allocation10] sm:$0xff]
          %v1432 = vld [vmem:[#allocation10 + $0x8] sm:$0xff]
          %v1433 = vld [vmem:[#allocation10 + $0x10] sm:$0xff]
          %v1434 = vld [vmem:[#allocation10 + $0x18] sm:$0xff]
          %v1435 = vld [vmem:[#allocation10 + $0x20] sm:$0xff]
          %v1436 = vld [vmem:[#allocation10 + $0x28] sm:$0xff]
          %v1437 = vld [vmem:[#allocation10 + $0x30] sm:$0xff]
          %v1438 = vld [vmem:[#allocation10 + $0x38] sm:$0xff]
          %v1439 = vld [vmem:[#allocation10 + $0x40] sm:$0xff]
          %v1440 = vld [vmem:[#allocation10 + $0x48] sm:$0xff]
          %v1441 = vld [vmem:[#allocation10 + $0x50] sm:$0xff]
          %v1442 = vld [vmem:[#allocation10 + $0x58] sm:$0xff]
          %v1443 = vld [vmem:[#allocation10 + $0x60] sm:$0xff]
          %v1444 = vld [vmem:[#allocation10 + $0x68] sm:$0xff]
          %v1445 = vld [vmem:[#allocation10 + $0x70] sm:$0xff]
          %v1446 = vld [vmem:[#allocation10 + $0x78] sm:$0xff]
          %v1447 = vld [vmem:[#allocation10 + $0x80] sm:$0xff]
          %v1448 = vld [vmem:[#allocation10 + $0x88] sm:$0xff]
          %v1449 = vld [vmem:[#allocation10 + $0x90] sm:$0xff]
          %v1450 = vld [vmem:[#allocation10 + $0x98] sm:$0xff]
          %v1451 = vld [vmem:[#allocation10 + $0xa0] sm:$0xff]
          %v1452 = vld [vmem:[#allocation10 + $0xa8] sm:$0xff]
          %v1453 = vld [vmem:[#allocation10 + $0xb0] sm:$0xff]
          %v1454 = vld [vmem:[#allocation10 + $0xb8] sm:$0xff]
          %v1455 = vld [vmem:[#allocation10 + $0xc0] sm:$0xff]
          %v1456 = vld [vmem:[#allocation10 + $0xc8] sm:$0xff]
          %v1457 = vld [vmem:[#allocation10 + $0xd0] sm:$0xff]
          %v1458 = vld [vmem:[#allocation10 + $0xd8] sm:$0xff]
          %v1459 = vld [vmem:[#allocation10 + $0xe0] sm:$0xff]
          %v1460 = vld [vmem:[#allocation10 + $0xe8] sm:$0xff]
          %v1461 = vld [vmem:[#allocation10 + $0xf0] sm:$0xff]
          %v1462 = vld [vmem:[#allocation10 + $0xf8] sm:$0xff]
          %v1495 = vunpack.c.l.b16 %v1431
          %v1496 = vunpack.c.h.b16 %v1431
          %v1497 = vunpack.c.l.b16 %v1432
          %v1498 = vunpack.c.h.b16 %v1432
          %v1499 = vunpack.c.l.b16 %v1433
          %v1500 = vunpack.c.h.b16 %v1433
          %v1501 = vunpack.c.l.b16 %v1434
          %v1502 = vunpack.c.h.b16 %v1434
          %v1503 = vunpack.c.l.b16 %v1435
          %v1504 = vunpack.c.h.b16 %v1435
          %v1505 = vunpack.c.l.b16 %v1436
          %v1506 = vunpack.c.h.b16 %v1436
          %v1507 = vunpack.c.l.b16 %v1437
          %v1508 = vunpack.c.h.b16 %v1437
          %v1509 = vunpack.c.l.b16 %v1438
          %v1510 = vunpack.c.h.b16 %v1438
          %v1511 = vunpack.c.l.b16 %v1439
          %v1512 = vunpack.c.h.b16 %v1439
          %v1513 = vunpack.c.l.b16 %v1440
          %v1514 = vunpack.c.h.b16 %v1440
          %v1515 = vunpack.c.l.b16 %v1441
          %v1516 = vunpack.c.h.b16 %v1441
          %v1517 = vunpack.c.l.b16 %v1442
          %v1518 = vunpack.c.h.b16 %v1442
          %v1519 = vunpack.c.l.b16 %v1443
          %v1520 = vunpack.c.h.b16 %v1443
          %v1521 = vunpack.c.l.b16 %v1444
          %v1522 = vunpack.c.h.b16 %v1444
          %v1523 = vunpack.c.l.b16 %v1445
          %v1524 = vunpack.c.h.b16 %v1445
          %v1525 = vunpack.c.l.b16 %v1446
          %v1526 = vunpack.c.h.b16 %v1446
          %v1527 = vunpack.c.l.b16 %v1447
          %v1528 = vunpack.c.h.b16 %v1447
          %v1529 = vunpack.c.l.b16 %v1448
          %v1530 = vunpack.c.h.b16 %v1448
          %v1531 = vunpack.c.l.b16 %v1449
          %v1532 = vunpack.c.h.b16 %v1449
          %v1533 = vunpack.c.l.b16 %v1450
          %v1534 = vunpack.c.h.b16 %v1450
          %v1535 = vunpack.c.l.b16 %v1451
          %v1536 = vunpack.c.h.b16 %v1451
          %v1537 = vunpack.c.l.b16 %v1452
          %v1538 = vunpack.c.h.b16 %v1452
          %v1539 = vunpack.c.l.b16 %v1453
          %v1540 = vunpack.c.h.b16 %v1453
          %v1541 = vunpack.c.l.b16 %v1454
          %v1542 = vunpack.c.h.b16 %v1454
          %v1543 = vunpack.c.l.b16 %v1455
          %v1544 = vunpack.c.h.b16 %v1455
          %v1545 = vunpack.c.l.b16 %v1456
          %v1546 = vunpack.c.h.b16 %v1456
          %v1547 = vunpack.c.l.b16 %v1457
          %v1548 = vunpack.c.h.b16 %v1457
          %v1549 = vunpack.c.l.b16 %v1458
          %v1550 = vunpack.c.h.b16 %v1458
          %v1551 = vunpack.c.l.b16 %v1459
          %v1552 = vunpack.c.h.b16 %v1459
          %v1553 = vunpack.c.l.b16 %v1460
          %v1554 = vunpack.c.h.b16 %v1460
          %v1555 = vunpack.c.l.b16 %v1461
          %v1556 = vunpack.c.h.b16 %v1461
          %v1557 = vunpack.c.l.b16 %v1462
          %v1558 = vunpack.c.h.b16 %v1462
          %v1559 = vpack.c.b16 %v1499, %v1495
          %v1560 = vpack.c.b16 %v1500, %v1496
          %v1561 = vpack.c.b16 %v1501, %v1497
          %v1562 = vpack.c.b16 %v1502, %v1498
          %v1563 = vpack.c.b16 %v1507, %v1503
          %v1564 = vpack.c.b16 %v1508, %v1504
          %v1565 = vpack.c.b16 %v1509, %v1505
          %v1566 = vpack.c.b16 %v1510, %v1506
          %v1567 = vpack.c.b16 %v1515, %v1511
          %v1568 = vpack.c.b16 %v1516, %v1512
          %v1569 = vpack.c.b16 %v1517, %v1513
          %v1570 = vpack.c.b16 %v1518, %v1514
          %v1571 = vpack.c.b16 %v1523, %v1519
          %v1572 = vpack.c.b16 %v1524, %v1520
          %v1573 = vpack.c.b16 %v1525, %v1521
          %v1574 = vpack.c.b16 %v1526, %v1522
          %v1575 = vpack.c.b16 %v1531, %v1527
          %v1576 = vpack.c.b16 %v1532, %v1528
          %v1577 = vpack.c.b16 %v1533, %v1529
          %v1578 = vpack.c.b16 %v1534, %v1530
          %v1579 = vpack.c.b16 %v1539, %v1535
          %v1580 = vpack.c.b16 %v1540, %v1536
          %v1581 = vpack.c.b16 %v1541, %v1537
          %v1582 = vpack.c.b16 %v1542, %v1538
          %v1583 = vpack.c.b16 %v1547, %v1543
          %v1584 = vpack.c.b16 %v1548, %v1544
          %v1585 = vpack.c.b16 %v1549, %v1545
          %v1586 = vpack.c.b16 %v1550, %v1546
          %v1587 = vpack.c.b16 %v1555, %v1551
          %v1588 = vpack.c.b16 %v1556, %v1552
          %v1589 = vpack.c.b16 %v1557, %v1553
          %v1590 = vpack.c.b16 %v1558, %v1554
          %1623 = vmatprep.subr.bf16.mxu0 %v1560
          %1624 = vmatpush1.bf16.msra.mxu0 %v1559
          %1625 = vmatprep.subr.bf16.mxu0 %v1564
          %1626 = vmatpush1.bf16.msra.mxu0 %v1563
          %1627 = vmatprep.subr.bf16.mxu0 %v1568
          %1628 = vmatpush1.bf16.msra.mxu0 %v1567
          %1629 = vmatprep.subr.bf16.mxu0 %v1572
          %1630 = vmatpush1.bf16.msra.mxu0 %v1571
          %1631 = vmatprep.subr.bf16.mxu0 %v1576
          %1632 = vmatpush1.bf16.msra.mxu0 %v1575
          %1633 = vmatprep.subr.bf16.mxu0 %v1580
          %1634 = vmatpush1.bf16.msra.mxu0 %v1579
          %1635 = vmatprep.subr.bf16.mxu0 %v1584
          %1636 = vmatpush1.bf16.msra.mxu0 %v1583
          %1637 = vmatprep.subr.bf16.mxu0 %v1588
          %1638 = vmatpush1.bf16.msra.mxu0 %v1587
          %1639 = vmatprep.subr.bf16.mxu0 0
          %1640 = vmatpush1.bf16.msra.mxu0 0
          %1641 = vmatprep.subr.bf16.mxu0 0
          %1642 = vmatpush1.bf16.msra.mxu0 0
          %1643 = vmatprep.subr.bf16.mxu0 0
          %1644 = vmatpush1.bf16.msra.mxu0 0
          %1645 = vmatprep.subr.bf16.mxu0 0
          %1646 = vmatpush1.bf16.msra.mxu0 0
          %1647 = vmatprep.subr.bf16.mxu0 0
          %1648 = vmatpush1.bf16.msra.mxu0 0
          %1649 = vmatprep.subr.bf16.mxu0 0
          %1650 = vmatpush1.bf16.msra.mxu0 0
          %1651 = vmatprep.subr.bf16.mxu0 0
          %1652 = vmatpush1.bf16.msra.mxu0 0
          %1653 = vmatprep.subr.bf16.mxu0 0
          %1654 = vmatpush1.bf16.msra.mxu0 0
          %1655 = vmatprep.mubr.bf16.mxu0 0
          %1656 = vmatmul.mubr.bf16.gmra.mrb[0].mxu0 %v1430
          %v1657 = vpop.f32.mrb[0].mxu0
          %v1658 = vadd.f32 0.0, %v1657
          %v1659 = vpop.f32.mrb[0].mxu0
          %v1660 = vadd.f32 0.0, %v1659
          %v1661 = vpop.f32.mrb[0].mxu0
          %v1662 = vadd.f32 0.0, %v1661
          %v1663 = vpop.f32.mrb[0].mxu0
          %v1664 = vadd.f32 0.0, %v1663
          %1665 = vdwg.mxu0
          %1666 = vmatprep.subr.bf16.mxu0 %v1562
          %1667 = vmatpush1.bf16.msra.mxu0 %v1561
          %1668 = vmatprep.subr.bf16.mxu0 %v1566
          %1669 = vmatpush1.bf16.msra.mxu0 %v1565
          %1670 = vmatprep.subr.bf16.mxu0 %v1570
          %1671 = vmatpush1.bf16.msra.mxu0 %v1569
          %1672 = vmatprep.subr.bf16.mxu0 %v1574
          %1673 = vmatpush1.bf16.msra.mxu0 %v1573
          %1674 = vmatprep.subr.bf16.mxu0 %v1578
          %1675 = vmatpush1.bf16.msra.mxu0 %v1577
          %1676 = vmatprep.subr.bf16.mxu0 %v1582
          %1677 = vmatpush1.bf16.msra.mxu0 %v1581
          %1678 = vmatprep.subr.bf16.mxu0 %v1586
          %1679 = vmatpush1.bf16.msra.mxu0 %v1585
          %1680 = vmatprep.subr.bf16.mxu0 %v1590
          %1681 = vmatpush1.bf16.msra.mxu0 %v1589
          %1682 = vmatprep.subr.bf16.mxu0 0
          %1683 = vmatpush1.bf16.msra.mxu0 0
          %1684 = vmatprep.subr.bf16.mxu0 0
          %1685 = vmatpush1.bf16.msra.mxu0 0
          %1686 = vmatprep.subr.bf16.mxu0 0
          %1687 = vmatpush1.bf16.msra.mxu0 0
          %1688 = vmatprep.subr.bf16.mxu0 0
          %1689 = vmatpush1.bf16.msra.mxu0 0
          %1690 = vmatprep.subr.bf16.mxu0 0
          %1691 = vmatpush1.bf16.msra.mxu0 0
          %1692 = vmatprep.subr.bf16.mxu0 0
          %1693 = vmatpush1.bf16.msra.mxu0 0
          %1694 = vmatprep.subr.bf16.mxu0 0
          %1695 = vmatpush1.bf16.msra.mxu0 0
          %1696 = vmatprep.subr.bf16.mxu0 0
          %1697 = vmatpush1.bf16.msra.mxu0 0
          %1698 = vmatprep.mubr.bf16.mxu0 0
          %1699 = vmatmul.mubr.bf16.gmra.mrb[0].mxu0 %v1430
          %v1700 = vpop.f32.mrb[0].mxu0
          %v1701 = vadd.f32 0.0, %v1700
          %v1702 = vpop.f32.mrb[0].mxu0
          %v1703 = vadd.f32 0.0, %v1702
          %v1704 = vpop.f32.mrb[0].mxu0
          %v1705 = vadd.f32 0.0, %v1704
          %v1706 = vpop.f32.mrb[0].mxu0
          %v1707 = vadd.f32 0.0, %v1706
          %1708 = vdwg.mxu0
          %v1709 = vadd.f32 %v1422, %v1658
          %v1710 = vadd.f32 %v1423, %v1660
          %v1711 = vadd.f32 %v1424, %v1701
          %v1712 = vadd.f32 %v1425, %v1703
          %v1713 = vadd.f32 %v1426, %v1662
          %v1714 = vadd.f32 %v1427, %v1664
          %v1715 = vadd.f32 %v1428, %v1705
          %v1716 = vadd.f32 %v1429, %v1707
          %v1717 = vxor.u32 %v1709, 2147483648
          %v1718 = vxor.u32 %v1710, 2147483648
          %v1719 = vxor.u32 %v1711, 2147483648
          %v1720 = vxor.u32 %v1713, 2147483648
          %v1721 = vxor.u32 %v1714, 2147483648
          %v1722 = vxor.u32 %v1715, 2147483648
          %v1723 = vmul.f32 %v1717, 1.442695
          %v1724 = vpow.pop %v1723
          %v1725 = vmul.f32 %v1718, 1.442695
          %v1726 = vpow.pop %v1725
          %v1727 = vmul.f32 %v1719, 1.442695
          %v1728 = vpow.pop %v1727
          %v1729 = vmul.f32 %v1720, 1.442695
          %v1730 = vpow.pop %v1729
          %v1731 = vmul.f32 %v1721, 1.442695
          %v1732 = vpow.pop %v1731
          %v1733 = vmul.f32 %v1722, 1.442695
          %v1734 = vpow.pop %v1733
          %v1735 = vadd.f32 %v1724, 1.0
          %v1736 = vadd.f32 %v1726, 1.0
          %v1737 = vadd.f32 %v1728, 1.0
          %v1738 = vadd.f32 %v1730, 1.0
          %v1739 = vadd.f32 %v1732, 1.0
          %v1740 = vadd.f32 %v1734, 1.0
          %v1741 = vrcp.pop %v1735
          %v1742 = vmul.f32 1.0, %v1741
          %v1743 = vrcp.pop %v1736
          %v1744 = vmul.f32 1.0, %v1743
          %v1745 = vrcp.pop %v1737
          %v1746 = vmul.f32 1.0, %v1745
          %v1747 = vrcp.pop %v1738
          %v1748 = vmul.f32 1.0, %v1747
          %v1749 = vrcp.pop %v1739
          %v1750 = vmul.f32 1.0, %v1749
          %v1751 = vrcp.pop %v1740
          %v1752 = vmul.f32 1.0, %v1751
          %v1753 = vtanh.pop %v1712
          %v1754 = vtanh.pop %v1716
          %v1755 = vld [vmem:[#allocation4] sm:$0xff]
          %v1756 = vld [vmem:[#allocation4 + $0x8] sm:$0xff]
          %v1757 = vmul.f32 %v1744, %v1755
          %v1758 = vmul.f32 %v1750, %v1756
          %v1759 = vmul.f32 %v1742, %v1753
          %v1760 = vmul.f32 %v1748, %v1754
          %v1761 = vadd.f32 %v1757, %v1759
          %v1762 = vadd.f32 %v1758, %v1760
          %v1763 = vtanh.pop %v1761
          %v1764 = vtanh.pop %v1762
          %v1765 = vmul.f32 %v1746, %v1763
          %v1766 = vmul.f32 %v1752, %v1764
          %v1767 = vpack.c.bf16 %v1766, %v1765
          %s1768 = sadd.s32 %s748, 1
          %p1769 = scmp.lt.s32.totalorder %s1768, 9
          %s1770 = scalar_select %p1769, 1, 0
          %v1771 = vstv %s1770
          %vm1772 = vcmp.eq.s32.totalorder %v1771, 1
          %v1773 = vsel %vm1772, %v1761, %v1755
          %v1774 = vsel %vm1772, %v1762, %v1756
          %1775 = vst [vmem:[#allocation4] sm:$0xff] %v1773
          %1776 = vst [vmem:[#allocation4 + $0x8] sm:$0xff] %v1774
          %v1777 = vld [vmem:[#allocation3] sm:$0xff]
          %v1778 = vsel %vm1772, %v1767, %v1777
          %1779 = vst [vmem:[#allocation3] sm:$0xff] %v1778
          %v1780 = vld [vmem:[%s272 + $0x8] sm:$0xf]
          %v1781 = vld [vmem:[%s272 + $0xc] sm:$0xf]
          %v1782 = vld [vmem:[#allocation8] sm:$0xff]
          %v1783 = vld [vmem:[#allocation8 + $0x8] sm:$0xff]
          %v1784 = vld [vmem:[#allocation8 + $0x10] sm:$0xff]
          %v1785 = vld [vmem:[#allocation8 + $0x18] sm:$0xff]
          %v1786 = vld [vmem:[#allocation8 + $0x20] sm:$0xff]
          %v1787 = vld [vmem:[#allocation8 + $0x28] sm:$0xff]
          %v1788 = vld [vmem:[#allocation8 + $0x30] sm:$0xff]
          %v1789 = vld [vmem:[#allocation8 + $0x38] sm:$0xff]
          %v1790 = vld [vmem:[#allocation8 + $0x40] sm:$0xff]
          %v1791 = vld [vmem:[#allocation8 + $0x48] sm:$0xff]
          %v1792 = vld [vmem:[#allocation8 + $0x50] sm:$0xff]
          %v1793 = vld [vmem:[#allocation8 + $0x58] sm:$0xff]
          %v1794 = vld [vmem:[#allocation8 + $0x60] sm:$0xff]
          %v1795 = vld [vmem:[#allocation8 + $0x68] sm:$0xff]
          %v1796 = vld [vmem:[#allocation8 + $0x70] sm:$0xff]
          %v1797 = vld [vmem:[#allocation8 + $0x78] sm:$0xff]
          %v1798 = vld [vmem:[#allocation8 + $0x80] sm:$0xff]
          %v1799 = vld [vmem:[#allocation8 + $0x88] sm:$0xff]
          %v1800 = vld [vmem:[#allocation8 + $0x90] sm:$0xff]
          %v1801 = vld [vmem:[#allocation8 + $0x98] sm:$0xff]
          %v1802 = vld [vmem:[#allocation8 + $0xa0] sm:$0xff]
          %v1803 = vld [vmem:[#allocation8 + $0xa8] sm:$0xff]
          %v1804 = vld [vmem:[#allocation8 + $0xb0] sm:$0xff]
          %v1805 = vld [vmem:[#allocation8 + $0xb8] sm:$0xff]
          %v1806 = vld [vmem:[#allocation8 + $0xc0] sm:$0xff]
          %v1807 = vld [vmem:[#allocation8 + $0xc8] sm:$0xff]
          %v1808 = vld [vmem:[#allocation8 + $0xd0] sm:$0xff]
          %v1809 = vld [vmem:[#allocation8 + $0xd8] sm:$0xff]
          %v1810 = vld [vmem:[#allocation8 + $0xe0] sm:$0xff]
          %v1811 = vld [vmem:[#allocation8 + $0xe8] sm:$0xff]
          %v1812 = vld [vmem:[#allocation8 + $0xf0] sm:$0xff]
          %v1813 = vld [vmem:[#allocation8 + $0xf8] sm:$0xff]
          %v1814 = vld [vmem:[%s3] sm:$0xf]
          %v1816 = vlaneseq
          %v1817 = vshrl.u32 %v1816, 7
          %v1818 = vsub.s32 0, %v1817
          %v1819 = vrot.slane %v1814, %v1818
          %v1820 = vlaneseq
          %v1821 = vshrl.u32 %v1820, 7
          %v1822 = vsub.s32 1, %v1821
          %v1823 = vrot.slane %v1814, %v1822
          %v1824 = vlaneseq
          %v1825 = vshrl.u32 %v1824, 7
          %v1826 = vsub.s32 2, %v1825
          %v1827 = vrot.slane %v1814, %v1826
          %v1828 = vlaneseq
          %v1829 = vshrl.u32 %v1828, 7
          %v1830 = vsub.s32 3, %v1829
          %v1831 = vrot.slane %v1814, %v1830
          %v1838 = vunpack.c.l.b16 %v1780
          %v1839 = vunpack.c.l.b16 %v1781
          %v1840 = vpack.c.b16 %v1839, %v1838
          %v1874 = vunpack.c.l.b16 %v1782
          %v1875 = vunpack.c.h.b16 %v1782
          %v1876 = vunpack.c.l.b16 %v1783
          %v1877 = vunpack.c.h.b16 %v1783
          %v1878 = vunpack.c.l.b16 %v1784
          %v1879 = vunpack.c.h.b16 %v1784
          %v1880 = vunpack.c.l.b16 %v1785
          %v1881 = vunpack.c.h.b16 %v1785
          %v1882 = vunpack.c.l.b16 %v1786
          %v1883 = vunpack.c.h.b16 %v1786
          %v1884 = vunpack.c.l.b16 %v1787
          %v1885 = vunpack.c.h.b16 %v1787
          %v1886 = vunpack.c.l.b16 %v1788
          %v1887 = vunpack.c.h.b16 %v1788
          %v1888 = vunpack.c.l.b16 %v1789
          %v1889 = vunpack.c.h.b16 %v1789
          %v1890 = vunpack.c.l.b16 %v1790
          %v1891 = vunpack.c.h.b16 %v1790
          %v1892 = vunpack.c.l.b16 %v1791
          %v1893 = vunpack.c.h.b16 %v1791
          %v1894 = vunpack.c.l.b16 %v1792
          %v1895 = vunpack.c.h.b16 %v1792
          %v1896 = vunpack.c.l.b16 %v1793
          %v1897 = vunpack.c.h.b16 %v1793
          %v1898 = vunpack.c.l.b16 %v1794
          %v1899 = vunpack.c.h.b16 %v1794
          %v1900 = vunpack.c.l.b16 %v1795
          %v1901 = vunpack.c.h.b16 %v1795
          %v1902 = vunpack.c.l.b16 %v1796
          %v1903 = vunpack.c.h.b16 %v1796
          %v1904 = vunpack.c.l.b16 %v1797
          %v1905 = vunpack.c.h.b16 %v1797
          %v1906 = vunpack.c.l.b16 %v1798
          %v1907 = vunpack.c.h.b16 %v1798
          %v1908 = vunpack.c.l.b16 %v1799
          %v1909 = vunpack.c.h.b16 %v1799
          %v1910 = vunpack.c.l.b16 %v1800
          %v1911 = vunpack.c.h.b16 %v1800
          %v1912 = vunpack.c.l.b16 %v1801
          %v1913 = vunpack.c.h.b16 %v1801
          %v1914 = vunpack.c.l.b16 %v1802
          %v1915 = vunpack.c.h.b16 %v1802
          %v1916 = vunpack.c.l.b16 %v1803
          %v1917 = vunpack.c.h.b16 %v1803
          %v1918 = vunpack.c.l.b16 %v1804
          %v1919 = vunpack.c.h.b16 %v1804
          %v1920 = vunpack.c.l.b16 %v1805
          %v1921 = vunpack.c.h.b16 %v1805
          %v1922 = vunpack.c.l.b16 %v1806
          %v1923 = vunpack.c.h.b16 %v1806
          %v1924 = vunpack.c.l.b16 %v1807
          %v1925 = vunpack.c.h.b16 %v1807
          %v1926 = vunpack.c.l.b16 %v1808
          %v1927 = vunpack.c.h.b16 %v1808
          %v1928 = vunpack.c.l.b16 %v1809
          %v1929 = vunpack.c.h.b16 %v1809
          %v1930 = vunpack.c.l.b16 %v1810
          %v1931 = vunpack.c.h.b16 %v1810
          %v1932 = vunpack.c.l.b16 %v1811
          %v1933 = vunpack.c.h.b16 %v1811
          %v1934 = vunpack.c.l.b16 %v1812
          %v1935 = vunpack.c.h.b16 %v1812
          %v1936 = vunpack.c.l.b16 %v1813
          %v1937 = vunpack.c.h.b16 %v1813
          %v1938 = vpack.c.b16 %v1878, %v1874
          %v1939 = vpack.c.b16 %v1879, %v1875
          %v1940 = vpack.c.b16 %v1880, %v1876
          %v1941 = vpack.c.b16 %v1881, %v1877
          %v1942 = vpack.c.b16 %v1886, %v1882
          %v1943 = vpack.c.b16 %v1887, %v1883
          %v1944 = vpack.c.b16 %v1888, %v1884
          %v1945 = vpack.c.b16 %v1889, %v1885
          %v1946 = vpack.c.b16 %v1894, %v1890
          %v1947 = vpack.c.b16 %v1895, %v1891
          %v1948 = vpack.c.b16 %v1896, %v1892
          %v1949 = vpack.c.b16 %v1897, %v1893
          %v1950 = vpack.c.b16 %v1902, %v1898
          %v1951 = vpack.c.b16 %v1903, %v1899
          %v1952 = vpack.c.b16 %v1904, %v1900
          %v1953 = vpack.c.b16 %v1905, %v1901
          %v1954 = vpack.c.b16 %v1910, %v1906
          %v1955 = vpack.c.b16 %v1911, %v1907
          %v1956 = vpack.c.b16 %v1912, %v1908
          %v1957 = vpack.c.b16 %v1913, %v1909
          %v1958 = vpack.c.b16 %v1918, %v1914
          %v1959 = vpack.c.b16 %v1919, %v1915
          %v1960 = vpack.c.b16 %v1920, %v1916
          %v1961 = vpack.c.b16 %v1921, %v1917
          %v1962 = vpack.c.b16 %v1926, %v1922
          %v1963 = vpack.c.b16 %v1927, %v1923
          %v1964 = vpack.c.b16 %v1928, %v1924
          %v1965 = vpack.c.b16 %v1929, %v1925
          %v1966 = vpack.c.b16 %v1934, %v1930
          %v1967 = vpack.c.b16 %v1935, %v1931
          %v1968 = vpack.c.b16 %v1936, %v1932
          %v1969 = vpack.c.b16 %v1937, %v1933
          %2002 = vmatprep.subr.bf16.mxu0 %v1939
          %2003 = vmatpush1.bf16.msra.mxu0 %v1938
          %2004 = vmatprep.subr.bf16.mxu0 %v1943
          %2005 = vmatpush1.bf16.msra.mxu0 %v1942
          %2006 = vmatprep.subr.bf16.mxu0 %v1947
          %2007 = vmatpush1.bf16.msra.mxu0 %v1946
          %2008 = vmatprep.subr.bf16.mxu0 %v1951
          %2009 = vmatpush1.bf16.msra.mxu0 %v1950
          %2010 = vmatprep.subr.bf16.mxu0 %v1955
          %2011 = vmatpush1.bf16.msra.mxu0 %v1954
          %2012 = vmatprep.subr.bf16.mxu0 %v1959
          %2013 = vmatpush1.bf16.msra.mxu0 %v1958
          %2014 = vmatprep.subr.bf16.mxu0 %v1963
          %2015 = vmatpush1.bf16.msra.mxu0 %v1962
          %2016 = vmatprep.subr.bf16.mxu0 %v1967
          %2017 = vmatpush1.bf16.msra.mxu0 %v1966
          %2018 = vmatprep.subr.bf16.mxu0 0
          %2019 = vmatpush1.bf16.msra.mxu0 0
          %2020 = vmatprep.subr.bf16.mxu0 0
          %2021 = vmatpush1.bf16.msra.mxu0 0
          %2022 = vmatprep.subr.bf16.mxu0 0
          %2023 = vmatpush1.bf16.msra.mxu0 0
          %2024 = vmatprep.subr.bf16.mxu0 0
          %2025 = vmatpush1.bf16.msra.mxu0 0
          %2026 = vmatprep.subr.bf16.mxu0 0
          %2027 = vmatpush1.bf16.msra.mxu0 0
          %2028 = vmatprep.subr.bf16.mxu0 0
          %2029 = vmatpush1.bf16.msra.mxu0 0
          %2030 = vmatprep.subr.bf16.mxu0 0
          %2031 = vmatpush1.bf16.msra.mxu0 0
          %2032 = vmatprep.subr.bf16.mxu0 0
          %2033 = vmatpush1.bf16.msra.mxu0 0
          %2034 = vmatprep.mubr.bf16.mxu0 0
          %2035 = vmatmul.mubr.bf16.gmra.mrb[0].mxu0 %v1840
          %v2036 = vpop.f32.mrb[0].mxu0
          %v2037 = vadd.f32 %v1819, %v2036
          %v2038 = vpop.f32.mrb[0].mxu0
          %v2039 = vadd.f32 %v1823, %v2038
          %v2040 = vpop.f32.mrb[0].mxu0
          %v2041 = vadd.f32 %v1819, %v2040
          %v2042 = vpop.f32.mrb[0].mxu0
          %v2043 = vadd.f32 %v1823, %v2042
          %2044 = vdwg.mxu0
          %2045 = vmatprep.subr.bf16.mxu0 %v1941
          %2046 = vmatpush1.bf16.msra.mxu0 %v1940
          %2047 = vmatprep.subr.bf16.mxu0 %v1945
          %2048 = vmatpush1.bf16.msra.mxu0 %v1944
          %2049 = vmatprep.subr.bf16.mxu0 %v1949
          %2050 = vmatpush1.bf16.msra.mxu0 %v1948
          %2051 = vmatprep.subr.bf16.mxu0 %v1953
          %2052 = vmatpush1.bf16.msra.mxu0 %v1952
          %2053 = vmatprep.subr.bf16.mxu0 %v1957
          %2054 = vmatpush1.bf16.msra.mxu0 %v1956
          %2055 = vmatprep.subr.bf16.mxu0 %v1961
          %2056 = vmatpush1.bf16.msra.mxu0 %v1960
          %2057 = vmatprep.subr.bf16.mxu0 %v1965
          %2058 = vmatpush1.bf16.msra.mxu0 %v1964
          %2059 = vmatprep.subr.bf16.mxu0 %v1969
          %2060 = vmatpush1.bf16.msra.mxu0 %v1968
          %2061 = vmatprep.subr.bf16.mxu0 0
          %2062 = vmatpush1.bf16.msra.mxu0 0
          %2063 = vmatprep.subr.bf16.mxu0 0
          %2064 = vmatpush1.bf16.msra.mxu0 0
          %2065 = vmatprep.subr.bf16.mxu0 0
          %2066 = vmatpush1.bf16.msra.mxu0 0
          %2067 = vmatprep.subr.bf16.mxu0 0
          %2068 = vmatpush1.bf16.msra.mxu0 0
          %2069 = vmatprep.subr.bf16.mxu0 0
          %2070 = vmatpush1.bf16.msra.mxu0 0
          %2071 = vmatprep.subr.bf16.mxu0 0
          %2072 = vmatpush1.bf16.msra.mxu0 0
          %2073 = vmatprep.subr.bf16.mxu0 0
          %2074 = vmatpush1.bf16.msra.mxu0 0
          %2075 = vmatprep.subr.bf16.mxu0 0
          %2076 = vmatpush1.bf16.msra.mxu0 0
          %2077 = vmatprep.mubr.bf16.mxu0 0
          %2078 = vmatmul.mubr.bf16.gmra.mrb[0].mxu0 %v1840
          %v2079 = vpop.f32.mrb[0].mxu0
          %v2080 = vadd.f32 %v1827, %v2079
          %v2081 = vpop.f32.mrb[0].mxu0
          %v2082 = vadd.f32 %v1831, %v2081
          %v2083 = vpop.f32.mrb[0].mxu0
          %v2084 = vadd.f32 %v1827, %v2083
          %v2085 = vpop.f32.mrb[0].mxu0
          %v2086 = vadd.f32 %v1831, %v2085
          %2087 = vdwg.mxu0
          %2088 = vst [vmem:[#allocation2 + $0x40] sm:$0xff] %v2037
          %2089 = vst [vmem:[#allocation2 + $0x48] sm:$0xff] %v2039
          %2090 = vst [vmem:[#allocation2 + $0x50] sm:$0xff] %v2080
          %2091 = vst [vmem:[#allocation2 + $0x58] sm:$0xff] %v2082
          %2092 = vst [vmem:[#allocation2 + $0x60] sm:$0xff] %v2041
          %2093 = vst [vmem:[#allocation2 + $0x68] sm:$0xff] %v2043
          %2094 = vst [vmem:[#allocation2 + $0x70] sm:$0xff] %v2084
          %2095 = vst [vmem:[#allocation2 + $0x78] sm:$0xff] %v2086
          %v2096 = vld [vmem:[#allocation2 + $0x80] sm:$0xff]
          %v2097 = vld [vmem:[#allocation2 + $0x88] sm:$0xff]
          %v2098 = vld [vmem:[#allocation2 + $0x90] sm:$0xff]
          %v2099 = vld [vmem:[#allocation2 + $0x98] sm:$0xff]
          %v2100 = vld [vmem:[#allocation2 + $0xa0] sm:$0xff]
          %v2101 = vld [vmem:[#allocation2 + $0xa8] sm:$0xff]
          %v2102 = vld [vmem:[#allocation2 + $0xb0] sm:$0xff]
          %v2103 = vld [vmem:[#allocation2 + $0xb8] sm:$0xff]
          %v2104 = vld [vmem:[#allocation3] sm:$0xff]
          %v2105 = vld [vmem:[#allocation10] sm:$0xff]
          %v2106 = vld [vmem:[#allocation10 + $0x8] sm:$0xff]
          %v2107 = vld [vmem:[#allocation10 + $0x10] sm:$0xff]
          %v2108 = vld [vmem:[#allocation10 + $0x18] sm:$0xff]
          %v2109 = vld [vmem:[#allocation10 + $0x20] sm:$0xff]
          %v2110 = vld [vmem:[#allocation10 + $0x28] sm:$0xff]
          %v2111 = vld [vmem:[#allocation10 + $0x30] sm:$0xff]
          %v2112 = vld [vmem:[#allocation10 + $0x38] sm:$0xff]
          %v2113 = vld [vmem:[#allocation10 + $0x40] sm:$0xff]
          %v2114 = vld [vmem:[#allocation10 + $0x48] sm:$0xff]
          %v2115 = vld [vmem:[#allocation10 + $0x50] sm:$0xff]
          %v2116 = vld [vmem:[#allocation10 + $0x58] sm:$0xff]
          %v2117 = vld [vmem:[#allocation10 + $0x60] sm:$0xff]
          %v2118 = vld [vmem:[#allocation10 + $0x68] sm:$0xff]
          %v2119 = vld [vmem:[#allocation10 + $0x70] sm:$0xff]
          %v2120 = vld [vmem:[#allocation10 + $0x78] sm:$0xff]
          %v2121 = vld [vmem:[#allocation10 + $0x80] sm:$0xff]
          %v2122 = vld [vmem:[#allocation10 + $0x88] sm:$0xff]
          %v2123 = vld [vmem:[#allocation10 + $0x90] sm:$0xff]
          %v2124 = vld [vmem:[#allocation10 + $0x98] sm:$0xff]
          %v2125 = vld [vmem:[#allocation10 + $0xa0] sm:$0xff]
          %v2126 = vld [vmem:[#allocation10 + $0xa8] sm:$0xff]
          %v2127 = vld [vmem:[#allocation10 + $0xb0] sm:$0xff]
          %v2128 = vld [vmem:[#allocation10 + $0xb8] sm:$0xff]
          %v2129 = vld [vmem:[#allocation10 + $0xc0] sm:$0xff]
          %v2130 = vld [vmem:[#allocation10 + $0xc8] sm:$0xff]
          %v2131 = vld [vmem:[#allocation10 + $0xd0] sm:$0xff]
          %v2132 = vld [vmem:[#allocation10 + $0xd8] sm:$0xff]
          %v2133 = vld [vmem:[#allocation10 + $0xe0] sm:$0xff]
          %v2134 = vld [vmem:[#allocation10 + $0xe8] sm:$0xff]
          %v2135 = vld [vmem:[#allocation10 + $0xf0] sm:$0xff]
          %v2136 = vld [vmem:[#allocation10 + $0xf8] sm:$0xff]
          %v2169 = vunpack.c.l.b16 %v2105
          %v2170 = vunpack.c.h.b16 %v2105
          %v2171 = vunpack.c.l.b16 %v2106
          %v2172 = vunpack.c.h.b16 %v2106
          %v2173 = vunpack.c.l.b16 %v2107
          %v2174 = vunpack.c.h.b16 %v2107
          %v2175 = vunpack.c.l.b16 %v2108
          %v2176 = vunpack.c.h.b16 %v2108
          %v2177 = vunpack.c.l.b16 %v2109
          %v2178 = vunpack.c.h.b16 %v2109
          %v2179 = vunpack.c.l.b16 %v2110
          %v2180 = vunpack.c.h.b16 %v2110
          %v2181 = vunpack.c.l.b16 %v2111
          %v2182 = vunpack.c.h.b16 %v2111
          %v2183 = vunpack.c.l.b16 %v2112
          %v2184 = vunpack.c.h.b16 %v2112
          %v2185 = vunpack.c.l.b16 %v2113
          %v2186 = vunpack.c.h.b16 %v2113
          %v2187 = vunpack.c.l.b16 %v2114
          %v2188 = vunpack.c.h.b16 %v2114
          %v2189 = vunpack.c.l.b16 %v2115
          %v2190 = vunpack.c.h.b16 %v2115
          %v2191 = vunpack.c.l.b16 %v2116
          %v2192 = vunpack.c.h.b16 %v2116
          %v2193 = vunpack.c.l.b16 %v2117
          %v2194 = vunpack.c.h.b16 %v2117
          %v2195 = vunpack.c.l.b16 %v2118
          %v2196 = vunpack.c.h.b16 %v2118
          %v2197 = vunpack.c.l.b16 %v2119
          %v2198 = vunpack.c.h.b16 %v2119
          %v2199 = vunpack.c.l.b16 %v2120
          %v2200 = vunpack.c.h.b16 %v2120
          %v2201 = vunpack.c.l.b16 %v2121
          %v2202 = vunpack.c.h.b16 %v2121
          %v2203 = vunpack.c.l.b16 %v2122
          %v2204 = vunpack.c.h.b16 %v2122
          %v2205 = vunpack.c.l.b16 %v2123
          %v2206 = vunpack.c.h.b16 %v2123
          %v2207 = vunpack.c.l.b16 %v2124
          %v2208 = vunpack.c.h.b16 %v2124
          %v2209 = vunpack.c.l.b16 %v2125
          %v2210 = vunpack.c.h.b16 %v2125
          %v2211 = vunpack.c.l.b16 %v2126
          %v2212 = vunpack.c.h.b16 %v2126
          %v2213 = vunpack.c.l.b16 %v2127
          %v2214 = vunpack.c.h.b16 %v2127
          %v2215 = vunpack.c.l.b16 %v2128
          %v2216 = vunpack.c.h.b16 %v2128
          %v2217 = vunpack.c.l.b16 %v2129
          %v2218 = vunpack.c.h.b16 %v2129
          %v2219 = vunpack.c.l.b16 %v2130
          %v2220 = vunpack.c.h.b16 %v2130
          %v2221 = vunpack.c.l.b16 %v2131
          %v2222 = vunpack.c.h.b16 %v2131
          %v2223 = vunpack.c.l.b16 %v2132
          %v2224 = vunpack.c.h.b16 %v2132
          %v2225 = vunpack.c.l.b16 %v2133
          %v2226 = vunpack.c.h.b16 %v2133
          %v2227 = vunpack.c.l.b16 %v2134
          %v2228 = vunpack.c.h.b16 %v2134
          %v2229 = vunpack.c.l.b16 %v2135
          %v2230 = vunpack.c.h.b16 %v2135
          %v2231 = vunpack.c.l.b16 %v2136
          %v2232 = vunpack.c.h.b16 %v2136
          %v2233 = vpack.c.b16 %v2173, %v2169
          %v2234 = vpack.c.b16 %v2174, %v2170
          %v2235 = vpack.c.b16 %v2175, %v2171
          %v2236 = vpack.c.b16 %v2176, %v2172
          %v2237 = vpack.c.b16 %v2181, %v2177
          %v2238 = vpack.c.b16 %v2182, %v2178
          %v2239 = vpack.c.b16 %v2183, %v2179
          %v2240 = vpack.c.b16 %v2184, %v2180
          %v2241 = vpack.c.b16 %v2189, %v2185
          %v2242 = vpack.c.b16 %v2190, %v2186
          %v2243 = vpack.c.b16 %v2191, %v2187
          %v2244 = vpack.c.b16 %v2192, %v2188
          %v2245 = vpack.c.b16 %v2197, %v2193
          %v2246 = vpack.c.b16 %v2198, %v2194
          %v2247 = vpack.c.b16 %v2199, %v2195
          %v2248 = vpack.c.b16 %v2200, %v2196
          %v2249 = vpack.c.b16 %v2205, %v2201
          %v2250 = vpack.c.b16 %v2206, %v2202
          %v2251 = vpack.c.b16 %v2207, %v2203
          %v2252 = vpack.c.b16 %v2208, %v2204
          %v2253 = vpack.c.b16 %v2213, %v2209
          %v2254 = vpack.c.b16 %v2214, %v2210
          %v2255 = vpack.c.b16 %v2215, %v2211
          %v2256 = vpack.c.b16 %v2216, %v2212
          %v2257 = vpack.c.b16 %v2221, %v2217
          %v2258 = vpack.c.b16 %v2222, %v2218
          %v2259 = vpack.c.b16 %v2223, %v2219
          %v2260 = vpack.c.b16 %v2224, %v2220
          %v2261 = vpack.c.b16 %v2229, %v2225
          %v2262 = vpack.c.b16 %v2230, %v2226
          %v2263 = vpack.c.b16 %v2231, %v2227
          %v2264 = vpack.c.b16 %v2232, %v2228
          %2297 = vmatprep.subr.bf16.mxu0 %v2234
          %2298 = vmatpush1.bf16.msra.mxu0 %v2233
          %2299 = vmatprep.subr.bf16.mxu0 %v2238
          %2300 = vmatpush1.bf16.msra.mxu0 %v2237
          %2301 = vmatprep.subr.bf16.mxu0 %v2242
          %2302 = vmatpush1.bf16.msra.mxu0 %v2241
          %2303 = vmatprep.subr.bf16.mxu0 %v2246
          %2304 = vmatpush1.bf16.msra.mxu0 %v2245
          %2305 = vmatprep.subr.bf16.mxu0 %v2250
          %2306 = vmatpush1.bf16.msra.mxu0 %v2249
          %2307 = vmatprep.subr.bf16.mxu0 %v2254
          %2308 = vmatpush1.bf16.msra.mxu0 %v2253
          %2309 = vmatprep.subr.bf16.mxu0 %v2258
          %2310 = vmatpush1.bf16.msra.mxu0 %v2257
          %2311 = vmatprep.subr.bf16.mxu0 %v2262
          %2312 = vmatpush1.bf16.msra.mxu0 %v2261
          %2313 = vmatprep.subr.bf16.mxu0 0
          %2314 = vmatpush1.bf16.msra.mxu0 0
          %2315 = vmatprep.subr.bf16.mxu0 0
          %2316 = vmatpush1.bf16.msra.mxu0 0
          %2317 = vmatprep.subr.bf16.mxu0 0
          %2318 = vmatpush1.bf16.msra.mxu0 0
          %2319 = vmatprep.subr.bf16.mxu0 0
          %2320 = vmatpush1.bf16.msra.mxu0 0
          %2321 = vmatprep.subr.bf16.mxu0 0
          %2322 = vmatpush1.bf16.msra.mxu0 0
          %2323 = vmatprep.subr.bf16.mxu0 0
          %2324 = vmatpush1.bf16.msra.mxu0 0
          %2325 = vmatprep.subr.bf16.mxu0 0
          %2326 = vmatpush1.bf16.msra.mxu0 0
          %2327 = vmatprep.subr.bf16.mxu0 0
          %2328 = vmatpush1.bf16.msra.mxu0 0
          %2329 = vmatprep.mubr.bf16.mxu0 0
          %2330 = vmatmul.mubr.bf16.gmra.mrb[0].mxu0 %v2104
          %v2331 = vpop.f32.mrb[0].mxu0
          %v2332 = vadd.f32 0.0, %v2331
          %v2333 = vpop.f32.mrb[0].mxu0
          %v2334 = vadd.f32 0.0, %v2333
          %v2335 = vpop.f32.mrb[0].mxu0
          %v2336 = vadd.f32 0.0, %v2335
          %v2337 = vpop.f32.mrb[0].mxu0
          %v2338 = vadd.f32 0.0, %v2337
          %2339 = vdwg.mxu0
          %2340 = vmatprep.subr.bf16.mxu0 %v2236
          %2341 = vmatpush1.bf16.msra.mxu0 %v2235
          %2342 = vmatprep.subr.bf16.mxu0 %v2240
          %2343 = vmatpush1.bf16.msra.mxu0 %v2239
          %2344 = vmatprep.subr.bf16.mxu0 %v2244
          %2345 = vmatpush1.bf16.msra.mxu0 %v2243
          %2346 = vmatprep.subr.bf16.mxu0 %v2248
          %2347 = vmatpush1.bf16.msra.mxu0 %v2247
          %2348 = vmatprep.subr.bf16.mxu0 %v2252
          %2349 = vmatpush1.bf16.msra.mxu0 %v2251
          %2350 = vmatprep.subr.bf16.mxu0 %v2256
          %2351 = vmatpush1.bf16.msra.mxu0 %v2255
          %2352 = vmatprep.subr.bf16.mxu0 %v2260
          %2353 = vmatpush1.bf16.msra.mxu0 %v2259
          %2354 = vmatprep.subr.bf16.mxu0 %v2264
          %2355 = vmatpush1.bf16.msra.mxu0 %v2263
          %2356 = vmatprep.subr.bf16.mxu0 0
          %2357 = vmatpush1.bf16.msra.mxu0 0
          %2358 = vmatprep.subr.bf16.mxu0 0
          %2359 = vmatpush1.bf16.msra.mxu0 0
          %2360 = vmatprep.subr.bf16.mxu0 0
          %2361 = vmatpush1.bf16.msra.mxu0 0
          %2362 = vmatprep.subr.bf16.mxu0 0
          %2363 = vmatpush1.bf16.msra.mxu0 0
          %2364 = vmatprep.subr.bf16.mxu0 0
          %2365 = vmatpush1.bf16.msra.mxu0 0
          %2366 = vmatprep.subr.bf16.mxu0 0
          %2367 = vmatpush1.bf16.msra.mxu0 0
          %2368 = vmatprep.subr.bf16.mxu0 0
          %2369 = vmatpush1.bf16.msra.mxu0 0
          %2370 = vmatprep.subr.bf16.mxu0 0
          %2371 = vmatpush1.bf16.msra.mxu0 0
          %2372 = vmatprep.mubr.bf16.mxu0 0
          %2373 = vmatmul.mubr.bf16.gmra.mrb[0].mxu0 %v2104
          %v2374 = vpop.f32.mrb[0].mxu0
          %v2375 = vadd.f32 0.0, %v2374
          %v2376 = vpop.f32.mrb[0].mxu0
          %v2377 = vadd.f32 0.0, %v2376
          %v2378 = vpop.f32.mrb[0].mxu0
          %v2379 = vadd.f32 0.0, %v2378
          %v2380 = vpop.f32.mrb[0].mxu0
          %v2381 = vadd.f32 0.0, %v2380
          %2382 = vdwg.mxu0
          %v2383 = vadd.f32 %v2096, %v2332
          %v2384 = vadd.f32 %v2097, %v2334
          %v2385 = vadd.f32 %v2098, %v2375
          %v2386 = vadd.f32 %v2099, %v2377
          %v2387 = vadd.f32 %v2100, %v2336
          %v2388 = vadd.f32 %v2101, %v2338
          %v2389 = vadd.f32 %v2102, %v2379
          %v2390 = vadd.f32 %v2103, %v2381
          %v2391 = vxor.u32 %v2383, 2147483648
          %v2392 = vxor.u32 %v2384, 2147483648
          %v2393 = vxor.u32 %v2385, 2147483648
          %v2394 = vxor.u32 %v2387, 2147483648
          %v2395 = vxor.u32 %v2388, 2147483648
          %v2396 = vxor.u32 %v2389, 2147483648
          %v2397 = vmul.f32 %v2391, 1.442695
          %v2398 = vpow.pop %v2397
          %v2399 = vmul.f32 %v2392, 1.442695
          %v2400 = vpow.pop %v2399
          %v2401 = vmul.f32 %v2393, 1.442695
          %v2402 = vpow.pop %v2401
          %v2403 = vmul.f32 %v2394, 1.442695
          %v2404 = vpow.pop %v2403
          %v2405 = vmul.f32 %v2395, 1.442695
          %v2406 = vpow.pop %v2405
          %v2407 = vmul.f32 %v2396, 1.442695
          %v2408 = vpow.pop %v2407
          %v2409 = vadd.f32 %v2398, 1.0
          %v2410 = vadd.f32 %v2400, 1.0
          %v2411 = vadd.f32 %v2402, 1.0
          %v2412 = vadd.f32 %v2404, 1.0
          %v2413 = vadd.f32 %v2406, 1.0
          %v2414 = vadd.f32 %v2408, 1.0
          %v2415 = vrcp.pop %v2409
          %v2416 = vmul.f32 1.0, %v2415
          %v2417 = vrcp.pop %v2410
          %v2418 = vmul.f32 1.0, %v2417
          %v2419 = vrcp.pop %v2411
          %v2420 = vmul.f32 1.0, %v2419
          %v2421 = vrcp.pop %v2412
          %v2422 = vmul.f32 1.0, %v2421
          %v2423 = vrcp.pop %v2413
          %v2424 = vmul.f32 1.0, %v2423
          %v2425 = vrcp.pop %v2414
          %v2426 = vmul.f32 1.0, %v2425
          %v2427 = vtanh.pop %v2386
          %v2428 = vtanh.pop %v2390
          %v2429 = vld [vmem:[#allocation4] sm:$0xff]
          %v2430 = vld [vmem:[#allocation4 + $0x8] sm:$0xff]
          %v2431 = vmul.f32 %v2418, %v2429
          %v2432 = vmul.f32 %v2424, %v2430
          %v2433 = vmul.f32 %v2416, %v2427
          %v2434 = vmul.f32 %v2422, %v2428
          %v2435 = vadd.f32 %v2431, %v2433
          %v2436 = vadd.f32 %v2432, %v2434
          %v2437 = vtanh.pop %v2435
          %v2438 = vtanh.pop %v2436
          %v2439 = vmul.f32 %v2420, %v2437
          %v2440 = vmul.f32 %v2426, %v2438
          %v2441 = vpack.c.bf16 %v2440, %v2439
          %s2442 = sadd.s32 %s748, 2
          %p2443 = scmp.lt.s32.totalorder %s2442, 9
          %s2444 = scalar_select %p2443, 1, 0
          %v2445 = vstv %s2444
          %vm2446 = vcmp.eq.s32.totalorder %v2445, 1
          %v2447 = vsel %vm2446, %v2435, %v2429
          %v2448 = vsel %vm2446, %v2436, %v2430
          %2449 = vst [vmem:[#allocation4] sm:$0xff] %v2447
          %2450 = vst [vmem:[#allocation4 + $0x8] sm:$0xff] %v2448
          %v2451 = vld [vmem:[#allocation3] sm:$0xff]
          %v2452 = vsel %vm2446, %v2441, %v2451
          %2453 = vst [vmem:[#allocation3] sm:$0xff] %v2452
          %v2454 = vld [vmem:[%s272 + $0x10] sm:$0xf]
          %v2455 = vld [vmem:[%s272 + $0x14] sm:$0xf]
          %v2456 = vld [vmem:[#allocation8] sm:$0xff]
          %v2457 = vld [vmem:[#allocation8 + $0x8] sm:$0xff]
          %v2458 = vld [vmem:[#allocation8 + $0x10] sm:$0xff]
          %v2459 = vld [vmem:[#allocation8 + $0x18] sm:$0xff]
          %v2460 = vld [vmem:[#allocation8 + $0x20] sm:$0xff]
          %v2461 = vld [vmem:[#allocation8 + $0x28] sm:$0xff]
          %v2462 = vld [vmem:[#allocation8 + $0x30] sm:$0xff]
          %v2463 = vld [vmem:[#allocation8 + $0x38] sm:$0xff]
          %v2464 = vld [vmem:[#allocation8 + $0x40] sm:$0xff]
          %v2465 = vld [vmem:[#allocation8 + $0x48] sm:$0xff]
          %v2466 = vld [vmem:[#allocation8 + $0x50] sm:$0xff]
          %v2467 = vld [vmem:[#allocation8 + $0x58] sm:$0xff]
          %v2468 = vld [vmem:[#allocation8 + $0x60] sm:$0xff]
          %v2469 = vld [vmem:[#allocation8 + $0x68] sm:$0xff]
          %v2470 = vld [vmem:[#allocation8 + $0x70] sm:$0xff]
          %v2471 = vld [vmem:[#allocation8 + $0x78] sm:$0xff]
          %v2472 = vld [vmem:[#allocation8 + $0x80] sm:$0xff]
          %v2473 = vld [vmem:[#allocation8 + $0x88] sm:$0xff]
          %v2474 = vld [vmem:[#allocation8 + $0x90] sm:$0xff]
          %v2475 = vld [vmem:[#allocation8 + $0x98] sm:$0xff]
          %v2476 = vld [vmem:[#allocation8 + $0xa0] sm:$0xff]
          %v2477 = vld [vmem:[#allocation8 + $0xa8] sm:$0xff]
          %v2478 = vld [vmem:[#allocation8 + $0xb0] sm:$0xff]
          %v2479 = vld [vmem:[#allocation8 + $0xb8] sm:$0xff]
          %v2480 = vld [vmem:[#allocation8 + $0xc0] sm:$0xff]
          %v2481 = vld [vmem:[#allocation8 + $0xc8] sm:$0xff]
          %v2482 = vld [vmem:[#allocation8 + $0xd0] sm:$0xff]
          %v2483 = vld [vmem:[#allocation8 + $0xd8] sm:$0xff]
          %v2484 = vld [vmem:[#allocation8 + $0xe0] sm:$0xff]
          %v2485 = vld [vmem:[#allocation8 + $0xe8] sm:$0xff]
          %v2486 = vld [vmem:[#allocation8 + $0xf0] sm:$0xff]
          %v2487 = vld [vmem:[#allocation8 + $0xf8] sm:$0xff]
          %v2488 = vld [vmem:[%s3] sm:$0xf]
          %v2490 = vlaneseq
          %v2491 = vshrl.u32 %v2490, 7
          %v2492 = vsub.s32 0, %v2491
          %v2493 = vrot.slane %v2488, %v2492
          %v2494 = vlaneseq
          %v2495 = vshrl.u32 %v2494, 7
          %v2496 = vsub.s32 1, %v2495
          %v2497 = vrot.slane %v2488, %v2496
          %v2498 = vlaneseq
          %v2499 = vshrl.u32 %v2498, 7
          %v2500 = vsub.s32 2, %v2499
          %v2501 = vrot.slane %v2488, %v2500
          %v2502 = vlaneseq
          %v2503 = vshrl.u32 %v2502, 7
          %v2504 = vsub.s32 3, %v2503
          %v2505 = vrot.slane %v2488, %v2504
          %v2512 = vunpack.c.l.b16 %v2454
          %v2513 = vunpack.c.l.b16 %v2455
          %v2514 = vpack.c.b16 %v2513, %v2512
          %v2548 = vunpack.c.l.b16 %v2456
          %v2549 = vunpack.c.h.b16 %v2456
          %v2550 = vunpack.c.l.b16 %v2457
          %v2551 = vunpack.c.h.b16 %v2457
          %v2552 = vunpack.c.l.b16 %v2458
          %v2553 = vunpack.c.h.b16 %v2458
          %v2554 = vunpack.c.l.b16 %v2459
          %v2555 = vunpack.c.h.b16 %v2459
          %v2556 = vunpack.c.l.b16 %v2460
          %v2557 = vunpack.c.h.b16 %v2460
          %v2558 = vunpack.c.l.b16 %v2461
          %v2559 = vunpack.c.h.b16 %v2461
          %v2560 = vunpack.c.l.b16 %v2462
          %v2561 = vunpack.c.h.b16 %v2462
          %v2562 = vunpack.c.l.b16 %v2463
          %v2563 = vunpack.c.h.b16 %v2463
          %v2564 = vunpack.c.l.b16 %v2464
          %v2565 = vunpack.c.h.b16 %v2464
          %v2566 = vunpack.c.l.b16 %v2465
          %v2567 = vunpack.c.h.b16 %v2465
          %v2568 = vunpack.c.l.b16 %v2466
          %v2569 = vunpack.c.h.b16 %v2466
          %v2570 = vunpack.c.l.b16 %v2467
          %v2571 = vunpack.c.h.b16 %v2467
          %v2572 = vunpack.c.l.b16 %v2468
          %v2573 = vunpack.c.h.b16 %v2468
          %v2574 = vunpack.c.l.b16 %v2469
          %v2575 = vunpack.c.h.b16 %v2469
          %v2576 = vunpack.c.l.b16 %v2470
          %v2577 = vunpack.c.h.b16 %v2470
          %v2578 = vunpack.c.l.b16 %v2471
          %v2579 = vunpack.c.h.b16 %v2471
          %v2580 = vunpack.c.l.b16 %v2472
          %v2581 = vunpack.c.h.b16 %v2472
          %v2582 = vunpack.c.l.b16 %v2473
          %v2583 = vunpack.c.h.b16 %v2473
          %v2584 = vunpack.c.l.b16 %v2474
          %v2585 = vunpack.c.h.b16 %v2474
          %v2586 = vunpack.c.l.b16 %v2475
          %v2587 = vunpack.c.h.b16 %v2475
          %v2588 = vunpack.c.l.b16 %v2476
          %v2589 = vunpack.c.h.b16 %v2476
          %v2590 = vunpack.c.l.b16 %v2477
          %v2591 = vunpack.c.h.b16 %v2477
          %v2592 = vunpack.c.l.b16 %v2478
          %v2593 = vunpack.c.h.b16 %v2478
          %v2594 = vunpack.c.l.b16 %v2479
          %v2595 = vunpack.c.h.b16 %v2479
          %v2596 = vunpack.c.l.b16 %v2480
          %v2597 = vunpack.c.h.b16 %v2480
          %v2598 = vunpack.c.l.b16 %v2481
          %v2599 = vunpack.c.h.b16 %v2481
          %v2600 = vunpack.c.l.b16 %v2482
          %v2601 = vunpack.c.h.b16 %v2482
          %v2602 = vunpack.c.l.b16 %v2483
          %v2603 = vunpack.c.h.b16 %v2483
          %v2604 = vunpack.c.l.b16 %v2484
          %v2605 = vunpack.c.h.b16 %v2484
          %v2606 = vunpack.c.l.b16 %v2485
          %v2607 = vunpack.c.h.b16 %v2485
          %v2608 = vunpack.c.l.b16 %v2486
          %v2609 = vunpack.c.h.b16 %v2486
          %v2610 = vunpack.c.l.b16 %v2487
          %v2611 = vunpack.c.h.b16 %v2487
          %v2612 = vpack.c.b16 %v2552, %v2548
          %v2613 = vpack.c.b16 %v2553, %v2549
          %v2614 = vpack.c.b16 %v2554, %v2550
          %v2615 = vpack.c.b16 %v2555, %v2551
          %v2616 = vpack.c.b16 %v2560, %v2556
          %v2617 = vpack.c.b16 %v2561, %v2557
          %v2618 = vpack.c.b16 %v2562, %v2558
          %v2619 = vpack.c.b16 %v2563, %v2559
          %v2620 = vpack.c.b16 %v2568, %v2564
          %v2621 = vpack.c.b16 %v2569, %v2565
          %v2622 = vpack.c.b16 %v2570, %v2566
          %v2623 = vpack.c.b16 %v2571, %v2567
          %v2624 = vpack.c.b16 %v2576, %v2572
          %v2625 = vpack.c.b16 %v2577, %v2573
          %v2626 = vpack.c.b16 %v2578, %v2574
          %v2627 = vpack.c.b16 %v2579, %v2575
          %v2628 = vpack.c.b16 %v2584, %v2580
          %v2629 = vpack.c.b16 %v2585, %v2581
          %v2630 = vpack.c.b16 %v2586, %v2582
          %v2631 = vpack.c.b16 %v2587, %v2583
          %v2632 = vpack.c.b16 %v2592, %v2588
          %v2633 = vpack.c.b16 %v2593, %v2589
          %v2634 = vpack.c.b16 %v2594, %v2590
          %v2635 = vpack.c.b16 %v2595, %v2591
          %v2636 = vpack.c.b16 %v2600, %v2596
          %v2637 = vpack.c.b16 %v2601, %v2597
          %v2638 = vpack.c.b16 %v2602, %v2598
          %v2639 = vpack.c.b16 %v2603, %v2599
          %v2640 = vpack.c.b16 %v2608, %v2604
          %v2641 = vpack.c.b16 %v2609, %v2605
          %v2642 = vpack.c.b16 %v2610, %v2606
          %v2643 = vpack.c.b16 %v2611, %v2607
          %2676 = vmatprep.subr.bf16.mxu0 %v2613
          %2677 = vmatpush1.bf16.msra.mxu0 %v2612
          %2678 = vmatprep.subr.bf16.mxu0 %v2617
          %2679 = vmatpush1.bf16.msra.mxu0 %v2616
          %2680 = vmatprep.subr.bf16.mxu0 %v2621
          %2681 = vmatpush1.bf16.msra.mxu0 %v2620
          %2682 = vmatprep.subr.bf16.mxu0 %v2625
          %2683 = vmatpush1.bf16.msra.mxu0 %v2624
          %2684 = vmatprep.subr.bf16.mxu0 %v2629
          %2685 = vmatpush1.bf16.msra.mxu0 %v2628
          %2686 = vmatprep.subr.bf16.mxu0 %v2633
          %2687 = vmatpush1.bf16.msra.mxu0 %v2632
          %2688 = vmatprep.subr.bf16.mxu0 %v2637
          %2689 = vmatpush1.bf16.msra.mxu0 %v2636
          %2690 = vmatprep.subr.bf16.mxu0 %v2641
          %2691 = vmatpush1.bf16.msra.mxu0 %v2640
          %2692 = vmatprep.subr.bf16.mxu0 0
          %2693 = vmatpush1.bf16.msra.mxu0 0
          %2694 = vmatprep.subr.bf16.mxu0 0
          %2695 = vmatpush1.bf16.msra.mxu0 0
          %2696 = vmatprep.subr.bf16.mxu0 0
          %2697 = vmatpush1.bf16.msra.mxu0 0
          %2698 = vmatprep.subr.bf16.mxu0 0
          %2699 = vmatpush1.bf16.msra.mxu0 0
          %2700 = vmatprep.subr.bf16.mxu0 0
          %2701 = vmatpush1.bf16.msra.mxu0 0
          %2702 = vmatprep.subr.bf16.mxu0 0
          %2703 = vmatpush1.bf16.msra.mxu0 0
          %2704 = vmatprep.subr.bf16.mxu0 0
          %2705 = vmatpush1.bf16.msra.mxu0 0
          %2706 = vmatprep.subr.bf16.mxu0 0
          %2707 = vmatpush1.bf16.msra.mxu0 0
          %2708 = vmatprep.mubr.bf16.mxu0 0
          %2709 = vmatmul.mubr.bf16.gmra.mrb[0].mxu0 %v2514
          %v2710 = vpop.f32.mrb[0].mxu0
          %v2711 = vadd.f32 %v2493, %v2710
          %v2712 = vpop.f32.mrb[0].mxu0
          %v2713 = vadd.f32 %v2497, %v2712
          %v2714 = vpop.f32.mrb[0].mxu0
          %v2715 = vadd.f32 %v2493, %v2714
          %v2716 = vpop.f32.mrb[0].mxu0
          %v2717 = vadd.f32 %v2497, %v2716
          %2718 = vdwg.mxu0
          %2719 = vmatprep.subr.bf16.mxu0 %v2615
          %2720 = vmatpush1.bf16.msra.mxu0 %v2614
          %2721 = vmatprep.subr.bf16.mxu0 %v2619
          %2722 = vmatpush1.bf16.msra.mxu0 %v2618
          %2723 = vmatprep.subr.bf16.mxu0 %v2623
          %2724 = vmatpush1.bf16.msra.mxu0 %v2622
          %2725 = vmatprep.subr.bf16.mxu0 %v2627
          %2726 = vmatpush1.bf16.msra.mxu0 %v2626
          %2727 = vmatprep.subr.bf16.mxu0 %v2631
          %2728 = vmatpush1.bf16.msra.mxu0 %v2630
          %2729 = vmatprep.subr.bf16.mxu0 %v2635
          %2730 = vmatpush1.bf16.msra.mxu0 %v2634
          %2731 = vmatprep.subr.bf16.mxu0 %v2639
          %2732 = vmatpush1.bf16.msra.mxu0 %v2638
          %2733 = vmatprep.subr.bf16.mxu0 %v2643
          %2734 = vmatpush1.bf16.msra.mxu0 %v2642
          %2735 = vmatprep.subr.bf16.mxu0 0
          %2736 = vmatpush1.bf16.msra.mxu0 0
          %2737 = vmatprep.subr.bf16.mxu0 0
          %2738 = vmatpush1.bf16.msra.mxu0 0
          %2739 = vmatprep.subr.bf16.mxu0 0
          %2740 = vmatpush1.bf16.msra.mxu0 0
          %2741 = vmatprep.subr.bf16.mxu0 0
          %2742 = vmatpush1.bf16.msra.mxu0 0
          %2743 = vmatprep.subr.bf16.mxu0 0
          %2744 = vmatpush1.bf16.msra.mxu0 0
          %2745 = vmatprep.subr.bf16.mxu0 0
          %2746 = vmatpush1.bf16.msra.mxu0 0
          %2747 = vmatprep.subr.bf16.mxu0 0
          %2748 = vmatpush1.bf16.msra.mxu0 0
          %2749 = vmatprep.subr.bf16.mxu0 0
          %2750 = vmatpush1.bf16.msra.mxu0 0
          %2751 = vmatprep.mubr.bf16.mxu0 0
          %2752 = vmatmul.mubr.bf16.gmra.mrb[0].mxu0 %v2514
          %v2753 = vpop.f32.mrb[0].mxu0
          %v2754 = vadd.f32 %v2501, %v2753
          %v2755 = vpop.f32.mrb[0].mxu0
          %v2756 = vadd.f32 %v2505, %v2755
          %v2757 = vpop.f32.mrb[0].mxu0
          %v2758 = vadd.f32 %v2501, %v2757
          %v2759 = vpop.f32.mrb[0].mxu0
          %v2760 = vadd.f32 %v2505, %v2759
          %2761 = vdwg.mxu0
          %2762 = vst [vmem:[#allocation2 + $0x80] sm:$0xff] %v2711
          %2763 = vst [vmem:[#allocation2 + $0x88] sm:$0xff] %v2713
          %2764 = vst [vmem:[#allocation2 + $0x90] sm:$0xff] %v2754
          %2765 = vst [vmem:[#allocation2 + $0x98] sm:$0xff] %v2756
          %2766 = vst [vmem:[#allocation2 + $0xa0] sm:$0xff] %v2715
          %2767 = vst [vmem:[#allocation2 + $0xa8] sm:$0xff] %v2717
          %2768 = vst [vmem:[#allocation2 + $0xb0] sm:$0xff] %v2758
          %2769 = vst [vmem:[#allocation2 + $0xb8] sm:$0xff] %v2760
          %v2770 = vld [vmem:[#allocation2 + $0xc0] sm:$0xff]
          %v2771 = vld [vmem:[#allocation2 + $0xc8] sm:$0xff]
          %v2772 = vld [vmem:[#allocation2 + $0xd0] sm:$0xff]
          %v2773 = vld [vmem:[#allocation2 + $0xd8] sm:$0xff]
          %v2774 = vld [vmem:[#allocation2 + $0xe0] sm:$0xff]
          %v2775 = vld [vmem:[#allocation2 + $0xe8] sm:$0xff]
          %v2776 = vld [vmem:[#allocation2 + $0xf0] sm:$0xff]
          %v2777 = vld [vmem:[#allocation2 + $0xf8] sm:$0xff]
          %v2778 = vld [vmem:[#allocation3] sm:$0xff]
          %v2779 = vld [vmem:[#allocation10] sm:$0xff]
          %v2780 = vld [vmem:[#allocation10 + $0x8] sm:$0xff]
          %v2781 = vld [vmem:[#allocation10 + $0x10] sm:$0xff]
          %v2782 = vld [vmem:[#allocation10 + $0x18] sm:$0xff]
          %v2783 = vld [vmem:[#allocation10 + $0x20] sm:$0xff]
          %v2784 = vld [vmem:[#allocation10 + $0x28] sm:$0xff]
          %v2785 = vld [vmem:[#allocation10 + $0x30] sm:$0xff]
          %v2786 = vld [vmem:[#allocation10 + $0x38] sm:$0xff]
          %v2787 = vld [vmem:[#allocation10 + $0x40] sm:$0xff]
          %v2788 = vld [vmem:[#allocation10 + $0x48] sm:$0xff]
          %v2789 = vld [vmem:[#allocation10 + $0x50] sm:$0xff]
          %v2790 = vld [vmem:[#allocation10 + $0x58] sm:$0xff]
          %v2791 = vld [vmem:[#allocation10 + $0x60] sm:$0xff]
          %v2792 = vld [vmem:[#allocation10 + $0x68] sm:$0xff]
          %v2793 = vld [vmem:[#allocation10 + $0x70] sm:$0xff]
          %v2794 = vld [vmem:[#allocation10 + $0x78] sm:$0xff]
          %v2795 = vld [vmem:[#allocation10 + $0x80] sm:$0xff]
          %v2796 = vld [vmem:[#allocation10 + $0x88] sm:$0xff]
          %v2797 = vld [vmem:[#allocation10 + $0x90] sm:$0xff]
          %v2798 = vld [vmem:[#allocation10 + $0x98] sm:$0xff]
          %v2799 = vld [vmem:[#allocation10 + $0xa0] sm:$0xff]
          %v2800 = vld [vmem:[#allocation10 + $0xa8] sm:$0xff]
          %v2801 = vld [vmem:[#allocation10 + $0xb0] sm:$0xff]
          %v2802 = vld [vmem:[#allocation10 + $0xb8] sm:$0xff]
          %v2803 = vld [vmem:[#allocation10 + $0xc0] sm:$0xff]
          %v2804 = vld [vmem:[#allocation10 + $0xc8] sm:$0xff]
          %v2805 = vld [vmem:[#allocation10 + $0xd0] sm:$0xff]
          %v2806 = vld [vmem:[#allocation10 + $0xd8] sm:$0xff]
          %v2807 = vld [vmem:[#allocation10 + $0xe0] sm:$0xff]
          %v2808 = vld [vmem:[#allocation10 + $0xe8] sm:$0xff]
          %v2809 = vld [vmem:[#allocation10 + $0xf0] sm:$0xff]
          %v2810 = vld [vmem:[#allocation10 + $0xf8] sm:$0xff]
          %v2843 = vunpack.c.l.b16 %v2779
          %v2844 = vunpack.c.h.b16 %v2779
          %v2845 = vunpack.c.l.b16 %v2780
          %v2846 = vunpack.c.h.b16 %v2780
          %v2847 = vunpack.c.l.b16 %v2781
          %v2848 = vunpack.c.h.b16 %v2781
          %v2849 = vunpack.c.l.b16 %v2782
          %v2850 = vunpack.c.h.b16 %v2782
          %v2851 = vunpack.c.l.b16 %v2783
          %v2852 = vunpack.c.h.b16 %v2783
          %v2853 = vunpack.c.l.b16 %v2784
          %v2854 = vunpack.c.h.b16 %v2784
          %v2855 = vunpack.c.l.b16 %v2785
          %v2856 = vunpack.c.h.b16 %v2785
          %v2857 = vunpack.c.l.b16 %v2786
          %v2858 = vunpack.c.h.b16 %v2786
          %v2859 = vunpack.c.l.b16 %v2787
          %v2860 = vunpack.c.h.b16 %v2787
          %v2861 = vunpack.c.l.b16 %v2788
          %v2862 = vunpack.c.h.b16 %v2788
          %v2863 = vunpack.c.l.b16 %v2789
          %v2864 = vunpack.c.h.b16 %v2789
          %v2865 = vunpack.c.l.b16 %v2790
          %v2866 = vunpack.c.h.b16 %v2790
          %v2867 = vunpack.c.l.b16 %v2791
          %v2868 = vunpack.c.h.b16 %v2791
          %v2869 = vunpack.c.l.b16 %v2792
          %v2870 = vunpack.c.h.b16 %v2792
          %v2871 = vunpack.c.l.b16 %v2793
          %v2872 = vunpack.c.h.b16 %v2793
          %v2873 = vunpack.c.l.b16 %v2794
          %v2874 = vunpack.c.h.b16 %v2794
          %v2875 = vunpack.c.l.b16 %v2795
          %v2876 = vunpack.c.h.b16 %v2795
          %v2877 = vunpack.c.l.b16 %v2796
          %v2878 = vunpack.c.h.b16 %v2796
          %v2879 = vunpack.c.l.b16 %v2797
          %v2880 = vunpack.c.h.b16 %v2797
          %v2881 = vunpack.c.l.b16 %v2798
          %v2882 = vunpack.c.h.b16 %v2798
          %v2883 = vunpack.c.l.b16 %v2799
          %v2884 = vunpack.c.h.b16 %v2799
          %v2885 = vunpack.c.l.b16 %v2800
          %v2886 = vunpack.c.h.b16 %v2800
          %v2887 = vunpack.c.l.b16 %v2801
          %v2888 = vunpack.c.h.b16 %v2801
          %v2889 = vunpack.c.l.b16 %v2802
          %v2890 = vunpack.c.h.b16 %v2802
          %v2891 = vunpack.c.l.b16 %v2803
          %v2892 = vunpack.c.h.b16 %v2803
          %v2893 = vunpack.c.l.b16 %v2804
          %v2894 = vunpack.c.h.b16 %v2804
          %v2895 = vunpack.c.l.b16 %v2805
          %v2896 = vunpack.c.h.b16 %v2805
          %v2897 = vunpack.c.l.b16 %v2806
          %v2898 = vunpack.c.h.b16 %v2806
          %v2899 = vunpack.c.l.b16 %v2807
          %v2900 = vunpack.c.h.b16 %v2807
          %v2901 = vunpack.c.l.b16 %v2808
          %v2902 = vunpack.c.h.b16 %v2808
          %v2903 = vunpack.c.l.b16 %v2809
          %v2904 = vunpack.c.h.b16 %v2809
          %v2905 = vunpack.c.l.b16 %v2810
          %v2906 = vunpack.c.h.b16 %v2810
          %v2907 = vpack.c.b16 %v2847, %v2843
          %v2908 = vpack.c.b16 %v2848, %v2844
          %v2909 = vpack.c.b16 %v2849, %v2845
          %v2910 = vpack.c.b16 %v2850, %v2846
          %v2911 = vpack.c.b16 %v2855, %v2851
          %v2912 = vpack.c.b16 %v2856, %v2852
          %v2913 = vpack.c.b16 %v2857, %v2853
          %v2914 = vpack.c.b16 %v2858, %v2854
          %v2915 = vpack.c.b16 %v2863, %v2859
          %v2916 = vpack.c.b16 %v2864, %v2860
          %v2917 = vpack.c.b16 %v2865, %v2861
          %v2918 = vpack.c.b16 %v2866, %v2862
          %v2919 = vpack.c.b16 %v2871, %v2867
          %v2920 = vpack.c.b16 %v2872, %v2868
          %v2921 = vpack.c.b16 %v2873, %v2869
          %v2922 = vpack.c.b16 %v2874, %v2870
          %v2923 = vpack.c.b16 %v2879, %v2875
          %v2924 = vpack.c.b16 %v2880, %v2876
          %v2925 = vpack.c.b16 %v2881, %v2877
          %v2926 = vpack.c.b16 %v2882, %v2878
          %v2927 = vpack.c.b16 %v2887, %v2883
          %v2928 = vpack.c.b16 %v2888, %v2884
          %v2929 = vpack.c.b16 %v2889, %v2885
          %v2930 = vpack.c.b16 %v2890, %v2886
          %v2931 = vpack.c.b16 %v2895, %v2891
          %v2932 = vpack.c.b16 %v2896, %v2892
          %v2933 = vpack.c.b16 %v2897, %v2893
          %v2934 = vpack.c.b16 %v2898, %v2894
          %v2935 = vpack.c.b16 %v2903, %v2899
          %v2936 = vpack.c.b16 %v2904, %v2900
          %v2937 = vpack.c.b16 %v2905, %v2901
          %v2938 = vpack.c.b16 %v2906, %v2902
          %2971 = vmatprep.subr.bf16.mxu0 %v2908
          %2972 = vmatpush1.bf16.msra.mxu0 %v2907
          %2973 = vmatprep.subr.bf16.mxu0 %v2912
          %2974 = vmatpush1.bf16.msra.mxu0 %v2911
          %2975 = vmatprep.subr.bf16.mxu0 %v2916
          %2976 = vmatpush1.bf16.msra.mxu0 %v2915
          %2977 = vmatprep.subr.bf16.mxu0 %v2920
          %2978 = vmatpush1.bf16.msra.mxu0 %v2919
          %2979 = vmatprep.subr.bf16.mxu0 %v2924
          %2980 = vmatpush1.bf16.msra.mxu0 %v2923
          %2981 = vmatprep.subr.bf16.mxu0 %v2928
          %2982 = vmatpush1.bf16.msra.mxu0 %v2927
          %2983 = vmatprep.subr.bf16.mxu0 %v2932
          %2984 = vmatpush1.bf16.msra.mxu0 %v2931
          %2985 = vmatprep.subr.bf16.mxu0 %v2936
          %2986 = vmatpush1.bf16.msra.mxu0 %v2935
          %2987 = vmatprep.subr.bf16.mxu0 0
          %2988 = vmatpush1.bf16.msra.mxu0 0
          %2989 = vmatprep.subr.bf16.mxu0 0
          %2990 = vmatpush1.bf16.msra.mxu0 0
          %2991 = vmatprep.subr.bf16.mxu0 0
          %2992 = vmatpush1.bf16.msra.mxu0 0
          %2993 = vmatprep.subr.bf16.mxu0 0
          %2994 = vmatpush1.bf16.msra.mxu0 0
          %2995 = vmatprep.subr.bf16.mxu0 0
          %2996 = vmatpush1.bf16.msra.mxu0 0
          %2997 = vmatprep.subr.bf16.mxu0 0
          %2998 = vmatpush1.bf16.msra.mxu0 0
          %2999 = vmatprep.subr.bf16.mxu0 0
          %3000 = vmatpush1.bf16.msra.mxu0 0
          %3001 = vmatprep.subr.bf16.mxu0 0
          %3002 = vmatpush1.bf16.msra.mxu0 0
          %3003 = vmatprep.mubr.bf16.mxu0 0
          %3004 = vmatmul.mubr.bf16.gmra.mrb[0].mxu0 %v2778
          %v3005 = vpop.f32.mrb[0].mxu0
          %v3006 = vadd.f32 0.0, %v3005
          %v3007 = vpop.f32.mrb[0].mxu0
          %v3008 = vadd.f32 0.0, %v3007
          %v3009 = vpop.f32.mrb[0].mxu0
          %v3010 = vadd.f32 0.0, %v3009
          %v3011 = vpop.f32.mrb[0].mxu0
          %v3012 = vadd.f32 0.0, %v3011
          %3013 = vdwg.mxu0
          %3014 = vmatprep.subr.bf16.mxu0 %v2910
          %3015 = vmatpush1.bf16.msra.mxu0 %v2909
          %3016 = vmatprep.subr.bf16.mxu0 %v2914
          %3017 = vmatpush1.bf16.msra.mxu0 %v2913
          %3018 = vmatprep.subr.bf16.mxu0 %v2918
          %3019 = vmatpush1.bf16.msra.mxu0 %v2917
          %3020 = vmatprep.subr.bf16.mxu0 %v2922
          %3021 = vmatpush1.bf16.msra.mxu0 %v2921
          %3022 = vmatprep.subr.bf16.mxu0 %v2926
          %3023 = vmatpush1.bf16.msra.mxu0 %v2925
          %3024 = vmatprep.subr.bf16.mxu0 %v2930
          %3025 = vmatpush1.bf16.msra.mxu0 %v2929
          %3026 = vmatprep.subr.bf16.mxu0 %v2934
          %3027 = vmatpush1.bf16.msra.mxu0 %v2933
          %3028 = vmatprep.subr.bf16.mxu0 %v2938
          %3029 = vmatpush1.bf16.msra.mxu0 %v2937
          %3030 = vmatprep.subr.bf16.mxu0 0
          %3031 = vmatpush1.bf16.msra.mxu0 0
          %3032 = vmatprep.subr.bf16.mxu0 0
          %3033 = vmatpush1.bf16.msra.mxu0 0
          %3034 = vmatprep.subr.bf16.mxu0 0
          %3035 = vmatpush1.bf16.msra.mxu0 0
          %3036 = vmatprep.subr.bf16.mxu0 0
          %3037 = vmatpush1.bf16.msra.mxu0 0
          %3038 = vmatprep.subr.bf16.mxu0 0
          %3039 = vmatpush1.bf16.msra.mxu0 0
          %3040 = vmatprep.subr.bf16.mxu0 0
          %3041 = vmatpush1.bf16.msra.mxu0 0
          %3042 = vmatprep.subr.bf16.mxu0 0
          %3043 = vmatpush1.bf16.msra.mxu0 0
          %3044 = vmatprep.subr.bf16.mxu0 0
          %3045 = vmatpush1.bf16.msra.mxu0 0
          %3046 = vmatprep.mubr.bf16.mxu0 0
          %3047 = vmatmul.mubr.bf16.gmra.mrb[0].mxu0 %v2778
          %v3048 = vpop.f32.mrb[0].mxu0
          %v3049 = vadd.f32 0.0, %v3048
          %v3050 = vpop.f32.mrb[0].mxu0
          %v3051 = vadd.f32 0.0, %v3050
          %v3052 = vpop.f32.mrb[0].mxu0
          %v3053 = vadd.f32 0.0, %v3052
          %v3054 = vpop.f32.mrb[0].mxu0
          %v3055 = vadd.f32 0.0, %v3054
          %3056 = vdwg.mxu0
          %v3057 = vadd.f32 %v2770, %v3006
          %v3058 = vadd.f32 %v2771, %v3008
          %v3059 = vadd.f32 %v2772, %v3049
          %v3060 = vadd.f32 %v2773, %v3051
          %v3061 = vadd.f32 %v2774, %v3010
          %v3062 = vadd.f32 %v2775, %v3012
          %v3063 = vadd.f32 %v2776, %v3053
          %v3064 = vadd.f32 %v2777, %v3055
          %v3065 = vxor.u32 %v3057, 2147483648
          %v3066 = vxor.u32 %v3058, 2147483648
          %v3067 = vxor.u32 %v3059, 2147483648
          %v3068 = vxor.u32 %v3061, 2147483648
          %v3069 = vxor.u32 %v3062, 2147483648
          %v3070 = vxor.u32 %v3063, 2147483648
          %v3071 = vmul.f32 %v3065, 1.442695
          %v3072 = vpow.pop %v3071
          %v3073 = vmul.f32 %v3066, 1.442695
          %v3074 = vpow.pop %v3073
          %v3075 = vmul.f32 %v3067, 1.442695
          %v3076 = vpow.pop %v3075
          %v3077 = vmul.f32 %v3068, 1.442695
          %v3078 = vpow.pop %v3077
          %v3079 = vmul.f32 %v3069, 1.442695
          %v3080 = vpow.pop %v3079
          %v3081 = vmul.f32 %v3070, 1.442695
          %v3082 = vpow.pop %v3081
          %v3083 = vadd.f32 %v3072, 1.0
          %v3084 = vadd.f32 %v3074, 1.0
          %v3085 = vadd.f32 %v3076, 1.0
          %v3086 = vadd.f32 %v3078, 1.0
          %v3087 = vadd.f32 %v3080, 1.0
          %v3088 = vadd.f32 %v3082, 1.0
          %v3089 = vrcp.pop %v3083
          %v3090 = vmul.f32 1.0, %v3089
          %v3091 = vrcp.pop %v3084
          %v3092 = vmul.f32 1.0, %v3091
          %v3093 = vrcp.pop %v3085
          %v3094 = vmul.f32 1.0, %v3093
          %v3095 = vrcp.pop %v3086
          %v3096 = vmul.f32 1.0, %v3095
          %v3097 = vrcp.pop %v3087
          %v3098 = vmul.f32 1.0, %v3097
          %v3099 = vrcp.pop %v3088
          %v3100 = vmul.f32 1.0, %v3099
          %v3101 = vtanh.pop %v3060
          %v3102 = vtanh.pop %v3064
          %v3103 = vld [vmem:[#allocation4] sm:$0xff]
          %v3104 = vld [vmem:[#allocation4 + $0x8] sm:$0xff]
          %v3105 = vmul.f32 %v3092, %v3103
          %v3106 = vmul.f32 %v3098, %v3104
          %v3107 = vmul.f32 %v3090, %v3101
          %v3108 = vmul.f32 %v3096, %v3102
          %v3109 = vadd.f32 %v3105, %v3107
          %v3110 = vadd.f32 %v3106, %v3108
          %v3111 = vtanh.pop %v3109
          %v3112 = vtanh.pop %v3110
          %v3113 = vmul.f32 %v3094, %v3111
          %v3114 = vmul.f32 %v3100, %v3112
          %v3115 = vpack.c.bf16 %v3114, %v3113
          %s3116 = sadd.s32 %s748, 3
          %p3117 = scmp.lt.s32.totalorder %s3116, 9
          %s3118 = scalar_select %p3117, 1, 0
          %v3119 = vstv %s3118
          %vm3120 = vcmp.eq.s32.totalorder %v3119, 1
          %v3121 = vsel %vm3120, %v3109, %v3103
          %v3122 = vsel %vm3120, %v3110, %v3104
          %3123 = vst [vmem:[#allocation4] sm:$0xff] %v3121
          %3124 = vst [vmem:[#allocation4 + $0x8] sm:$0xff] %v3122
          %v3125 = vld [vmem:[#allocation3] sm:$0xff]
          %v3126 = vsel %vm3120, %v3115, %v3125
          %3127 = vst [vmem:[#allocation3] sm:$0xff] %v3126
          %v3128 = vld [vmem:[%s272 + $0x18] sm:$0xf]
          %v3129 = vld [vmem:[%s272 + $0x1c] sm:$0xf]
          %v3130 = vld [vmem:[#allocation8] sm:$0xff]
          %v3131 = vld [vmem:[#allocation8 + $0x8] sm:$0xff]
          %v3132 = vld [vmem:[#allocation8 + $0x10] sm:$0xff]
          %v3133 = vld [vmem:[#allocation8 + $0x18] sm:$0xff]
          %v3134 = vld [vmem:[#allocation8 + $0x20] sm:$0xff]
          %v3135 = vld [vmem:[#allocation8 + $0x28] sm:$0xff]
          %v3136 = vld [vmem:[#allocation8 + $0x30] sm:$0xff]
          %v3137 = vld [vmem:[#allocation8 + $0x38] sm:$0xff]
          %v3138 = vld [vmem:[#allocation8 + $0x40] sm:$0xff]
          %v3139 = vld [vmem:[#allocation8 + $0x48] sm:$0xff]
          %v3140 = vld [vmem:[#allocation8 + $0x50] sm:$0xff]
          %v3141 = vld [vmem:[#allocation8 + $0x58] sm:$0xff]
          %v3142 = vld [vmem:[#allocation8 + $0x60] sm:$0xff]
          %v3143 = vld [vmem:[#allocation8 + $0x68] sm:$0xff]
          %v3144 = vld [vmem:[#allocation8 + $0x70] sm:$0xff]
          %v3145 = vld [vmem:[#allocation8 + $0x78] sm:$0xff]
          %v3146 = vld [vmem:[#allocation8 + $0x80] sm:$0xff]
          %v3147 = vld [vmem:[#allocation8 + $0x88] sm:$0xff]
          %v3148 = vld [vmem:[#allocation8 + $0x90] sm:$0xff]
          %v3149 = vld [vmem:[#allocation8 + $0x98] sm:$0xff]
          %v3150 = vld [vmem:[#allocation8 + $0xa0] sm:$0xff]
          %v3151 = vld [vmem:[#allocation8 + $0xa8] sm:$0xff]
          %v3152 = vld [vmem:[#allocation8 + $0xb0] sm:$0xff]
          %v3153 = vld [vmem:[#allocation8 + $0xb8] sm:$0xff]
          %v3154 = vld [vmem:[#allocation8 + $0xc0] sm:$0xff]
          %v3155 = vld [vmem:[#allocation8 + $0xc8] sm:$0xff]
          %v3156 = vld [vmem:[#allocation8 + $0xd0] sm:$0xff]
          %v3157 = vld [vmem:[#allocation8 + $0xd8] sm:$0xff]
          %v3158 = vld [vmem:[#allocation8 + $0xe0] sm:$0xff]
          %v3159 = vld [vmem:[#allocation8 + $0xe8] sm:$0xff]
          %v3160 = vld [vmem:[#allocation8 + $0xf0] sm:$0xff]
          %v3161 = vld [vmem:[#allocation8 + $0xf8] sm:$0xff]
          %v3162 = vld [vmem:[%s3] sm:$0xf]
          %v3164 = vlaneseq
          %v3165 = vshrl.u32 %v3164, 7
          %v3166 = vsub.s32 0, %v3165
          %v3167 = vrot.slane %v3162, %v3166
          %v3168 = vlaneseq
          %v3169 = vshrl.u32 %v3168, 7
          %v3170 = vsub.s32 1, %v3169
          %v3171 = vrot.slane %v3162, %v3170
          %v3172 = vlaneseq
          %v3173 = vshrl.u32 %v3172, 7
          %v3174 = vsub.s32 2, %v3173
          %v3175 = vrot.slane %v3162, %v3174
          %v3176 = vlaneseq
          %v3177 = vshrl.u32 %v3176, 7
          %v3178 = vsub.s32 3, %v3177
          %v3179 = vrot.slane %v3162, %v3178
          %v3186 = vunpack.c.l.b16 %v3128
          %v3187 = vunpack.c.l.b16 %v3129
          %v3188 = vpack.c.b16 %v3187, %v3186
          %v3222 = vunpack.c.l.b16 %v3130
          %v3223 = vunpack.c.h.b16 %v3130
          %v3224 = vunpack.c.l.b16 %v3131
          %v3225 = vunpack.c.h.b16 %v3131
          %v3226 = vunpack.c.l.b16 %v3132
          %v3227 = vunpack.c.h.b16 %v3132
          %v3228 = vunpack.c.l.b16 %v3133
          %v3229 = vunpack.c.h.b16 %v3133
          %v3230 = vunpack.c.l.b16 %v3134
          %v3231 = vunpack.c.h.b16 %v3134
          %v3232 = vunpack.c.l.b16 %v3135
          %v3233 = vunpack.c.h.b16 %v3135
          %v3234 = vunpack.c.l.b16 %v3136
          %v3235 = vunpack.c.h.b16 %v3136
          %v3236 = vunpack.c.l.b16 %v3137
          %v3237 = vunpack.c.h.b16 %v3137
          %v3238 = vunpack.c.l.b16 %v3138
          %v3239 = vunpack.c.h.b16 %v3138
          %v3240 = vunpack.c.l.b16 %v3139
          %v3241 = vunpack.c.h.b16 %v3139
          %v3242 = vunpack.c.l.b16 %v3140
          %v3243 = vunpack.c.h.b16 %v3140
          %v3244 = vunpack.c.l.b16 %v3141
          %v3245 = vunpack.c.h.b16 %v3141
          %v3246 = vunpack.c.l.b16 %v3142
          %v3247 = vunpack.c.h.b16 %v3142
          %v3248 = vunpack.c.l.b16 %v3143
          %v3249 = vunpack.c.h.b16 %v3143
          %v3250 = vunpack.c.l.b16 %v3144
          %v3251 = vunpack.c.h.b16 %v3144
          %v3252 = vunpack.c.l.b16 %v3145
          %v3253 = vunpack.c.h.b16 %v3145
          %v3254 = vunpack.c.l.b16 %v3146
          %v3255 = vunpack.c.h.b16 %v3146
          %v3256 = vunpack.c.l.b16 %v3147
          %v3257 = vunpack.c.h.b16 %v3147
          %v3258 = vunpack.c.l.b16 %v3148
          %v3259 = vunpack.c.h.b16 %v3148
          %v3260 = vunpack.c.l.b16 %v3149
          %v3261 = vunpack.c.h.b16 %v3149
          %v3262 = vunpack.c.l.b16 %v3150
          %v3263 = vunpack.c.h.b16 %v3150
          %v3264 = vunpack.c.l.b16 %v3151
          %v3265 = vunpack.c.h.b16 %v3151
          %v3266 = vunpack.c.l.b16 %v3152
          %v3267 = vunpack.c.h.b16 %v3152
          %v3268 = vunpack.c.l.b16 %v3153
          %v3269 = vunpack.c.h.b16 %v3153
          %v3270 = vunpack.c.l.b16 %v3154
          %v3271 = vunpack.c.h.b16 %v3154
          %v3272 = vunpack.c.l.b16 %v3155
          %v3273 = vunpack.c.h.b16 %v3155
          %v3274 = vunpack.c.l.b16 %v3156
          %v3275 = vunpack.c.h.b16 %v3156
          %v3276 = vunpack.c.l.b16 %v3157
          %v3277 = vunpack.c.h.b16 %v3157
          %v3278 = vunpack.c.l.b16 %v3158
          %v3279 = vunpack.c.h.b16 %v3158
          %v3280 = vunpack.c.l.b16 %v3159
          %v3281 = vunpack.c.h.b16 %v3159
          %v3282 = vunpack.c.l.b16 %v3160
          %v3283 = vunpack.c.h.b16 %v3160
          %v3284 = vunpack.c.l.b16 %v3161
          %v3285 = vunpack.c.h.b16 %v3161
          %v3286 = vpack.c.b16 %v3226, %v3222
          %v3287 = vpack.c.b16 %v3227, %v3223
          %v3288 = vpack.c.b16 %v3228, %v3224
          %v3289 = vpack.c.b16 %v3229, %v3225
          %v3290 = vpack.c.b16 %v3234, %v3230
          %v3291 = vpack.c.b16 %v3235, %v3231
          %v3292 = vpack.c.b16 %v3236, %v3232
          %v3293 = vpack.c.b16 %v3237, %v3233
          %v3294 = vpack.c.b16 %v3242, %v3238
          %v3295 = vpack.c.b16 %v3243, %v3239
          %v3296 = vpack.c.b16 %v3244, %v3240
          %v3297 = vpack.c.b16 %v3245, %v3241
          %v3298 = vpack.c.b16 %v3250, %v3246
          %v3299 = vpack.c.b16 %v3251, %v3247
          %v3300 = vpack.c.b16 %v3252, %v3248
          %v3301 = vpack.c.b16 %v3253, %v3249
          %v3302 = vpack.c.b16 %v3258, %v3254
          %v3303 = vpack.c.b16 %v3259, %v3255
          %v3304 = vpack.c.b16 %v3260, %v3256
          %v3305 = vpack.c.b16 %v3261, %v3257
          %v3306 = vpack.c.b16 %v3266, %v3262
          %v3307 = vpack.c.b16 %v3267, %v3263
          %v3308 = vpack.c.b16 %v3268, %v3264
          %v3309 = vpack.c.b16 %v3269, %v3265
          %v3310 = vpack.c.b16 %v3274, %v3270
          %v3311 = vpack.c.b16 %v3275, %v3271
          %v3312 = vpack.c.b16 %v3276, %v3272
          %v3313 = vpack.c.b16 %v3277, %v3273
          %v3314 = vpack.c.b16 %v3282, %v3278
          %v3315 = vpack.c.b16 %v3283, %v3279
          %v3316 = vpack.c.b16 %v3284, %v3280
          %v3317 = vpack.c.b16 %v3285, %v3281
          %3350 = vmatprep.subr.bf16.mxu0 %v3287
          %3351 = vmatpush1.bf16.msra.mxu0 %v3286
          %3352 = vmatprep.subr.bf16.mxu0 %v3291
          %3353 = vmatpush1.bf16.msra.mxu0 %v3290
          %3354 = vmatprep.subr.bf16.mxu0 %v3295
          %3355 = vmatpush1.bf16.msra.mxu0 %v3294
          %3356 = vmatprep.subr.bf16.mxu0 %v3299
          %3357 = vmatpush1.bf16.msra.mxu0 %v3298
          %3358 = vmatprep.subr.bf16.mxu0 %v3303
          %3359 = vmatpush1.bf16.msra.mxu0 %v3302
          %3360 = vmatprep.subr.bf16.mxu0 %v3307
          %3361 = vmatpush1.bf16.msra.mxu0 %v3306
          %3362 = vmatprep.subr.bf16.mxu0 %v3311
          %3363 = vmatpush1.bf16.msra.mxu0 %v3310
          %3364 = vmatprep.subr.bf16.mxu0 %v3315
          %3365 = vmatpush1.bf16.msra.mxu0 %v3314
          %3366 = vmatprep.subr.bf16.mxu0 0
          %3367 = vmatpush1.bf16.msra.mxu0 0
          %3368 = vmatprep.subr.bf16.mxu0 0
          %3369 = vmatpush1.bf16.msra.mxu0 0
          %3370 = vmatprep.subr.bf16.mxu0 0
          %3371 = vmatpush1.bf16.msra.mxu0 0
          %3372 = vmatprep.subr.bf16.mxu0 0
          %3373 = vmatpush1.bf16.msra.mxu0 0
          %3374 = vmatprep.subr.bf16.mxu0 0
          %3375 = vmatpush1.bf16.msra.mxu0 0
          %3376 = vmatprep.subr.bf16.mxu0 0
          %3377 = vmatpush1.bf16.msra.mxu0 0
          %3378 = vmatprep.subr.bf16.mxu0 0
          %3379 = vmatpush1.bf16.msra.mxu0 0
          %3380 = vmatprep.subr.bf16.mxu0 0
          %3381 = vmatpush1.bf16.msra.mxu0 0
          %3382 = vmatprep.mubr.bf16.mxu0 0
          %3383 = vmatmul.mubr.bf16.gmra.mrb[0].mxu0 %v3188
          %v3384 = vpop.f32.mrb[0].mxu0
          %v3385 = vadd.f32 %v3167, %v3384
          %v3386 = vpop.f32.mrb[0].mxu0
          %v3387 = vadd.f32 %v3171, %v3386
          %v3388 = vpop.f32.mrb[0].mxu0
          %v3389 = vadd.f32 %v3167, %v3388
          %v3390 = vpop.f32.mrb[0].mxu0
          %v3391 = vadd.f32 %v3171, %v3390
          %3392 = vdwg.mxu0
          %3393 = vmatprep.subr.bf16.mxu0 %v3289
          %3394 = vmatpush1.bf16.msra.mxu0 %v3288
          %3395 = vmatprep.subr.bf16.mxu0 %v3293
          %3396 = vmatpush1.bf16.msra.mxu0 %v3292
          %3397 = vmatprep.subr.bf16.mxu0 %v3297
          %3398 = vmatpush1.bf16.msra.mxu0 %v3296
          %3399 = vmatprep.subr.bf16.mxu0 %v3301
          %3400 = vmatpush1.bf16.msra.mxu0 %v3300
          %3401 = vmatprep.subr.bf16.mxu0 %v3305
          %3402 = vmatpush1.bf16.msra.mxu0 %v3304
          %3403 = vmatprep.subr.bf16.mxu0 %v3309
          %3404 = vmatpush1.bf16.msra.mxu0 %v3308
          %3405 = vmatprep.subr.bf16.mxu0 %v3313
          %3406 = vmatpush1.bf16.msra.mxu0 %v3312
          %3407 = vmatprep.subr.bf16.mxu0 %v3317
          %3408 = vmatpush1.bf16.msra.mxu0 %v3316
          %3409 = vmatprep.subr.bf16.mxu0 0
          %3410 = vmatpush1.bf16.msra.mxu0 0
          %3411 = vmatprep.subr.bf16.mxu0 0
          %3412 = vmatpush1.bf16.msra.mxu0 0
          %3413 = vmatprep.subr.bf16.mxu0 0
          %3414 = vmatpush1.bf16.msra.mxu0 0
          %3415 = vmatprep.subr.bf16.mxu0 0
          %3416 = vmatpush1.bf16.msra.mxu0 0
          %3417 = vmatprep.subr.bf16.mxu0 0
          %3418 = vmatpush1.bf16.msra.mxu0 0
          %3419 = vmatprep.subr.bf16.mxu0 0
          %3420 = vmatpush1.bf16.msra.mxu0 0
          %3421 = vmatprep.subr.bf16.mxu0 0
          %3422 = vmatpush1.bf16.msra.mxu0 0
          %3423 = vmatprep.subr.bf16.mxu0 0
          %3424 = vmatpush1.bf16.msra.mxu0 0
          %3425 = vmatprep.mubr.bf16.mxu0 0
          %3426 = vmatmul.mubr.bf16.gmra.mrb[0].mxu0 %v3188
          %v3427 = vpop.f32.mrb[0].mxu0
          %v3428 = vadd.f32 %v3175, %v3427
          %v3429 = vpop.f32.mrb[0].mxu0
          %v3430 = vadd.f32 %v3179, %v3429
          %v3431 = vpop.f32.mrb[0].mxu0
          %v3432 = vadd.f32 %v3175, %v3431
          %v3433 = vpop.f32.mrb[0].mxu0
          %v3434 = vadd.f32 %v3179, %v3433
          %3435 = vdwg.mxu0
          %3436 = vst [vmem:[#allocation2 + $0xc0] sm:$0xff] %v3385
          %3437 = vst [vmem:[#allocation2 + $0xc8] sm:$0xff] %v3387
          %3438 = vst [vmem:[#allocation2 + $0xd0] sm:$0xff] %v3428
          %3439 = vst [vmem:[#allocation2 + $0xd8] sm:$0xff] %v3430
          %3440 = vst [vmem:[#allocation2 + $0xe0] sm:$0xff] %v3389
          %3441 = vst [vmem:[#allocation2 + $0xe8] sm:$0xff] %v3391
          %3442 = vst [vmem:[#allocation2 + $0xf0] sm:$0xff] %v3432
          %3443 = vst [vmem:[#allocation2 + $0xf8] sm:$0xff] %v3434
        $region68: #{tpu_custom_call.1} parent=43 // pred_fallthru
          _
        %p3444 = scmp.eq.s32.totalorder %s23, 3
        // Predicated region
        $region69: #{tpu_custom_call.1} parent=43 // pred_check
          %p3445 = pneg %p3444
        $region70: #{tpu_custom_call.1} parent=43 // pred_check_branch
          %3447 = sbr.rel (%p3445) target = $region72
        $region71: #{tpu_custom_call.1} parent=43 // pred_region
          %v3448 = vld [vmem:[#allocation3] sm:$0xff]
          %v3449 = vld [vmem:[#allocation11] sm:$0xf]
          %v3450 = vld [vmem:[#allocation11 + $0x4] sm:$0xf]
          %v3451 = vld [vmem:[#allocation11 + $0x8] sm:$0xf]
          %v3452 = vld [vmem:[#allocation11 + $0xc] sm:$0xf]
          %v3453 = vld [vmem:[#allocation11 + $0x10] sm:$0xf]
          %v3454 = vld [vmem:[#allocation11 + $0x14] sm:$0xf]
          %v3455 = vld [vmem:[#allocation11 + $0x18] sm:$0xf]
          %v3456 = vld [vmem:[#allocation11 + $0x1c] sm:$0xf]
          %v3457 = vld [vmem:[#allocation11 + $0x20] sm:$0xf]
          %v3458 = vld [vmem:[#allocation11 + $0x24] sm:$0xf]
          %v3459 = vld [vmem:[#allocation11 + $0x28] sm:$0xf]
          %v3460 = vld [vmem:[#allocation11 + $0x2c] sm:$0xf]
          %v3461 = vld [vmem:[#allocation11 + $0x30] sm:$0xf]
          %v3462 = vld [vmem:[#allocation11 + $0x34] sm:$0xf]
          %v3463 = vld [vmem:[#allocation11 + $0x38] sm:$0xf]
          %v3464 = vld [vmem:[#allocation11 + $0x3c] sm:$0xf]
          %v3465 = vld [vmem:[%s5] sm:$0x1]
          %v3467 = vlaneseq
          %v3468 = vshrl.u32 %v3467, 7
          %v3469 = vsub.s32 0, %v3468
          %v3470 = vrot.slane %v3465, %v3469
          %v3488 = vunpack.c.l.b16 %v3449
          %v3489 = vunpack.c.l.b16 %v3450
          %v3490 = vunpack.c.l.b16 %v3451
          %v3491 = vunpack.c.l.b16 %v3452
          %v3492 = vunpack.c.l.b16 %v3453
          %v3493 = vunpack.c.l.b16 %v3454
          %v3494 = vunpack.c.l.b16 %v3455
          %v3495 = vunpack.c.l.b16 %v3456
          %v3496 = vunpack.c.l.b16 %v3457
          %v3497 = vunpack.c.l.b16 %v3458
          %v3498 = vunpack.c.l.b16 %v3459
          %v3499 = vunpack.c.l.b16 %v3460
          %v3500 = vunpack.c.l.b16 %v3461
          %v3501 = vunpack.c.l.b16 %v3462
          %v3502 = vunpack.c.l.b16 %v3463
          %v3503 = vunpack.c.l.b16 %v3464
          %v3504 = vpack.c.b16 %v3489, %v3488
          %v3505 = vpack.c.b16 %v3491, %v3490
          %v3506 = vpack.c.b16 %v3493, %v3492
          %v3507 = vpack.c.b16 %v3495, %v3494
          %v3508 = vpack.c.b16 %v3497, %v3496
          %v3509 = vpack.c.b16 %v3499, %v3498
          %v3510 = vpack.c.b16 %v3501, %v3500
          %v3511 = vpack.c.b16 %v3503, %v3502
          %3520 = vmatprep.subr.bf16.mxu0 0
          %3521 = vmatpush1.bf16.msra.mxu0 %v3504
          %3522 = vmatprep.subr.bf16.mxu0 0
          %3523 = vmatpush1.bf16.msra.mxu0 %v3505
          %3524 = vmatprep.subr.bf16.mxu0 0
          %3525 = vmatpush1.bf16.msra.mxu0 %v3506
          %3526 = vmatprep.subr.bf16.mxu0 0
          %3527 = vmatpush1.bf16.msra.mxu0 %v3507
          %3528 = vmatprep.subr.bf16.mxu0 0
          %3529 = vmatpush1.bf16.msra.mxu0 %v3508
          %3530 = vmatprep.subr.bf16.mxu0 0
          %3531 = vmatpush1.bf16.msra.mxu0 %v3509
          %3532 = vmatprep.subr.bf16.mxu0 0
          %3533 = vmatpush1.bf16.msra.mxu0 %v3510
          %3534 = vmatprep.subr.bf16.mxu0 0
          %3535 = vmatpush1.bf16.msra.mxu0 %v3511
          %3536 = vmatprep.subr.bf16.mxu0 0
          %3537 = vmatpush1.bf16.msra.mxu0 0
          %3538 = vmatprep.subr.bf16.mxu0 0
          %3539 = vmatpush1.bf16.msra.mxu0 0
          %3540 = vmatprep.subr.bf16.mxu0 0
          %3541 = vmatpush1.bf16.msra.mxu0 0
          %3542 = vmatprep.subr.bf16.mxu0 0
          %3543 = vmatpush1.bf16.msra.mxu0 0
          %3544 = vmatprep.subr.bf16.mxu0 0
          %3545 = vmatpush1.bf16.msra.mxu0 0
          %3546 = vmatprep.subr.bf16.mxu0 0
          %3547 = vmatpush1.bf16.msra.mxu0 0
          %3548 = vmatprep.subr.bf16.mxu0 0
          %3549 = vmatpush1.bf16.msra.mxu0 0
          %3550 = vmatprep.subr.bf16.mxu0 0
          %3551 = vmatpush1.bf16.msra.mxu0 0
          %3552 = vmatprep.mubr.bf16.mxu0 0
          %3553 = vmatmul.mubr.bf16.gmra.mrb[0].mxu0 %v3448
          %v3554 = vpop.f32.mrb[0].mxu0
          %v3555 = vadd.f32 %v3470, %v3554
          %v3556 = vpop.f32.mrb[0].mxu0
          %v3557 = vpop.f32.mrb[0].mxu0
          %v3558 = vadd.f32 %v3470, %v3557
          %v3559 = vpop.f32.mrb[0].mxu0
          %3560 = vdwg.mxu0
          %3561 = vst [vmem:[#allocation13] sm:$0xff] %v3555
          %3562 = vst [vmem:[#allocation13 + $0x8] sm:$0xff] %v3558
        $region72: #{tpu_custom_call.1} parent=43 // pred_fallthru
          _
        // Predicated region
        $region73: #{tpu_custom_call.1} parent=43 // pred_check
          %p3563 = pneg %p171
        $region74: #{tpu_custom_call.1} parent=43 // pred_check_branch
          %3565 = sbr.rel (%p3563) target = $region76
        $region75: #{tpu_custom_call.1} parent=43 // pred_region
          %s3567 = ssub.s32 256, 256
          %3568 = vsyncadd [#allocation7], %s3567
          %s3569 = sshll.u32 [#allocation13], 4
          %s3570 = int_to_ptr.vmem [resolvable:$true] %s3569
          %3575 = dma.vmem_to_hbm [thread:$0]  %s3570, 256, %s6, [#allocation7], 128, 128, 8
        $region76: #{tpu_custom_call.1} parent=43 // pred_fallthru
          _
        // Predicated region
        $region77: #{tpu_custom_call.1} parent=43 // pred_check
          %p3576 = pneg %p171
        $region78: #{tpu_custom_call.1} parent=43 // pred_check_branch
          %3578 = sbr.rel (%p3576) target = $region80
        $region79: #{tpu_custom_call.1} parent=43 // pred_region
          %3579 = dma.done [#allocation7], 256
        $region80: #{tpu_custom_call.1} parent=43 // pred_fallthru
          _
      $region44: #{tpu_custom_call.1} parent=5 // pred_fallthru
        _
      %p3580 = scmp.le.s32.totalorder 2, %s18
      // Predicated region
      $region81: #{tpu_custom_call.1} parent=5 // pred_check
        %p3581 = pneg %p3580
      $region82: #{tpu_custom_call.1} parent=5 // pred_check_branch
        %3583 = sbr.rel (%p3581) target = $region84
      $region83: #{tpu_custom_call.1} parent=5 // pred_region
        %s3584 = ssub.s32 %s18, 2
      $region84: #{tpu_custom_call.1} parent=5 // pred_fallthru
        _
    $region6: #{tpu_custom_call.1} parent=1 // loop_footer
      %s22 = sadd.s32 1, %s18
    $region7: #{tpu_custom_call.1} parent=1 // loop_footer_branch
      %17 = sbr.rel target = $region3
    $region8: #{tpu_custom_call.1} parent=1 // loop_exit
      _
    %3585 = vsyncpa [#allocation6], 1
    %s3586 = scalar_lea.sflag [#allocation6], 1
    %3587 = vsyncpa %s3586, 1
    %3588 = vsyncpa [#allocation9], 1
    %3589 = vsyncpa [#allocation12], 1
    %3590 = vsyncpa [#allocation7], 1
    %s3591 = scalar_lea.sflag [#allocation7], 1
    %3592 = vsyncpa %s3591, 1

</llo_original>
